<compile_context>
chip_gen: v7x
topology: tpu7x:2x2x1
jax: 0.10.0
libtpu: 0.0.40
codegen_flags: <defaults>
</compile_context>

<pallas_src>
import functools

import jax
import jax.numpy as jnp
from jax.experimental import pallas as pl
from jax.experimental.pallas import tpu as pltpu

SCALE_WEIGHT = 0.5 ** 0.5


def _stacked_gated_conv_kernel(x_ref, w_ref, b_ref, o_ref, xpad_ref, *,
                               num_layers, width, H, C, TB, pad_lo, pad_max):
    # x_ref:   (TB, H, C)            activation block (TB independent columns)
    # w_ref:   (L, width*C, 2C)      per-layer im2col-packed conv weights
    # b_ref:   (L, 1, 2C)            per-layer conv biases
    # o_ref:   (TB, H, C)            output block
    # xpad_ref:(TB, Hpad, C) f32     scratch; interior at sublane-aligned pad_lo,
    #                                zero halo supplies the conv padding.
    M = TB * H

    # Zero ONLY the halo rows (top pad_lo, bottom pad_max).  The interior is
    # fully rewritten below and the layer loop never writes the halo.  Done
    # every grid step (cheap: (pad_lo+pad_max) << Hpad rows) so it remains
    # correct when the "parallel" grid axis is split across TensorCores.
    xpad_ref[:, pl.ds(0, pad_lo), :] = jnp.zeros((TB, pad_lo, C), jnp.float32)
    xpad_ref[:, pl.ds(pad_lo + H, pad_max), :] = jnp.zeros(
        (TB, pad_max, C), jnp.float32)

    # Place the incoming activation block in the interior.
    xpad_ref[:, pl.ds(pad_lo, H), :] = x_ref[...].astype(jnp.float32)

    for l in range(num_layers):                 # L is tiny & static -> unrolled
        dilation = 2 ** l
        pad = (width // 2) * dilation

        # Center tap == the resident interior; reuse it as the residual input.
        x_cur = xpad_ref[:, pl.ds(pad_lo, H), :].reshape(M, C)

        taps = []
        for k in range(width):                  # width is tiny & static
            start = pad_lo - pad + k * dilation   # static int, in [0, Hpad - H]
            if start == pad_lo:
                taps.append(x_cur)
            else:
                taps.append(xpad_ref[:, pl.ds(start, H), :].reshape(M, C))

        # im2col: ONE (M, width*C) @ (width*C, 2C) MXU matmul per layer instead
        # of `width` K=C matmuls + adds; bias added once after the matmul.
        slab = jnp.concatenate(taps, axis=-1)
        y = jnp.dot(slab, w_ref[l],
                    preferred_element_type=jnp.float32) + b_ref[l]

        out = y[:, :C]
        gate = y[:, C:]
        new_x = (x_cur + out * jax.nn.sigmoid(gate)) * SCALE_WEIGHT  # GLU + residual

        if l + 1 < num_layers:
            xpad_ref[:, pl.ds(pad_lo, H), :] = new_x.reshape(TB, H, C)
        else:
            # Last layer: write straight to the output block.
            o_ref[...] = new_x.reshape(TB, H, C).astype(o_ref.dtype)


def _choose_tb(B, H, C, Hpad, L, width):
    """Pick the column-block size TB from an explicit VMEM budget."""
    budget = 36 * 1024 * 1024                 # headroom under v7x's 64 MiB VMEM
    # Constant blocks (double-buffered by default): packed weights + biases.
    const = 2 * (L * width * C * 2 * C + L * 2 * C) * 4
    # Per-column bytes: input block (x2 buffers) + output block (x2) + scratch.
    per_col = (2 * H + 2 * H + Hpad) * C * 4
    tb_vmem = max(1, (budget - const) // per_col)
    tb_rows = max(1, 2048 // max(H, 1))       # ~2048 matmul rows/step is plenty
    TB = int(min(B, tb_vmem, tb_rows))
    # Prefer >=2 grid steps so both v7x TensorCores get work, as long as each
    # step still feeds the MXU a reasonable M.
    if B > 1 and pl.cdiv(B, TB) == 1 and ((B + 1) // 2) * H >= 256:
        TB = (B + 1) // 2
    return TB


def stacked_cnn_forward(x_nchw, w_stacked, b_stacked, *, width=3):
    """StackedCNN.forward (all_layers_hid=False). Input/output are NCHW."""
    N, C, H, W = x_nchw.shape
    L = w_stacked.shape[0]
    B = N * W

    # NCHW -> (N, W, H, C) -> (B, H, C): channels on the lane axis.
    x = jnp.transpose(x_nchw, (0, 3, 2, 1)).reshape(B, H, C)

    pad_max = (width // 2) * (2 ** (L - 1))
    pad_lo = pl.cdiv(pad_max, 8) * 8          # sublane-aligned interior offset
    Hpad = pad_lo + H + pad_max

    TB = _choose_tb(B, H, C, Hpad, L, width)
    Bp = pl.cdiv(B, TB) * TB
    if Bp != B:
        x = jnp.pad(x, ((0, Bp - B), (0, 0), (0, 0)))   # columns are independent

    # Pack per-layer taps into a single (width*C, 2C) contraction so each layer
    # is exactly one MXU matmul in the kernel (rows k*C:(k+1)*C = tap k).
    w_packed = w_stacked.reshape(L, width * C, 2 * C)
    b_packed = b_stacked.reshape(L, 1, 2 * C)

    kernel = functools.partial(
        _stacked_gated_conv_kernel, num_layers=L, width=width, H=H, C=C,
        TB=TB, pad_lo=pad_lo, pad_max=pad_max)

    out = pl.pallas_call(
        kernel,
        out_shape=jax.ShapeDtypeStruct((Bp, H, C), x.dtype),
        grid=(Bp // TB,),
        in_specs=[
            pl.BlockSpec((TB, H, C), lambda i: (i, 0, 0)),
            # Constant-index blocks: the pipeliner does not re-fetch them
            # between steps since the block index never changes.
            pl.BlockSpec((L, width * C, 2 * C), lambda i: (0, 0, 0)),
            pl.BlockSpec((L, 1, 2 * C), lambda i: (0, 0, 0)),
        ],
        out_specs=pl.BlockSpec((TB, H, C), lambda i: (i, 0, 0)),
        scratch_shapes=[pltpu.VMEM((TB, Hpad, C), jnp.float32)],
        input_output_aliases={0: 0},
        compiler_params=pltpu.CompilerParams(
            dimension_semantics=("parallel",),
            vmem_limit_bytes=48 * 1024 * 1024),
    )(x, w_packed, b_packed)

    out = out[:B]
    return jnp.transpose(out.reshape(N, W, H, C), (0, 3, 2, 1))


def init_stacked_cnn_params(key, num_layers, input_size, width=3, dropout=0.2):
    """Synthetic init mirroring the PyTorch module's parameter shapes.

    Per layer: conv weight (2C, C, width, 1), xavier_uniform with
    gain = sqrt(4*(1-dropout)); conv bias (2C,).  Stored stacked as
    (L, width, C, 2C) / (L, 2C); the wrapper packs taps into (width*C, 2C)."""
    C = input_size
    gain = (4.0 * (1.0 - dropout)) ** 0.5
    fan_in = C * width
    fan_out = 2 * C * width
    w_bound = gain * (6.0 / (fan_in + fan_out)) ** 0.5
    b_bound = 1.0 / (fan_in ** 0.5)

    ws, bs = [], []
    for _ in range(num_layers):
        key, kw, kb = jax.random.split(key, 3)
        w_nchw = jax.random.uniform(kw, (2 * C, C, width, 1),
                                    minval=-w_bound, maxval=w_bound,
                                    dtype=jnp.float32)
        ws.append(jnp.transpose(w_nchw[:, :, :, 0], (2, 1, 0)))  # (width, C, 2C)
        bs.append(jax.random.uniform(kb, (2 * C,), minval=-b_bound,
                                     maxval=b_bound, dtype=jnp.float32))
    return jnp.stack(ws), jnp.stack(bs)


def _reference_forward(x_nchw, w_stacked, b_stacked, *, width=3):
    """Pure-JAX reference with identical math for a correctness check."""
    N, C, H, W = x_nchw.shape
    L = w_stacked.shape[0]
    x = jnp.transpose(x_nchw, (0, 3, 2, 1)).reshape(N * W, H, C)
    for l in range(L):
        dilation = 2 ** l
        pad = (width // 2) * dilation
        xp = jnp.pad(x, ((0, 0), (pad, pad), (0, 0)))
        y = b_stacked[l][None, None, :]
        for k in range(width):
            y = y + jnp.einsum('bhc,cd->bhd',
                               xp[:, k * dilation:k * dilation + H, :],
                               w_stacked[l, k])
        out, gate = y[..., :C], y[..., C:]
        x = (x + out * jax.nn.sigmoid(gate)) * SCALE_WEIGHT
    return jnp.transpose(x.reshape(N, W, H, C), (0, 3, 2, 1))


if __name__ == "__main__":
    key = jax.random.PRNGKey(0)
    k_x, k_p = jax.random.split(key)

    # Small shapes consistent with the module: NCHW input, input_size = C.
    N, C, H, W = 2, 32, 16, 16
    num_layers, width = 3, 3          # dilations 1, 2, 4

    x = jax.random.normal(k_x, (N, C, H, W), dtype=jnp.float32)
    w_stacked, b_stacked = init_stacked_cnn_params(k_p, num_layers, C,
                                                   width=width)

    fwd = jax.jit(functools.partial(stacked_cnn_forward, width=width))
    out = jax.block_until_ready(fwd(x, w_stacked, b_stacked))

    ref = _reference_forward(x, w_stacked, b_stacked, width=width)
    assert out.shape == (N, C, H, W)
    assert jnp.allclose(out, ref, atol=1e-4, rtol=1e-4), "mismatch vs reference"

    print("KERNEL_OK")
</pallas_src>

<mosaic_0001>
module attributes {stable_mosaic.version = 11 : i64} {
  func.func @_stacked_gated_conv_kernel(%arg0: i32, %arg1: memref<16x16x32xf32, #tpu.memory_space<vmem>>, %arg2: memref<3x96x64xf32, #tpu.memory_space<vmem>>, %arg3: memref<3x1x64xf32, #tpu.memory_space<vmem>>, %arg4: memref<16x16x32xf32, #tpu.memory_space<vmem>>, %arg5: memref<16x28x32xf32, #tpu.memory_space<vmem>>) attributes {dimension_semantics = [#tpu.dimension_semantics<parallel>], iteration_bounds = array<i64: 2>, scalar_prefetch = 0 : i64, scratch_operands = 1 : i64, tpu.core_type = #tpu.core_type<tc>, window_params = [{transform_indices = @transform_0, window_bounds = array<i64: 16, 16, 32>}, {pipeline_mode = #tpu.pipeline_mode<synchronous>, transform_indices = @transform_1, window_bounds = array<i64: 3, 96, 64>}, {pipeline_mode = #tpu.pipeline_mode<synchronous>, transform_indices = @transform_2, window_bounds = array<i64: 3, 1, 64>}, {transform_indices = @transform_3, window_bounds = array<i64: 16, 16, 32>}]} {
    %cst = arith.constant 0.000000e+00 : f32
    %0 = vector.broadcast %cst : f32 to vector<16x8x32xf32>
    %c0 = arith.constant 0 : index
    %c0_0 = arith.constant 0 : index
    %c0_1 = arith.constant 0 : index
    %1 = vector.load %arg5[%c0, %c0_0, %c0_1] : memref<16x28x32xf32, #tpu.memory_space<vmem>>, vector<16x8x32xf32>
    tpu.vector_store %arg5[%c0, %c0_0, %c0_1], %0 {strides = array<i32>} : memref<16x28x32xf32, #tpu.memory_space<vmem>>, vector<16x8x32xf32>,
    %cst_2 = arith.constant 0.000000e+00 : f32
    %2 = vector.broadcast %cst_2 : f32 to vector<16x4x32xf32>
    %c0_3 = arith.constant 0 : index
    %c24 = arith.constant 24 : index
    %c0_4 = arith.constant 0 : index
    %3 = vector.load %arg5[%c0_3, %c24, %c0_4] : memref<16x28x32xf32, #tpu.memory_space<vmem>>, vector<16x4x32xf32>
    tpu.vector_store %arg5[%c0_3, %c24, %c0_4], %2 {strides = array<i32>} : memref<16x28x32xf32, #tpu.memory_space<vmem>>, vector<16x4x32xf32>,
    %c0_5 = arith.constant 0 : index
    %c0_6 = arith.constant 0 : index
    %c0_7 = arith.constant 0 : index
    %4 = vector.load %arg1[%c0_5, %c0_6, %c0_7] : memref<16x16x32xf32, #tpu.memory_space<vmem>>, vector<16x16x32xf32>
    %c0_8 = arith.constant 0 : index
    %c8 = arith.constant 8 : index
    %c0_9 = arith.constant 0 : index
    %5 = vector.load %arg5[%c0_8, %c8, %c0_9] : memref<16x28x32xf32, #tpu.memory_space<vmem>>, vector<16x16x32xf32>
    tpu.vector_store %arg5[%c0_8, %c8, %c0_9], %4 {strides = array<i32>} : memref<16x28x32xf32, #tpu.memory_space<vmem>>, vector<16x16x32xf32>,
    %c0_10 = arith.constant 0 : index
    %c8_11 = arith.constant 8 : index
    %c0_12 = arith.constant 0 : index
    %6 = vector.load %arg5[%c0_10, %c8_11, %c0_12] : memref<16x28x32xf32, #tpu.memory_space<vmem>>, vector<16x16x32xf32>
    %7 = vector.shape_cast %6 : vector<16x16x32xf32> to vector<256x32xf32>
    %c0_13 = arith.constant 0 : index
    %c7 = arith.constant 7 : index
    %c0_14 = arith.constant 0 : index
    %8 = vector.load %arg5[%c0_13, %c7, %c0_14] : memref<16x28x32xf32, #tpu.memory_space<vmem>>, vector<16x16x32xf32>
    %9 = vector.shape_cast %8 : vector<16x16x32xf32> to vector<256x32xf32>
    %c0_15 = arith.constant 0 : index
    %c9 = arith.constant 9 : index
    %c0_16 = arith.constant 0 : index
    %10 = vector.load %arg5[%c0_15, %c9, %c0_16] : memref<16x28x32xf32, #tpu.memory_space<vmem>>, vector<16x16x32xf32>
    %11 = vector.shape_cast %10 : vector<16x16x32xf32> to vector<256x32xf32>
    %12 = tpu.concatenate %9, %7, %11 in 1 : vector<256x32xf32>, vector<256x32xf32>, vector<256x32xf32> -> vector<256x96xf32>
    %c0_17 = arith.constant 0 : index
    %c0_18 = arith.constant 0 : index
    %c0_19 = arith.constant 0 : index
    %13 = vector.load %arg2[%c0_17, %c0_18, %c0_19] : memref<3x96x64xf32, #tpu.memory_space<vmem>>, vector<1x96x64xf32>
    %14 = vector.shape_cast %13 : vector<1x96x64xf32> to vector<96x64xf32>
    %cst_20 = arith.constant dense<0.000000e+00> : vector<256x64xf32>
    %15 = tpu.matmul %12, %14, %cst_20 {dimension_numbers = #tpu.dot_dimension_numbers<[1], [0], [0], [1], [0, 0, 1, 1], [], []>} : vector<256x96xf32>, vector<96x64xf32>, vector<256x64xf32> -> vector<256x64xf32>
    %c0_21 = arith.constant 0 : index
    %c0_22 = arith.constant 0 : index
    %c0_23 = arith.constant 0 : index
    %16 = vector.load %arg3[%c0_21, %c0_22, %c0_23] : memref<3x1x64xf32, #tpu.memory_space<vmem>>, vector<1x1x64xf32>
    %17 = vector.shape_cast %16 : vector<1x1x64xf32> to vector<1x64xf32>
    %18 = vector.broadcast %17 : vector<1x64xf32> to vector<256x64xf32>
    %19 = arith.addf %15, %18 : vector<256x64xf32>
    %20 = vector.extract_strided_slice %19 {offsets = [0, 0], sizes = [256, 32], strides = [1, 1]} : vector<256x64xf32> to vector<256x32xf32>
    %21 = vector.extract_strided_slice %19 {offsets = [0, 32], sizes = [256, 32], strides = [1, 1]} : vector<256x64xf32> to vector<256x32xf32>
    %22 = arith.negf %21 : vector<256x32xf32>
    %23 = math.exp %22 : vector<256x32xf32>
    %cst_24 = arith.constant 1.000000e+00 : f32
    %24 = vector.broadcast %cst_24 : f32 to vector<256x32xf32>
    %25 = arith.addf %24, %23 : vector<256x32xf32>
    %26 = arith.divf %24, %25 : vector<256x32xf32>
    %27 = arith.mulf %20, %26 : vector<256x32xf32>
    %28 = arith.addf %7, %27 : vector<256x32xf32>
    %cst_25 = arith.constant 0.707106769 : f32
    %29 = vector.broadcast %cst_25 : f32 to vector<256x32xf32>
    %30 = arith.mulf %28, %29 : vector<256x32xf32>
    %31 = vector.shape_cast %30 : vector<256x32xf32> to vector<16x16x32xf32>
    %c0_26 = arith.constant 0 : index
    %c8_27 = arith.constant 8 : index
    %c0_28 = arith.constant 0 : index
    %32 = vector.load %arg5[%c0_26, %c8_27, %c0_28] : memref<16x28x32xf32, #tpu.memory_space<vmem>>, vector<16x16x32xf32>
    tpu.vector_store %arg5[%c0_26, %c8_27, %c0_28], %31 {strides = array<i32>} : memref<16x28x32xf32, #tpu.memory_space<vmem>>, vector<16x16x32xf32>,
    %c0_29 = arith.constant 0 : index
    %c8_30 = arith.constant 8 : index
    %c0_31 = arith.constant 0 : index
    %33 = vector.load %arg5[%c0_29, %c8_30, %c0_31] : memref<16x28x32xf32, #tpu.memory_space<vmem>>, vector<16x16x32xf32>
    %34 = vector.shape_cast %33 : vector<16x16x32xf32> to vector<256x32xf32>
    %c0_32 = arith.constant 0 : index
    %c6 = arith.constant 6 : index
    %c0_33 = arith.constant 0 : index
    %35 = vector.load %arg5[%c0_32, %c6, %c0_33] : memref<16x28x32xf32, #tpu.memory_space<vmem>>, vector<16x16x32xf32>
    %36 = vector.shape_cast %35 : vector<16x16x32xf32> to vector<256x32xf32>
    %c0_34 = arith.constant 0 : index
    %c10 = arith.constant 10 : index
    %c0_35 = arith.constant 0 : index
    %37 = vector.load %arg5[%c0_34, %c10, %c0_35] : memref<16x28x32xf32, #tpu.memory_space<vmem>>, vector<16x16x32xf32>
    %38 = vector.shape_cast %37 : vector<16x16x32xf32> to vector<256x32xf32>
    %39 = tpu.concatenate %36, %34, %38 in 1 : vector<256x32xf32>, vector<256x32xf32>, vector<256x32xf32> -> vector<256x96xf32>
    %c1 = arith.constant 1 : index
    %c0_36 = arith.constant 0 : index
    %c0_37 = arith.constant 0 : index
    %40 = vector.load %arg2[%c1, %c0_36, %c0_37] : memref<3x96x64xf32, #tpu.memory_space<vmem>>, vector<1x96x64xf32>
    %41 = vector.shape_cast %40 : vector<1x96x64xf32> to vector<96x64xf32>
    %cst_38 = arith.constant dense<0.000000e+00> : vector<256x64xf32>
    %42 = tpu.matmul %39, %41, %cst_38 {dimension_numbers = #tpu.dot_dimension_numbers<[1], [0], [0], [1], [0, 0, 1, 1], [], []>} : vector<256x96xf32>, vector<96x64xf32>, vector<256x64xf32> -> vector<256x64xf32>
    %c1_39 = arith.constant 1 : index
    %c0_40 = arith.constant 0 : index
    %c0_41 = arith.constant 0 : index
    %43 = vector.load %arg3[%c1_39, %c0_40, %c0_41] : memref<3x1x64xf32, #tpu.memory_space<vmem>>, vector<1x1x64xf32>
    %44 = vector.shape_cast %43 : vector<1x1x64xf32> to vector<1x64xf32>
    %45 = vector.broadcast %44 : vector<1x64xf32> to vector<256x64xf32>
    %46 = arith.addf %42, %45 : vector<256x64xf32>
    %47 = vector.extract_strided_slice %46 {offsets = [0, 0], sizes = [256, 32], strides = [1, 1]} : vector<256x64xf32> to vector<256x32xf32>
    %48 = vector.extract_strided_slice %46 {offsets = [0, 32], sizes = [256, 32], strides = [1, 1]} : vector<256x64xf32> to vector<256x32xf32>
    %49 = arith.negf %48 : vector<256x32xf32>
    %50 = math.exp %49 : vector<256x32xf32>
    %cst_42 = arith.constant 1.000000e+00 : f32
    %51 = vector.broadcast %cst_42 : f32 to vector<256x32xf32>
    %52 = arith.addf %51, %50 : vector<256x32xf32>
    %53 = arith.divf %51, %52 : vector<256x32xf32>
    %54 = arith.mulf %47, %53 : vector<256x32xf32>
    %55 = arith.addf %34, %54 : vector<256x32xf32>
    %cst_43 = arith.constant 0.707106769 : f32
    %56 = vector.broadcast %cst_43 : f32 to vector<256x32xf32>
    %57 = arith.mulf %55, %56 : vector<256x32xf32>
    %58 = vector.shape_cast %57 : vector<256x32xf32> to vector<16x16x32xf32>
    %c0_44 = arith.constant 0 : index
    %c8_45 = arith.constant 8 : index
    %c0_46 = arith.constant 0 : index
    %59 = vector.load %arg5[%c0_44, %c8_45, %c0_46] : memref<16x28x32xf32, #tpu.memory_space<vmem>>, vector<16x16x32xf32>
    tpu.vector_store %arg5[%c0_44, %c8_45, %c0_46], %58 {strides = array<i32>} : memref<16x28x32xf32, #tpu.memory_space<vmem>>, vector<16x16x32xf32>,
    %c0_47 = arith.constant 0 : index
    %c8_48 = arith.constant 8 : index
    %c0_49 = arith.constant 0 : index
    %60 = vector.load %arg5[%c0_47, %c8_48, %c0_49] : memref<16x28x32xf32, #tpu.memory_space<vmem>>, vector<16x16x32xf32>
    %61 = vector.shape_cast %60 : vector<16x16x32xf32> to vector<256x32xf32>
    %c0_50 = arith.constant 0 : index
    %c4 = arith.constant 4 : index
    %c0_51 = arith.constant 0 : index
    %62 = vector.load %arg5[%c0_50, %c4, %c0_51] : memref<16x28x32xf32, #tpu.memory_space<vmem>>, vector<16x16x32xf32>
    %63 = vector.shape_cast %62 : vector<16x16x32xf32> to vector<256x32xf32>
    %c0_52 = arith.constant 0 : index
    %c12 = arith.constant 12 : index
    %c0_53 = arith.constant 0 : index
    %64 = vector.load %arg5[%c0_52, %c12, %c0_53] : memref<16x28x32xf32, #tpu.memory_space<vmem>>, vector<16x16x32xf32>
    %65 = vector.shape_cast %64 : vector<16x16x32xf32> to vector<256x32xf32>
    %66 = tpu.concatenate %63, %61, %65 in 1 : vector<256x32xf32>, vector<256x32xf32>, vector<256x32xf32> -> vector<256x96xf32>
    %c2 = arith.constant 2 : index
    %c0_54 = arith.constant 0 : index
    %c0_55 = arith.constant 0 : index
    %67 = vector.load %arg2[%c2, %c0_54, %c0_55] : memref<3x96x64xf32, #tpu.memory_space<vmem>>, vector<1x96x64xf32>
    %68 = vector.shape_cast %67 : vector<1x96x64xf32> to vector<96x64xf32>
    %cst_56 = arith.constant dense<0.000000e+00> : vector<256x64xf32>
    %69 = tpu.matmul %66, %68, %cst_56 {dimension_numbers = #tpu.dot_dimension_numbers<[1], [0], [0], [1], [0, 0, 1, 1], [], []>} : vector<256x96xf32>, vector<96x64xf32>, vector<256x64xf32> -> vector<256x64xf32>
    %c2_57 = arith.constant 2 : index
    %c0_58 = arith.constant 0 : index
    %c0_59 = arith.constant 0 : index
    %70 = vector.load %arg3[%c2_57, %c0_58, %c0_59] : memref<3x1x64xf32, #tpu.memory_space<vmem>>, vector<1x1x64xf32>
    %71 = vector.shape_cast %70 : vector<1x1x64xf32> to vector<1x64xf32>
    %72 = vector.broadcast %71 : vector<1x64xf32> to vector<256x64xf32>
    %73 = arith.addf %69, %72 : vector<256x64xf32>
    %74 = vector.extract_strided_slice %73 {offsets = [0, 0], sizes = [256, 32], strides = [1, 1]} : vector<256x64xf32> to vector<256x32xf32>
    %75 = vector.extract_strided_slice %73 {offsets = [0, 32], sizes = [256, 32], strides = [1, 1]} : vector<256x64xf32> to vector<256x32xf32>
    %76 = arith.negf %75 : vector<256x32xf32>
    %77 = math.exp %76 : vector<256x32xf32>
    %cst_60 = arith.constant 1.000000e+00 : f32
    %78 = vector.broadcast %cst_60 : f32 to vector<256x32xf32>
    %79 = arith.addf %78, %77 : vector<256x32xf32>
    %80 = arith.divf %78, %79 : vector<256x32xf32>
    %81 = arith.mulf %74, %80 : vector<256x32xf32>
    %82 = arith.addf %61, %81 : vector<256x32xf32>
    %cst_61 = arith.constant 0.707106769 : f32
    %83 = vector.broadcast %cst_61 : f32 to vector<256x32xf32>
    %84 = arith.mulf %82, %83 : vector<256x32xf32>
    %85 = vector.shape_cast %84 : vector<256x32xf32> to vector<16x16x32xf32>
    %c0_62 = arith.constant 0 : index
    %c0_63 = arith.constant 0 : index
    %c0_64 = arith.constant 0 : index
    %86 = vector.load %arg4[%c0_62, %c0_63, %c0_64] : memref<16x16x32xf32, #tpu.memory_space<vmem>>, vector<16x16x32xf32>
    tpu.vector_store %arg4[%c0_62, %c0_63, %c0_64], %85 {strides = array<i32>} : memref<16x16x32xf32, #tpu.memory_space<vmem>>, vector<16x16x32xf32>,
    return
  }
  func.func @transform_0(%arg0: i32) -> (i32, i32, i32) {
    %c0_i32 = arith.constant 0 : i32
    %c0_i32_0 = arith.constant 0 : i32
    %c0_i32_1 = arith.constant 0 : i32
    return %arg0, %c0_i32, %c0_i32_0 : i32, i32, i32
  }
  func.func @transform_1(%arg0: i32) -> (i32, i32, i32) {
    %c0_i32 = arith.constant 0 : i32
    %c0_i32_0 = arith.constant 0 : i32
    %c0_i32_1 = arith.constant 0 : i32
    %c0_i32_2 = arith.constant 0 : i32
    return %c0_i32, %c0_i32_0, %c0_i32_1 : i32, i32, i32
  }
  func.func @transform_2(%arg0: i32) -> (i32, i32, i32) {
    %c0_i32 = arith.constant 0 : i32
    %c0_i32_0 = arith.constant 0 : i32
    %c0_i32_1 = arith.constant 0 : i32
    %c0_i32_2 = arith.constant 0 : i32
    return %c0_i32, %c0_i32_0, %c0_i32_1 : i32, i32, i32
  }
  func.func @transform_3(%arg0: i32) -> (i32, i32, i32) {
    %c0_i32 = arith.constant 0 : i32
    %c0_i32_0 = arith.constant 0 : i32
    %c0_i32_1 = arith.constant 0 : i32
    return %arg0, %c0_i32, %c0_i32_0 : i32, i32, i32
  }
}

</mosaic_0001>

<llo_original>
// kernel: stacked_cnn_forward.1
$region0: #{stacked_cnn_forward.1}
  #allocation0 [shape = 'u32[]', space=smem, size = 0x4, offset = 0x4, fixed_abs, tag = 'smem constant byte address 0x4 - core index']
  #allocation1 [shape = 'u32[144,128]{1,0:T(1,128)}', space=vmem, size = 0x12000, scoped, tag = 'internal scratch']
  #allocation2 [shape = 'f32[16,28,32]{2,1,0:T(8,128)}', space=vmem, size = 0x40000, scoped, tag = 'scratch operand']
  %s0 = inlined_call_operand.vmem [shape: f32[32,16,32], index: 0, kind: input, shape index: {}, may-alias: {0,3}]
  %s1 = inlined_call_operand.vmem [shape: f32[3,96,64], index: 1, kind: input, shape index: {}]
  %s2 = inlined_call_operand.vmem [shape: f32[3,1,64], index: 2, kind: input, shape index: {}]
  %s3 = inlined_call_operand.vmem [shape: f32[32,16,32], index: 3, kind: output, shape index: {}, may-alias: {0,3}]
  %s4 = sld [smem:[#allocation0]]
  $region45: #{stacked_cnn_forward.1} parent=0
    _
  %s6 = ssub.s32 1, %s4
  %s7 = scalar_select 0, %s6, %s4
  loop: start=0, step=1, limit=4
  $region2: #{stacked_cnn_forward.1} parent=0 // loop_pre_header
    _
  $region3: #{stacked_cnn_forward.1} parent=0 // loop_header
    %s9 = sphi 0, %s13
    %p10 = scmp.ge.s32.totalorder %s9, 4
    %s19 = sphi 0, %s21
    %s22 = sphi 0, %s19
    %s23 = sphi 0, %s22
    %s39 = sphi 0, %s23
    %s43 = sphi 0, %s43
    %s45 = sphi 0, %s43
    %s46 = sphi 0, %s45
    %s60 = sphi 0, %s46
    %s64 = sphi 0, %s64
    %s66 = sphi 0, %s64
    %s67 = sphi 0, %s66
    %s81 = sphi 0, %s67
    %s87 = sphi 0, %s89
    %s90 = sphi 0, %s87
    %s91 = sphi 0, %s90
    %s107 = sphi 0, %s91
  $region4: #{stacked_cnn_forward.1} parent=0 // loop_header_branch
    %12 = sbr.rel (%p10) target = $region8
  $region5: #{stacked_cnn_forward.1} parent=0 // loop_body
    %s14 = ssub.s32 %s9, 1
    %s15 = ssub.s32 %s9, 2
    %s16 = sadd.s32 %s9, 1
    %s17 = ssub.s32 %s9, %s16
    %p18 = scmp.eq.s32.totalorder %s17, 0
    %s20 = sadd.s32 %s19, 1
    %s21 = scalar_select %p18, %s19, %s20
    %p24 = pneg %p18
    %p25 = scmp.eq.s32.totalorder %s9, 1
    %p26 = por %p24, %p25
    %p27 = scmp.ne.s32.totalorder %s19, %s22
    %p28 = scmp.eq.s32.totalorder %s9, 0
    %p29 = por %p27, %p28
    %p30 = scmp.ne.s32.totalorder %s19, %s22
    %p31 = scmp.eq.s32.totalorder %s14, 1
    %p32 = por %p30, %p31
    %p33 = scmp.ne.s32.totalorder %s22, %s23
    %p34 = scmp.eq.s32.totalorder %s14, 0
    %p35 = por %p33, %p34
    %p36 = scmp.ne.s32.totalorder %s22, %s23
    %p37 = scmp.eq.s32.totalorder %s15, 1
    %p38 = por %p36, %p37
    %p40 = scmp.ne.s32.totalorder %s23, %s39
    %p41 = scmp.eq.s32.totalorder %s15, 0
    %p42 = por %p40, %p41
    %s44 = sadd.s32 %s43, 1
    %p47 = scmp.eq.s32.totalorder %s9, 1
    %p48 = scmp.ne.s32.totalorder %s43, %s45
    %p49 = scmp.eq.s32.totalorder %s9, 0
    %p50 = por %p48, %p49
    %p51 = scmp.ne.s32.totalorder %s43, %s45
    %p52 = scmp.eq.s32.totalorder %s14, 1
    %p53 = por %p51, %p52
    %p54 = scmp.ne.s32.totalorder %s45, %s46
    %p55 = scmp.eq.s32.totalorder %s14, 0
    %p56 = por %p54, %p55
    %p57 = scmp.ne.s32.totalorder %s45, %s46
    %p58 = scmp.eq.s32.totalorder %s15, 1
    %p59 = por %p57, %p58
    %p61 = scmp.ne.s32.totalorder %s46, %s60
    %p62 = scmp.eq.s32.totalorder %s15, 0
    %p63 = por %p61, %p62
    %s65 = sadd.s32 %s64, 1
    %p68 = scmp.eq.s32.totalorder %s9, 1
    %p69 = scmp.ne.s32.totalorder %s64, %s66
    %p70 = scmp.eq.s32.totalorder %s9, 0
    %p71 = por %p69, %p70
    %p72 = scmp.ne.s32.totalorder %s64, %s66
    %p73 = scmp.eq.s32.totalorder %s14, 1
    %p74 = por %p72, %p73
    %p75 = scmp.ne.s32.totalorder %s66, %s67
    %p76 = scmp.eq.s32.totalorder %s14, 0
    %p77 = por %p75, %p76
    %p78 = scmp.ne.s32.totalorder %s66, %s67
    %p79 = scmp.eq.s32.totalorder %s15, 1
    %p80 = por %p78, %p79
    %p82 = scmp.ne.s32.totalorder %s67, %s81
    %p83 = scmp.eq.s32.totalorder %s15, 0
    %p84 = por %p82, %p83
    %s85 = ssub.s32 %s9, %s16
    %p86 = scmp.eq.s32.totalorder %s85, 0
    %s88 = sadd.s32 %s87, 1
    %s89 = scalar_select %p86, %s87, %s88
    %p92 = pneg %p86
    %p93 = scmp.eq.s32.totalorder %s9, 1
    %p94 = por %p92, %p93
    %p95 = scmp.ne.s32.totalorder %s87, %s90
    %p96 = scmp.eq.s32.totalorder %s9, 0
    %p97 = por %p95, %p96
    %p98 = scmp.ne.s32.totalorder %s87, %s90
    %p99 = scmp.eq.s32.totalorder %s14, 1
    %p100 = por %p98, %p99
    %p101 = scmp.ne.s32.totalorder %s90, %s91
    %p102 = scmp.eq.s32.totalorder %s14, 0
    %p103 = por %p101, %p102
    %p104 = scmp.ne.s32.totalorder %s90, %s91
    %p105 = scmp.eq.s32.totalorder %s15, 1
    %p106 = por %p104, %p105
    %p108 = scmp.ne.s32.totalorder %s91, %s107
    %p109 = scmp.eq.s32.totalorder %s15, 0
    %p110 = por %p108, %p109
    %p111 = scmp.le.s32.totalorder 1, %s9
    %p112 = scmp.lt.s32.totalorder %s9, 3
    %p113 = pnand %p111, %p112
    %p114 = pneg %p113
    // Predicated region
    $region9: #{stacked_cnn_forward.1} parent=5 // pred_check
      _
    $region10: #{stacked_cnn_forward.1} parent=5 // pred_check_branch
      %116 = sbr.rel (%p113) target = $region12
    $region11: #{stacked_cnn_forward.1} parent=5 // pred_region
      %s117 = ssub.s32 %s9, 1
      // Predicated region
      $region13: #{stacked_cnn_forward.1} parent=11 // pred_check
        %p118 = pneg %p56
      $region14: #{stacked_cnn_forward.1} parent=11 // pred_check_branch
        %120 = sbr.rel (%p118) target = $region16
      $region15: #{stacked_cnn_forward.1} parent=11 // pred_region
        _
      $region16: #{stacked_cnn_forward.1} parent=11 // pred_fallthru
        _
      // Predicated region
      $region17: #{stacked_cnn_forward.1} parent=11 // pred_check
        %p121 = pneg %p77
      $region18: #{stacked_cnn_forward.1} parent=11 // pred_check_branch
        %123 = sbr.rel (%p121) target = $region20
      $region19: #{stacked_cnn_forward.1} parent=11 // pred_region
        _
      $region20: #{stacked_cnn_forward.1} parent=11 // pred_fallthru
        _
    $region12: #{stacked_cnn_forward.1} parent=5 // pred_fallthru
      _
    %p124 = scmp.lt.s32.totalorder %s9, 2
    // Predicated region
    $region21: #{stacked_cnn_forward.1} parent=5 // pred_check
      %p125 = pneg %p124
    $region22: #{stacked_cnn_forward.1} parent=5 // pred_check_branch
      %127 = sbr.rel (%p125) target = $region24
    $region23: #{stacked_cnn_forward.1} parent=5 // pred_region
      // Predicated region
      $region25: #{stacked_cnn_forward.1} parent=23 // pred_check
        %p128 = pneg %p29
      $region26: #{stacked_cnn_forward.1} parent=23 // pred_check_branch
        %130 = sbr.rel (%p128) target = $region28
      $region27: #{stacked_cnn_forward.1} parent=23 // pred_region
        %s131 = smul.u32 16, %s9
        %p132 = scmp.lt.s32.totalorder %s131, 31
        %s133 = scalar_select %p132, %s131, 31
        %s134 = smul.addr %s133, 2
        %s135 = smul.addr %s134, 8
        %s136 = scalar_lea.vmem %s0, %s135
        %s137 = smul.u32 16, %s9
      $region28: #{stacked_cnn_forward.1} parent=23 // pred_fallthru
        _
    $region24: #{stacked_cnn_forward.1} parent=5 // pred_fallthru
      _
    %p138 = scmp.le.s32.totalorder 1, %s9
    %p139 = scmp.lt.s32.totalorder %s9, 3
    %p140 = pnand %p138, %p139
    %p141 = pneg %p140
    // Predicated region
    $region29: #{stacked_cnn_forward.1} parent=5 // pred_check
      _
    $region30: #{stacked_cnn_forward.1} parent=5 // pred_check_branch
      %143 = sbr.rel (%p140) target = $region32
    $region31: #{stacked_cnn_forward.1} parent=5 // pred_region
      %s144 = ssub.s32 %s9, 1
      %s145 = smul.u32 16, %s14
      %p146 = scmp.lt.s32.totalorder %s145, 31
      %s147 = scalar_select %p146, %s145, 31
      %s148 = smul.addr %s147, 2
      %s149 = smul.addr %s148, 8
      %s150 = scalar_lea.vmem %s0, %s149
      %p151 = pneg %p35
      %p152 = pneg %p32
      %p153 = pneg %p56
      %p154 = pneg %p53
      %p155 = pneg %p77
      %p156 = pneg %p74
      %p157 = pneg %p103
      %p158 = pneg %p100
      %s159 = smul.u32 16, %s14
      %p160 = scmp.lt.s32.totalorder %s159, 31
      %s161 = scalar_select %p160, %s159, 31
      %s162 = smul.addr %s161, 2
      %s163 = smul.addr %s162, 8
      %s164 = scalar_lea.vmem %s3, %s163
      %s165 = smul.u32 16, %s14
      %p166 = scmp.lt.s32.totalorder %s165, 31
      %s167 = scalar_select %p166, %s165, 31
      %s168 = smul.addr %s167, 2
      %s169 = smul.addr %s168, 8
      %s170 = scalar_lea.vmem %s0, %s169
      %s171 = smul.u32 16, %s14
      %s172 = smul.u32 16, %s14
      %p173 = scmp.lt.s32.totalorder %s172, 31
      %s174 = scalar_select %p173, %s172, 31
      %s175 = smul.addr %s174, 2
      %s176 = smul.addr %s175, 8
      %s177 = scalar_lea.vmem %s3, %s176
      %s178 = smul.u32 16, %s14
      %vm179 = vcmask 261120
      %180 = vst.msk [vmem:[#allocation2] sm:$0xff] %vm179, 0.0
      %181 = vst.msk [vmem:[#allocation2 + $0x20] sm:$0xff] %vm179, 0.0
      %182 = vst.msk [vmem:[#allocation2 + $0x40] sm:$0xff] %vm179, 0.0
      %183 = vst.msk [vmem:[#allocation2 + $0x60] sm:$0xff] %vm179, 0.0
      %184 = vst.msk [vmem:[#allocation2 + $0x80] sm:$0xff] %vm179, 0.0
      %185 = vst.msk [vmem:[#allocation2 + $0xa0] sm:$0xff] %vm179, 0.0
      %186 = vst.msk [vmem:[#allocation2 + $0xc0] sm:$0xff] %vm179, 0.0
      %187 = vst.msk [vmem:[#allocation2 + $0xe0] sm:$0xff] %vm179, 0.0
      %188 = vst.msk [vmem:[#allocation2 + $0x100] sm:$0xff] %vm179, 0.0
      %189 = vst.msk [vmem:[#allocation2 + $0x120] sm:$0xff] %vm179, 0.0
      %190 = vst.msk [vmem:[#allocation2 + $0x140] sm:$0xff] %vm179, 0.0
      %191 = vst.msk [vmem:[#allocation2 + $0x160] sm:$0xff] %vm179, 0.0
      %192 = vst.msk [vmem:[#allocation2 + $0x180] sm:$0xff] %vm179, 0.0
      %193 = vst.msk [vmem:[#allocation2 + $0x1a0] sm:$0xff] %vm179, 0.0
      %194 = vst.msk [vmem:[#allocation2 + $0x1c0] sm:$0xff] %vm179, 0.0
      %195 = vst.msk [vmem:[#allocation2 + $0x1e0] sm:$0xff] %vm179, 0.0
      %vm196 = vcmask 257024
      %197 = vst.msk [vmem:[#allocation2 + $0x18] sm:$0xf] %vm196, 0.0
      %198 = vst.msk [vmem:[#allocation2 + $0x38] sm:$0xf] %vm196, 0.0
      %199 = vst.msk [vmem:[#allocation2 + $0x58] sm:$0xf] %vm196, 0.0
      %200 = vst.msk [vmem:[#allocation2 + $0x78] sm:$0xf] %vm196, 0.0
      %201 = vst.msk [vmem:[#allocation2 + $0x98] sm:$0xf] %vm196, 0.0
      %202 = vst.msk [vmem:[#allocation2 + $0xb8] sm:$0xf] %vm196, 0.0
      %203 = vst.msk [vmem:[#allocation2 + $0xd8] sm:$0xf] %vm196, 0.0
      %204 = vst.msk [vmem:[#allocation2 + $0xf8] sm:$0xf] %vm196, 0.0
      %205 = vst.msk [vmem:[#allocation2 + $0x118] sm:$0xf] %vm196, 0.0
      %206 = vst.msk [vmem:[#allocation2 + $0x138] sm:$0xf] %vm196, 0.0
      %207 = vst.msk [vmem:[#allocation2 + $0x158] sm:$0xf] %vm196, 0.0
      %208 = vst.msk [vmem:[#allocation2 + $0x178] sm:$0xf] %vm196, 0.0
      %209 = vst.msk [vmem:[#allocation2 + $0x198] sm:$0xf] %vm196, 0.0
      %210 = vst.msk [vmem:[#allocation2 + $0x1b8] sm:$0xf] %vm196, 0.0
      %211 = vst.msk [vmem:[#allocation2 + $0x1d8] sm:$0xf] %vm196, 0.0
      %212 = vst.msk [vmem:[#allocation2 + $0x1f8] sm:$0xf] %vm196, 0.0
      %v213 = vld [vmem:[%s170] sm:$0xff]
      %v214 = vld [vmem:[%s170 + $0x8] sm:$0xff]
      %v215 = vld [vmem:[%s170 + $0x10] sm:$0xff]
      %v216 = vld [vmem:[%s170 + $0x18] sm:$0xff]
      %v217 = vld [vmem:[%s170 + $0x20] sm:$0xff]
      %v218 = vld [vmem:[%s170 + $0x28] sm:$0xff]
      %v219 = vld [vmem:[%s170 + $0x30] sm:$0xff]
      %v220 = vld [vmem:[%s170 + $0x38] sm:$0xff]
      %v221 = vld [vmem:[%s170 + $0x40] sm:$0xff]
      %v222 = vld [vmem:[%s170 + $0x48] sm:$0xff]
      %v223 = vld [vmem:[%s170 + $0x50] sm:$0xff]
      %v224 = vld [vmem:[%s170 + $0x58] sm:$0xff]
      %v225 = vld [vmem:[%s170 + $0x60] sm:$0xff]
      %v226 = vld [vmem:[%s170 + $0x68] sm:$0xff]
      %v227 = vld [vmem:[%s170 + $0x70] sm:$0xff]
      %v228 = vld [vmem:[%s170 + $0x78] sm:$0xff]
      %v229 = vld [vmem:[%s170 + $0x80] sm:$0xff]
      %v230 = vld [vmem:[%s170 + $0x88] sm:$0xff]
      %v231 = vld [vmem:[%s170 + $0x90] sm:$0xff]
      %v232 = vld [vmem:[%s170 + $0x98] sm:$0xff]
      %v233 = vld [vmem:[%s170 + $0xa0] sm:$0xff]
      %v234 = vld [vmem:[%s170 + $0xa8] sm:$0xff]
      %v235 = vld [vmem:[%s170 + $0xb0] sm:$0xff]
      %v236 = vld [vmem:[%s170 + $0xb8] sm:$0xff]
      %v237 = vld [vmem:[%s170 + $0xc0] sm:$0xff]
      %v238 = vld [vmem:[%s170 + $0xc8] sm:$0xff]
      %v239 = vld [vmem:[%s170 + $0xd0] sm:$0xff]
      %v240 = vld [vmem:[%s170 + $0xd8] sm:$0xff]
      %v241 = vld [vmem:[%s170 + $0xe0] sm:$0xff]
      %v242 = vld [vmem:[%s170 + $0xe8] sm:$0xff]
      %v243 = vld [vmem:[%s170 + $0xf0] sm:$0xff]
      %v244 = vld [vmem:[%s170 + $0xf8] sm:$0xff]
      %245 = vst.msk [vmem:[#allocation2 + $0x8] sm:$0xff] %vm179, %v213
      %246 = vst.msk [vmem:[#allocation2 + $0x10] sm:$0xff] %vm179, %v214
      %247 = vst.msk [vmem:[#allocation2 + $0x28] sm:$0xff] %vm179, %v215
      %248 = vst.msk [vmem:[#allocation2 + $0x30] sm:$0xff] %vm179, %v216
      %249 = vst.msk [vmem:[#allocation2 + $0x48] sm:$0xff] %vm179, %v217
      %250 = vst.msk [vmem:[#allocation2 + $0x50] sm:$0xff] %vm179, %v218
      %251 = vst.msk [vmem:[#allocation2 + $0x68] sm:$0xff] %vm179, %v219
      %252 = vst.msk [vmem:[#allocation2 + $0x70] sm:$0xff] %vm179, %v220
      %253 = vst.msk [vmem:[#allocation2 + $0x88] sm:$0xff] %vm179, %v221
      %254 = vst.msk [vmem:[#allocation2 + $0x90] sm:$0xff] %vm179, %v222
      %255 = vst.msk [vmem:[#allocation2 + $0xa8] sm:$0xff] %vm179, %v223
      %256 = vst.msk [vmem:[#allocation2 + $0xb0] sm:$0xff] %vm179, %v224
      %257 = vst.msk [vmem:[#allocation2 + $0xc8] sm:$0xff] %vm179, %v225
      %258 = vst.msk [vmem:[#allocation2 + $0xd0] sm:$0xff] %vm179, %v226
      %259 = vst.msk [vmem:[#allocation2 + $0xe8] sm:$0xff] %vm179, %v227
      %260 = vst.msk [vmem:[#allocation2 + $0xf0] sm:$0xff] %vm179, %v228
      %261 = vst.msk [vmem:[#allocation2 + $0x108] sm:$0xff] %vm179, %v229
      %262 = vst.msk [vmem:[#allocation2 + $0x110] sm:$0xff] %vm179, %v230
      %263 = vst.msk [vmem:[#allocation2 + $0x128] sm:$0xff] %vm179, %v231
      %264 = vst.msk [vmem:[#allocation2 + $0x130] sm:$0xff] %vm179, %v232
      %265 = vst.msk [vmem:[#allocation2 + $0x148] sm:$0xff] %vm179, %v233
      %266 = vst.msk [vmem:[#allocation2 + $0x150] sm:$0xff] %vm179, %v234
      %267 = vst.msk [vmem:[#allocation2 + $0x168] sm:$0xff] %vm179, %v235
      %268 = vst.msk [vmem:[#allocation2 + $0x170] sm:$0xff] %vm179, %v236
      %269 = vst.msk [vmem:[#allocation2 + $0x188] sm:$0xff] %vm179, %v237
      %270 = vst.msk [vmem:[#allocation2 + $0x190] sm:$0xff] %vm179, %v238
      %271 = vst.msk [vmem:[#allocation2 + $0x1a8] sm:$0xff] %vm179, %v239
      %272 = vst.msk [vmem:[#allocation2 + $0x1b0] sm:$0xff] %vm179, %v240
      %273 = vst.msk [vmem:[#allocation2 + $0x1c8] sm:$0xff] %vm179, %v241
      %274 = vst.msk [vmem:[#allocation2 + $0x1d0] sm:$0xff] %vm179, %v242
      %275 = vst.msk [vmem:[#allocation2 + $0x1e8] sm:$0xff] %vm179, %v243
      %276 = vst.msk [vmem:[#allocation2 + $0x1f0] sm:$0xff] %vm179, %v244
      %v277 = vld [vmem:[#allocation2 + $0x8] sm:$0xff]
      %v278 = vld [vmem:[#allocation2 + $0x10] sm:$0xff]
      %v279 = vld [vmem:[#allocation2 + $0x28] sm:$0xff]
      %v280 = vld [vmem:[#allocation2 + $0x30] sm:$0xff]
      %v281 = vld [vmem:[#allocation2 + $0x48] sm:$0xff]
      %v282 = vld [vmem:[#allocation2 + $0x50] sm:$0xff]
      %v283 = vld [vmem:[#allocation2 + $0x68] sm:$0xff]
      %v284 = vld [vmem:[#allocation2 + $0x70] sm:$0xff]
      %v285 = vld [vmem:[#allocation2 + $0x88] sm:$0xff]
      %v286 = vld [vmem:[#allocation2 + $0x90] sm:$0xff]
      %v287 = vld [vmem:[#allocation2 + $0xa8] sm:$0xff]
      %v288 = vld [vmem:[#allocation2 + $0xb0] sm:$0xff]
      %v289 = vld [vmem:[#allocation2 + $0xc8] sm:$0xff]
      %v290 = vld [vmem:[#allocation2 + $0xd0] sm:$0xff]
      %v291 = vld [vmem:[#allocation2 + $0xe8] sm:$0xff]
      %v292 = vld [vmem:[#allocation2 + $0xf0] sm:$0xff]
      %v293 = vld [vmem:[#allocation2 + $0x108] sm:$0xff]
      %v294 = vld [vmem:[#allocation2 + $0x110] sm:$0xff]
      %v295 = vld [vmem:[#allocation2 + $0x128] sm:$0xff]
      %v296 = vld [vmem:[#allocation2 + $0x130] sm:$0xff]
      %v297 = vld [vmem:[#allocation2 + $0x148] sm:$0xff]
      %v298 = vld [vmem:[#allocation2 + $0x150] sm:$0xff]
      %v299 = vld [vmem:[#allocation2 + $0x168] sm:$0xff]
      %v300 = vld [vmem:[#allocation2 + $0x170] sm:$0xff]
      %v301 = vld [vmem:[#allocation2 + $0x188] sm:$0xff]
      %v302 = vld [vmem:[#allocation2 + $0x190] sm:$0xff]
      %v303 = vld [vmem:[#allocation2 + $0x1a8] sm:$0xff]
      %v304 = vld [vmem:[#allocation2 + $0x1b0] sm:$0xff]
      %v305 = vld [vmem:[#allocation2 + $0x1c8] sm:$0xff]
      %v306 = vld [vmem:[#allocation2 + $0x1d0] sm:$0xff]
      %v307 = vld [vmem:[#allocation2 + $0x1e8] sm:$0xff]
      %v308 = vld [vmem:[#allocation2 + $0x1f0] sm:$0xff]
      %v309 = vld [vmem:[#allocation2 + $0x7] sm:$0xff]
      %v310 = vld [vmem:[#allocation2 + $0xf] sm:$0xff]
      %v311 = vld [vmem:[#allocation2 + $0x27] sm:$0xff]
      %v312 = vld [vmem:[#allocation2 + $0x2f] sm:$0xff]
      %v313 = vld [vmem:[#allocation2 + $0x47] sm:$0xff]
      %v314 = vld [vmem:[#allocation2 + $0x4f] sm:$0xff]
      %v315 = vld [vmem:[#allocation2 + $0x67] sm:$0xff]
      %v316 = vld [vmem:[#allocation2 + $0x6f] sm:$0xff]
      %v317 = vld [vmem:[#allocation2 + $0x87] sm:$0xff]
      %v318 = vld [vmem:[#allocation2 + $0x8f] sm:$0xff]
      %v319 = vld [vmem:[#allocation2 + $0xa7] sm:$0xff]
      %v320 = vld [vmem:[#allocation2 + $0xaf] sm:$0xff]
      %v321 = vld [vmem:[#allocation2 + $0xc7] sm:$0xff]
      %v322 = vld [vmem:[#allocation2 + $0xcf] sm:$0xff]
      %v323 = vld [vmem:[#allocation2 + $0xe7] sm:$0xff]
      %v324 = vld [vmem:[#allocation2 + $0xef] sm:$0xff]
      %v325 = vld [vmem:[#allocation2 + $0x107] sm:$0xff]
      %v326 = vld [vmem:[#allocation2 + $0x10f] sm:$0xff]
      %v327 = vld [vmem:[#allocation2 + $0x127] sm:$0xff]
      %v328 = vld [vmem:[#allocation2 + $0x12f] sm:$0xff]
      %v329 = vld [vmem:[#allocation2 + $0x147] sm:$0xff]
      %v330 = vld [vmem:[#allocation2 + $0x14f] sm:$0xff]
      %v331 = vld [vmem:[#allocation2 + $0x167] sm:$0xff]
      %v332 = vld [vmem:[#allocation2 + $0x16f] sm:$0xff]
      %v333 = vld [vmem:[#allocation2 + $0x187] sm:$0xff]
      %v334 = vld [vmem:[#allocation2 + $0x18f] sm:$0xff]
      %v335 = vld [vmem:[#allocation2 + $0x1a7] sm:$0xff]
      %v336 = vld [vmem:[#allocation2 + $0x1af] sm:$0xff]
      %v337 = vld [vmem:[#allocation2 + $0x1c7] sm:$0xff]
      %v338 = vld [vmem:[#allocation2 + $0x1cf] sm:$0xff]
      %v339 = vld [vmem:[#allocation2 + $0x1e7] sm:$0xff]
      %v340 = vld [vmem:[#allocation2 + $0x1ef] sm:$0xff]
      %v341 = vld [vmem:[#allocation2 + $0x9] sm:$0xff]
      %v342 = vld [vmem:[#allocation2 + $0x11] sm:$0xff]
      %v343 = vld [vmem:[#allocation2 + $0x29] sm:$0xff]
      %v344 = vld [vmem:[#allocation2 + $0x31] sm:$0xff]
      %v345 = vld [vmem:[#allocation2 + $0x49] sm:$0xff]
      %v346 = vld [vmem:[#allocation2 + $0x51] sm:$0xff]
      %v347 = vld [vmem:[#allocation2 + $0x69] sm:$0xff]
      %v348 = vld [vmem:[#allocation2 + $0x71] sm:$0xff]
      %v349 = vld [vmem:[#allocation2 + $0x89] sm:$0xff]
      %v350 = vld [vmem:[#allocation2 + $0x91] sm:$0xff]
      %v351 = vld [vmem:[#allocation2 + $0xa9] sm:$0xff]
      %v352 = vld [vmem:[#allocation2 + $0xb1] sm:$0xff]
      %v353 = vld [vmem:[#allocation2 + $0xc9] sm:$0xff]
      %v354 = vld [vmem:[#allocation2 + $0xd1] sm:$0xff]
      %v355 = vld [vmem:[#allocation2 + $0xe9] sm:$0xff]
      %v356 = vld [vmem:[#allocation2 + $0xf1] sm:$0xff]
      %v357 = vld [vmem:[#allocation2 + $0x109] sm:$0xff]
      %v358 = vld [vmem:[#allocation2 + $0x111] sm:$0xff]
      %v359 = vld [vmem:[#allocation2 + $0x129] sm:$0xff]
      %v360 = vld [vmem:[#allocation2 + $0x131] sm:$0xff]
      %v361 = vld [vmem:[#allocation2 + $0x149] sm:$0xff]
      %v362 = vld [vmem:[#allocation2 + $0x151] sm:$0xff]
      %v363 = vld [vmem:[#allocation2 + $0x169] sm:$0xff]
      %v364 = vld [vmem:[#allocation2 + $0x171] sm:$0xff]
      %v365 = vld [vmem:[#allocation2 + $0x189] sm:$0xff]
      %v366 = vld [vmem:[#allocation2 + $0x191] sm:$0xff]
      %v367 = vld [vmem:[#allocation2 + $0x1a9] sm:$0xff]
      %v368 = vld [vmem:[#allocation2 + $0x1b1] sm:$0xff]
      %v369 = vld [vmem:[#allocation2 + $0x1c9] sm:$0xff]
      %v370 = vld [vmem:[#allocation2 + $0x1d1] sm:$0xff]
      %v371 = vld [vmem:[#allocation2 + $0x1e9] sm:$0xff]
      %v372 = vld [vmem:[#allocation2 + $0x1f1] sm:$0xff]
      %405 = vrot.lane.b32.xlu0 %v277, 32
      %v406 = vpop.permute.xlu0 %405
      %407 = vrot.lane.b32.xlu0 %v278, 32
      %v408 = vpop.permute.xlu0 %407
      %409 = vrot.lane.b32.xlu0 %v279, 32
      %v410 = vpop.permute.xlu0 %409
      %411 = vrot.lane.b32.xlu0 %v280, 32
      %v412 = vpop.permute.xlu0 %411
      %413 = vrot.lane.b32.xlu0 %v281, 32
      %v414 = vpop.permute.xlu0 %413
      %415 = vrot.lane.b32.xlu0 %v282, 32
      %v416 = vpop.permute.xlu0 %415
      %417 = vrot.lane.b32.xlu0 %v283, 32
      %v418 = vpop.permute.xlu0 %417
      %419 = vrot.lane.b32.xlu0 %v284, 32
      %v420 = vpop.permute.xlu0 %419
      %421 = vrot.lane.b32.xlu0 %v285, 32
      %v422 = vpop.permute.xlu0 %421
      %423 = vrot.lane.b32.xlu0 %v286, 32
      %v424 = vpop.permute.xlu0 %423
      %425 = vrot.lane.b32.xlu0 %v287, 32
      %v426 = vpop.permute.xlu0 %425
      %427 = vrot.lane.b32.xlu0 %v288, 32
      %v428 = vpop.permute.xlu0 %427
      %429 = vrot.lane.b32.xlu0 %v289, 32
      %v430 = vpop.permute.xlu0 %429
      %431 = vrot.lane.b32.xlu0 %v290, 32
      %v432 = vpop.permute.xlu0 %431
      %433 = vrot.lane.b32.xlu0 %v291, 32
      %v434 = vpop.permute.xlu0 %433
      %435 = vrot.lane.b32.xlu0 %v292, 32
      %v436 = vpop.permute.xlu0 %435
      %437 = vrot.lane.b32.xlu0 %v293, 32
      %v438 = vpop.permute.xlu0 %437
      %439 = vrot.lane.b32.xlu0 %v294, 32
      %v440 = vpop.permute.xlu0 %439
      %441 = vrot.lane.b32.xlu0 %v295, 32
      %v442 = vpop.permute.xlu0 %441
      %443 = vrot.lane.b32.xlu0 %v296, 32
      %v444 = vpop.permute.xlu0 %443
      %445 = vrot.lane.b32.xlu0 %v297, 32
      %v446 = vpop.permute.xlu0 %445
      %447 = vrot.lane.b32.xlu0 %v298, 32
      %v448 = vpop.permute.xlu0 %447
      %449 = vrot.lane.b32.xlu0 %v299, 32
      %v450 = vpop.permute.xlu0 %449
      %451 = vrot.lane.b32.xlu0 %v300, 32
      %v452 = vpop.permute.xlu0 %451
      %453 = vrot.lane.b32.xlu0 %v301, 32
      %v454 = vpop.permute.xlu0 %453
      %455 = vrot.lane.b32.xlu0 %v302, 32
      %v456 = vpop.permute.xlu0 %455
      %457 = vrot.lane.b32.xlu0 %v303, 32
      %v458 = vpop.permute.xlu0 %457
      %459 = vrot.lane.b32.xlu0 %v304, 32
      %v460 = vpop.permute.xlu0 %459
      %461 = vrot.lane.b32.xlu0 %v305, 32
      %v462 = vpop.permute.xlu0 %461
      %463 = vrot.lane.b32.xlu0 %v306, 32
      %v464 = vpop.permute.xlu0 %463
      %465 = vrot.lane.b32.xlu0 %v307, 32
      %v466 = vpop.permute.xlu0 %465
      %467 = vrot.lane.b32.xlu0 %v308, 32
      %v468 = vpop.permute.xlu0 %467
      %533 = vrot.lane.b32.xlu0 %v341, 64
      %v534 = vpop.permute.xlu0 %533
      %535 = vrot.lane.b32.xlu0 %v342, 64
      %v536 = vpop.permute.xlu0 %535
      %537 = vrot.lane.b32.xlu0 %v343, 64
      %v538 = vpop.permute.xlu0 %537
      %539 = vrot.lane.b32.xlu0 %v344, 64
      %v540 = vpop.permute.xlu0 %539
      %541 = vrot.lane.b32.xlu0 %v345, 64
      %v542 = vpop.permute.xlu0 %541
      %543 = vrot.lane.b32.xlu0 %v346, 64
      %v544 = vpop.permute.xlu0 %543
      %545 = vrot.lane.b32.xlu0 %v347, 64
      %v546 = vpop.permute.xlu0 %545
      %547 = vrot.lane.b32.xlu0 %v348, 64
      %v548 = vpop.permute.xlu0 %547
      %549 = vrot.lane.b32.xlu0 %v349, 64
      %v550 = vpop.permute.xlu0 %549
      %551 = vrot.lane.b32.xlu0 %v350, 64
      %v552 = vpop.permute.xlu0 %551
      %553 = vrot.lane.b32.xlu0 %v351, 64
      %v554 = vpop.permute.xlu0 %553
      %555 = vrot.lane.b32.xlu0 %v352, 64
      %v556 = vpop.permute.xlu0 %555
      %557 = vrot.lane.b32.xlu0 %v353, 64
      %v558 = vpop.permute.xlu0 %557
      %559 = vrot.lane.b32.xlu0 %v354, 64
      %v560 = vpop.permute.xlu0 %559
      %561 = vrot.lane.b32.xlu0 %v355, 64
      %v562 = vpop.permute.xlu0 %561
      %563 = vrot.lane.b32.xlu0 %v356, 64
      %v564 = vpop.permute.xlu0 %563
      %565 = vrot.lane.b32.xlu0 %v357, 64
      %v566 = vpop.permute.xlu0 %565
      %567 = vrot.lane.b32.xlu0 %v358, 64
      %v568 = vpop.permute.xlu0 %567
      %569 = vrot.lane.b32.xlu0 %v359, 64
      %v570 = vpop.permute.xlu0 %569
      %571 = vrot.lane.b32.xlu0 %v360, 64
      %v572 = vpop.permute.xlu0 %571
      %573 = vrot.lane.b32.xlu0 %v361, 64
      %v574 = vpop.permute.xlu0 %573
      %575 = vrot.lane.b32.xlu0 %v362, 64
      %v576 = vpop.permute.xlu0 %575
      %577 = vrot.lane.b32.xlu0 %v363, 64
      %v578 = vpop.permute.xlu0 %577
      %579 = vrot.lane.b32.xlu0 %v364, 64
      %v580 = vpop.permute.xlu0 %579
      %581 = vrot.lane.b32.xlu0 %v365, 64
      %v582 = vpop.permute.xlu0 %581
      %583 = vrot.lane.b32.xlu0 %v366, 64
      %v584 = vpop.permute.xlu0 %583
      %585 = vrot.lane.b32.xlu0 %v367, 64
      %v586 = vpop.permute.xlu0 %585
      %587 = vrot.lane.b32.xlu0 %v368, 64
      %v588 = vpop.permute.xlu0 %587
      %589 = vrot.lane.b32.xlu0 %v369, 64
      %v590 = vpop.permute.xlu0 %589
      %591 = vrot.lane.b32.xlu0 %v370, 64
      %v592 = vpop.permute.xlu0 %591
      %593 = vrot.lane.b32.xlu0 %v371, 64
      %v594 = vpop.permute.xlu0 %593
      %595 = vrot.lane.b32.xlu0 %v372, 64
      %v596 = vpop.permute.xlu0 %595
      %v629 = vsel %vm179, %v309, %v406
      %v630 = vsel %vm179, %v310, %v408
      %v631 = vsel %vm179, %v311, %v410
      %v632 = vsel %vm179, %v312, %v412
      %v633 = vsel %vm179, %v313, %v414
      %v634 = vsel %vm179, %v314, %v416
      %v635 = vsel %vm179, %v315, %v418
      %v636 = vsel %vm179, %v316, %v420
      %v637 = vsel %vm179, %v317, %v422
      %v638 = vsel %vm179, %v318, %v424
      %v639 = vsel %vm179, %v319, %v426
      %v640 = vsel %vm179, %v320, %v428
      %v641 = vsel %vm179, %v321, %v430
      %v642 = vsel %vm179, %v322, %v432
      %v643 = vsel %vm179, %v323, %v434
      %v644 = vsel %vm179, %v324, %v436
      %v645 = vsel %vm179, %v325, %v438
      %v646 = vsel %vm179, %v326, %v440
      %v647 = vsel %vm179, %v327, %v442
      %v648 = vsel %vm179, %v328, %v444
      %v649 = vsel %vm179, %v329, %v446
      %v650 = vsel %vm179, %v330, %v448
      %v651 = vsel %vm179, %v331, %v450
      %v652 = vsel %vm179, %v332, %v452
      %v653 = vsel %vm179, %v333, %v454
      %v654 = vsel %vm179, %v334, %v456
      %v655 = vsel %vm179, %v335, %v458
      %v656 = vsel %vm179, %v336, %v460
      %v657 = vsel %vm179, %v337, %v462
      %v658 = vsel %vm179, %v338, %v464
      %v659 = vsel %vm179, %v339, %v466
      %v660 = vsel %vm179, %v340, %v468
      %vm661 = vcmask 523264
      %v662 = vsel %vm661, %v629, %v534
      %v663 = vsel %vm661, %v630, %v536
      %v664 = vsel %vm661, %v631, %v538
      %v665 = vsel %vm661, %v632, %v540
      %v666 = vsel %vm661, %v633, %v542
      %v667 = vsel %vm661, %v634, %v544
      %v668 = vsel %vm661, %v635, %v546
      %v669 = vsel %vm661, %v636, %v548
      %v670 = vsel %vm661, %v637, %v550
      %v671 = vsel %vm661, %v638, %v552
      %v672 = vsel %vm661, %v639, %v554
      %v673 = vsel %vm661, %v640, %v556
      %v674 = vsel %vm661, %v641, %v558
      %v675 = vsel %vm661, %v642, %v560
      %v676 = vsel %vm661, %v643, %v562
      %v677 = vsel %vm661, %v644, %v564
      %v678 = vsel %vm661, %v645, %v566
      %v679 = vsel %vm661, %v646, %v568
      %v680 = vsel %vm661, %v647, %v570
      %v681 = vsel %vm661, %v648, %v572
      %v682 = vsel %vm661, %v649, %v574
      %v683 = vsel %vm661, %v650, %v576
      %v684 = vsel %vm661, %v651, %v578
      %v685 = vsel %vm661, %v652, %v580
      %v686 = vsel %vm661, %v653, %v582
      %v687 = vsel %vm661, %v654, %v584
      %v688 = vsel %vm661, %v655, %v586
      %v689 = vsel %vm661, %v656, %v588
      %v690 = vsel %vm661, %v657, %v590
      %v691 = vsel %vm661, %v658, %v592
      %v692 = vsel %vm661, %v659, %v594
      %v693 = vsel %vm661, %v660, %v596
      %v694 = vld [vmem:[%s1] sm:$0xff]
      %v695 = vld [vmem:[%s1 + $0x8] sm:$0xff]
      %v696 = vld [vmem:[%s1 + $0x10] sm:$0xff]
      %v697 = vld [vmem:[%s1 + $0x18] sm:$0xff]
      %v698 = vld [vmem:[%s1 + $0x20] sm:$0xff]
      %v699 = vld [vmem:[%s1 + $0x28] sm:$0xff]
      %v700 = vld [vmem:[%s1 + $0x30] sm:$0xff]
      %v701 = vld [vmem:[%s1 + $0x38] sm:$0xff]
      %v702 = vld [vmem:[%s1 + $0x40] sm:$0xff]
      %v703 = vld [vmem:[%s1 + $0x48] sm:$0xff]
      %v704 = vld [vmem:[%s1 + $0x50] sm:$0xff]
      %v705 = vld [vmem:[%s1 + $0x58] sm:$0xff]
      %v706 = vld [vmem:[%s2] sm:$0x1]
      %v708 = vlaneseq
      %v709 = vshrl.u32 %v708, 7
      %v710 = vsub.s32 0, %v709
      %v711 = vrot.slane %v706, %v710
      %vm713 = vcmask 785408
      %v715 = vsel %vm713, %v662, 0
      %v718 = vsel %vm713, %v663, 0
      %v721 = vsel %vm713, %v664, 0
      %v724 = vsel %vm713, %v665, 0
      %v727 = vsel %vm713, %v666, 0
      %v730 = vsel %vm713, %v667, 0
      %v733 = vsel %vm713, %v668, 0
      %v736 = vsel %vm713, %v669, 0
      %v739 = vsel %vm713, %v670, 0
      %v742 = vsel %vm713, %v671, 0
      %v745 = vsel %vm713, %v672, 0
      %v748 = vsel %vm713, %v673, 0
      %v751 = vsel %vm713, %v674, 0
      %v754 = vsel %vm713, %v675, 0
      %v757 = vsel %vm713, %v676, 0
      %v760 = vsel %vm713, %v677, 0
      %v763 = vsel %vm713, %v678, 0
      %v766 = vsel %vm713, %v679, 0
      %v769 = vsel %vm713, %v680, 0
      %v772 = vsel %vm713, %v681, 0
      %v775 = vsel %vm713, %v682, 0
      %v778 = vsel %vm713, %v683, 0
      %v781 = vsel %vm713, %v684, 0
      %v784 = vsel %vm713, %v685, 0
      %v787 = vsel %vm713, %v686, 0
      %v790 = vsel %vm713, %v687, 0
      %v793 = vsel %vm713, %v688, 0
      %v796 = vsel %vm713, %v689, 0
      %v799 = vsel %vm713, %v690, 0
      %v802 = vsel %vm713, %v691, 0
      %v805 = vsel %vm713, %v692, 0
      %v808 = vsel %vm713, %v693, 0
      %810 = vmatprep.subr.mxu0 0.0
      %811 = vmatpush1.msra.mxu0 %v694
      %812 = vmatprep.subr.mxu0 0.0
      %813 = vmatpush1.msra.mxu0 %v695
      %814 = vmatprep.subr.mxu0 0.0
      %815 = vmatpush1.msra.mxu0 %v696
      %816 = vmatprep.subr.mxu0 0.0
      %817 = vmatpush1.msra.mxu0 %v697
      %818 = vmatprep.subr.mxu0 0.0
      %819 = vmatpush1.msra.mxu0 %v698
      %820 = vmatprep.subr.mxu0 0.0
      %821 = vmatpush1.msra.mxu0 %v699
      %822 = vmatprep.subr.mxu0 0.0
      %823 = vmatpush1.msra.mxu0 %v700
      %824 = vmatprep.subr.mxu0 0.0
      %825 = vmatpush1.msra.mxu0 %v701
      %826 = vmatprep.subr.mxu0 0.0
      %827 = vmatpush1.msra.mxu0 %v702
      %828 = vmatprep.subr.mxu0 0.0
      %829 = vmatpush1.msra.mxu0 %v703
      %830 = vmatprep.subr.mxu0 0.0
      %831 = vmatpush1.msra.mxu0 %v704
      %832 = vmatprep.subr.mxu0 0.0
      %833 = vmatpush1.msra.mxu0 %v705
      %834 = vmatprep.subr.mxu0 0.0
      %835 = vmatpush1.msra.mxu0 0.0
      %836 = vmatprep.subr.mxu0 0.0
      %837 = vmatpush1.msra.mxu0 0.0
      %838 = vmatprep.subr.mxu0 0.0
      %839 = vmatpush1.msra.mxu0 0.0
      %840 = vmatprep.subr.mxu0 0.0
      %841 = vmatpush1.msra.mxu0 0.0
      %842 = vmatprep.subr.mxu0 0.0
      %843 = vmatpush1.msra.mxu0 0.0
      %844 = vmatprep.subr.mxu0 0.0
      %845 = vmatpush1.msra.mxu0 0.0
      %846 = vmatprep.subr.mxu0 0.0
      %847 = vmatpush1.msra.mxu0 0.0
      %848 = vmatprep.subr.mxu0 0.0
      %849 = vmatpush1.msra.mxu0 0.0
      %850 = vmatprep.subr.mxu0 0.0
      %851 = vmatpush1.msra.mxu0 0.0
      %852 = vmatprep.subr.mxu0 0.0
      %853 = vmatpush1.msra.mxu0 0.0
      %854 = vmatprep.subr.mxu0 0.0
      %855 = vmatpush1.msra.mxu0 0.0
      %856 = vmatprep.subr.mxu0 0.0
      %857 = vmatpush1.msra.mxu0 0.0
      %858 = vmatprep.subr.mxu0 0.0
      %859 = vmatpush1.msra.mxu0 0.0
      %860 = vmatprep.subr.mxu0 0.0
      %861 = vmatpush1.msra.mxu0 0.0
      %862 = vmatprep.subr.mxu0 0.0
      %863 = vmatpush1.msra.mxu0 0.0
      %864 = vmatprep.subr.mxu0 0.0
      %865 = vmatpush1.msra.mxu0 0.0
      %866 = vmatprep.subr.mxu0 0.0
      %867 = vmatpush1.msra.mxu0 0.0
      %868 = vmatprep.subr.mxu0 0.0
      %869 = vmatpush1.msra.mxu0 0.0
      %870 = vmatprep.subr.mxu0 0.0
      %871 = vmatpush1.msra.mxu0 0.0
      %872 = vmatprep.subr.mxu0 0.0
      %873 = vmatpush1.msra.mxu0 0.0
      %874 = vmatprep.mubr.f32.mxu0 0.0
      %875 = vmatmul.mubr.f32.gmra.mrb[0].mxu0 %v715
      %v876 = vpop.f32.mrb[0].mxu0
      %v877 = vadd.f32 %v711, %v876
      %v878 = vpop.f32.mrb[0].mxu0
      %879 = vmatprep.mubr.f32.mxu0 0.0
      %880 = vmatmul.mubr.f32.gmra.mrb[0].mxu0 %v718
      %v881 = vpop.f32.mrb[0].mxu0
      %v882 = vadd.f32 %v711, %v881
      %v883 = vpop.f32.mrb[0].mxu0
      %884 = vmatprep.mubr.f32.mxu0 0.0
      %885 = vmatmul.mubr.f32.gmra.mrb[0].mxu0 %v721
      %v886 = vpop.f32.mrb[0].mxu0
      %v887 = vadd.f32 %v711, %v886
      %v888 = vpop.f32.mrb[0].mxu0
      %889 = vmatprep.mubr.f32.mxu0 0.0
      %890 = vmatmul.mubr.f32.gmra.mrb[0].mxu0 %v724
      %v891 = vpop.f32.mrb[0].mxu0
      %v892 = vadd.f32 %v711, %v891
      %v893 = vpop.f32.mrb[0].mxu0
      %894 = vmatprep.mubr.f32.mxu0 0.0
      %895 = vmatmul.mubr.f32.gmra.mrb[0].mxu0 %v727
      %v896 = vpop.f32.mrb[0].mxu0
      %v897 = vadd.f32 %v711, %v896
      %v898 = vpop.f32.mrb[0].mxu0
      %899 = vmatprep.mubr.f32.mxu0 0.0
      %900 = vmatmul.mubr.f32.gmra.mrb[0].mxu0 %v730
      %v901 = vpop.f32.mrb[0].mxu0
      %v902 = vadd.f32 %v711, %v901
      %v903 = vpop.f32.mrb[0].mxu0
      %904 = vmatprep.mubr.f32.mxu0 0.0
      %905 = vmatmul.mubr.f32.gmra.mrb[0].mxu0 %v733
      %v906 = vpop.f32.mrb[0].mxu0
      %v907 = vadd.f32 %v711, %v906
      %v908 = vpop.f32.mrb[0].mxu0
      %909 = vmatprep.mubr.f32.mxu0 0.0
      %910 = vmatmul.mubr.f32.gmra.mrb[0].mxu0 %v736
      %v911 = vpop.f32.mrb[0].mxu0
      %v912 = vadd.f32 %v711, %v911
      %v913 = vpop.f32.mrb[0].mxu0
      %914 = vmatprep.mubr.f32.mxu0 0.0
      %915 = vmatmul.mubr.f32.gmra.mrb[0].mxu0 %v739
      %v916 = vpop.f32.mrb[0].mxu0
      %v917 = vadd.f32 %v711, %v916
      %v918 = vpop.f32.mrb[0].mxu0
      %919 = vmatprep.mubr.f32.mxu0 0.0
      %920 = vmatmul.mubr.f32.gmra.mrb[0].mxu0 %v742
      %v921 = vpop.f32.mrb[0].mxu0
      %v922 = vadd.f32 %v711, %v921
      %v923 = vpop.f32.mrb[0].mxu0
      %924 = vmatprep.mubr.f32.mxu0 0.0
      %925 = vmatmul.mubr.f32.gmra.mrb[0].mxu0 %v745
      %v926 = vpop.f32.mrb[0].mxu0
      %v927 = vadd.f32 %v711, %v926
      %v928 = vpop.f32.mrb[0].mxu0
      %929 = vmatprep.mubr.f32.mxu0 0.0
      %930 = vmatmul.mubr.f32.gmra.mrb[0].mxu0 %v748
      %v931 = vpop.f32.mrb[0].mxu0
      %v932 = vadd.f32 %v711, %v931
      %v933 = vpop.f32.mrb[0].mxu0
      %934 = vmatprep.mubr.f32.mxu0 0.0
      %935 = vmatmul.mubr.f32.gmra.mrb[0].mxu0 %v751
      %v936 = vpop.f32.mrb[0].mxu0
      %v937 = vadd.f32 %v711, %v936
      %v938 = vpop.f32.mrb[0].mxu0
      %939 = vmatprep.mubr.f32.mxu0 0.0
      %940 = vmatmul.mubr.f32.gmra.mrb[0].mxu0 %v754
      %v941 = vpop.f32.mrb[0].mxu0
      %v942 = vadd.f32 %v711, %v941
      %v943 = vpop.f32.mrb[0].mxu0
      %944 = vmatprep.mubr.f32.mxu0 0.0
      %945 = vmatmul.mubr.f32.gmra.mrb[0].mxu0 %v757
      %v946 = vpop.f32.mrb[0].mxu0
      %v947 = vadd.f32 %v711, %v946
      %v948 = vpop.f32.mrb[0].mxu0
      %949 = vmatprep.mubr.f32.mxu0 0.0
      %950 = vmatmul.mubr.f32.gmra.mrb[0].mxu0 %v760
      %v951 = vpop.f32.mrb[0].mxu0
      %v952 = vadd.f32 %v711, %v951
      %v953 = vpop.f32.mrb[0].mxu0
      %954 = vmatprep.mubr.f32.mxu0 0.0
      %955 = vmatmul.mubr.f32.gmra.mrb[0].mxu0 %v763
      %v956 = vpop.f32.mrb[0].mxu0
      %v957 = vadd.f32 %v711, %v956
      %v958 = vpop.f32.mrb[0].mxu0
      %959 = vmatprep.mubr.f32.mxu0 0.0
      %960 = vmatmul.mubr.f32.gmra.mrb[0].mxu0 %v766
      %v961 = vpop.f32.mrb[0].mxu0
      %v962 = vadd.f32 %v711, %v961
      %v963 = vpop.f32.mrb[0].mxu0
      %964 = vmatprep.mubr.f32.mxu0 0.0
      %965 = vmatmul.mubr.f32.gmra.mrb[0].mxu0 %v769
      %v966 = vpop.f32.mrb[0].mxu0
      %v967 = vadd.f32 %v711, %v966
      %v968 = vpop.f32.mrb[0].mxu0
      %969 = vmatprep.mubr.f32.mxu0 0.0
      %970 = vmatmul.mubr.f32.gmra.mrb[0].mxu0 %v772
      %v971 = vpop.f32.mrb[0].mxu0
      %v972 = vadd.f32 %v711, %v971
      %v973 = vpop.f32.mrb[0].mxu0
      %974 = vmatprep.mubr.f32.mxu0 0.0
      %975 = vmatmul.mubr.f32.gmra.mrb[0].mxu0 %v775
      %v976 = vpop.f32.mrb[0].mxu0
      %v977 = vadd.f32 %v711, %v976
      %v978 = vpop.f32.mrb[0].mxu0
      %979 = vmatprep.mubr.f32.mxu0 0.0
      %980 = vmatmul.mubr.f32.gmra.mrb[0].mxu0 %v778
      %v981 = vpop.f32.mrb[0].mxu0
      %v982 = vadd.f32 %v711, %v981
      %v983 = vpop.f32.mrb[0].mxu0
      %984 = vmatprep.mubr.f32.mxu0 0.0
      %985 = vmatmul.mubr.f32.gmra.mrb[0].mxu0 %v781
      %v986 = vpop.f32.mrb[0].mxu0
      %v987 = vadd.f32 %v711, %v986
      %v988 = vpop.f32.mrb[0].mxu0
      %989 = vmatprep.mubr.f32.mxu0 0.0
      %990 = vmatmul.mubr.f32.gmra.mrb[0].mxu0 %v784
      %v991 = vpop.f32.mrb[0].mxu0
      %v992 = vadd.f32 %v711, %v991
      %v993 = vpop.f32.mrb[0].mxu0
      %994 = vmatprep.mubr.f32.mxu0 0.0
      %995 = vmatmul.mubr.f32.gmra.mrb[0].mxu0 %v787
      %v996 = vpop.f32.mrb[0].mxu0
      %v997 = vadd.f32 %v711, %v996
      %v998 = vpop.f32.mrb[0].mxu0
      %999 = vmatprep.mubr.f32.mxu0 0.0
      %1000 = vmatmul.mubr.f32.gmra.mrb[0].mxu0 %v790
      %v1001 = vpop.f32.mrb[0].mxu0
      %v1002 = vadd.f32 %v711, %v1001
      %v1003 = vpop.f32.mrb[0].mxu0
      %1004 = vmatprep.mubr.f32.mxu0 0.0
      %1005 = vmatmul.mubr.f32.gmra.mrb[0].mxu0 %v793
      %v1006 = vpop.f32.mrb[0].mxu0
      %v1007 = vadd.f32 %v711, %v1006
      %v1008 = vpop.f32.mrb[0].mxu0
      %1009 = vmatprep.mubr.f32.mxu0 0.0
      %1010 = vmatmul.mubr.f32.gmra.mrb[0].mxu0 %v796
      %v1011 = vpop.f32.mrb[0].mxu0
      %v1012 = vadd.f32 %v711, %v1011
      %v1013 = vpop.f32.mrb[0].mxu0
      %1014 = vmatprep.mubr.f32.mxu0 0.0
      %1015 = vmatmul.mubr.f32.gmra.mrb[0].mxu0 %v799
      %v1016 = vpop.f32.mrb[0].mxu0
      %v1017 = vadd.f32 %v711, %v1016
      %v1018 = vpop.f32.mrb[0].mxu0
      %1019 = vmatprep.mubr.f32.mxu0 0.0
      %1020 = vmatmul.mubr.f32.gmra.mrb[0].mxu0 %v802
      %v1021 = vpop.f32.mrb[0].mxu0
      %v1022 = vadd.f32 %v711, %v1021
      %v1023 = vpop.f32.mrb[0].mxu0
      %1024 = vmatprep.mubr.f32.mxu0 0.0
      %1025 = vmatmul.mubr.f32.gmra.mrb[0].mxu0 %v805
      %v1026 = vpop.f32.mrb[0].mxu0
      %v1027 = vadd.f32 %v711, %v1026
      %v1028 = vpop.f32.mrb[0].mxu0
      %1029 = vmatprep.mubr.f32.mxu0 0.0
      %1030 = vmatmul.mubr.f32.gmra.mrb[0].mxu0 %v808
      %v1031 = vpop.f32.mrb[0].mxu0
      %v1032 = vadd.f32 %v711, %v1031
      %v1033 = vpop.f32.mrb[0].mxu0
      %1034 = vdwg.mxu0
      %v1035 = vxor.u32 %v877, 2147483648
      %v1036 = vxor.u32 %v882, 2147483648
      %v1037 = vxor.u32 %v887, 2147483648
      %v1038 = vxor.u32 %v892, 2147483648
      %v1039 = vxor.u32 %v897, 2147483648
      %v1040 = vxor.u32 %v902, 2147483648
      %v1041 = vxor.u32 %v907, 2147483648
      %v1042 = vxor.u32 %v912, 2147483648
      %v1043 = vxor.u32 %v917, 2147483648
      %v1044 = vxor.u32 %v922, 2147483648
      %v1045 = vxor.u32 %v927, 2147483648
      %v1046 = vxor.u32 %v932, 2147483648
      %v1047 = vxor.u32 %v937, 2147483648
      %v1048 = vxor.u32 %v942, 2147483648
      %v1049 = vxor.u32 %v947, 2147483648
      %v1050 = vxor.u32 %v952, 2147483648
      %v1051 = vxor.u32 %v957, 2147483648
      %v1052 = vxor.u32 %v962, 2147483648
      %v1053 = vxor.u32 %v967, 2147483648
      %v1054 = vxor.u32 %v972, 2147483648
      %v1055 = vxor.u32 %v977, 2147483648
      %v1056 = vxor.u32 %v982, 2147483648
      %v1057 = vxor.u32 %v987, 2147483648
      %v1058 = vxor.u32 %v992, 2147483648
      %v1059 = vxor.u32 %v997, 2147483648
      %v1060 = vxor.u32 %v1002, 2147483648
      %v1061 = vxor.u32 %v1007, 2147483648
      %v1062 = vxor.u32 %v1012, 2147483648
      %v1063 = vxor.u32 %v1017, 2147483648
      %v1064 = vxor.u32 %v1022, 2147483648
      %v1065 = vxor.u32 %v1027, 2147483648
      %v1066 = vxor.u32 %v1032, 2147483648
      %v1067 = vmul.f32 %v1035, 1.442695
      %v1068 = vpow.pop %v1067
      %v1069 = vmul.f32 %v1036, 1.442695
      %v1070 = vpow.pop %v1069
      %v1071 = vmul.f32 %v1037, 1.442695
      %v1072 = vpow.pop %v1071
      %v1073 = vmul.f32 %v1038, 1.442695
      %v1074 = vpow.pop %v1073
      %v1075 = vmul.f32 %v1039, 1.442695
      %v1076 = vpow.pop %v1075
      %v1077 = vmul.f32 %v1040, 1.442695
      %v1078 = vpow.pop %v1077
      %v1079 = vmul.f32 %v1041, 1.442695
      %v1080 = vpow.pop %v1079
      %v1081 = vmul.f32 %v1042, 1.442695
      %v1082 = vpow.pop %v1081
      %v1083 = vmul.f32 %v1043, 1.442695
      %v1084 = vpow.pop %v1083
      %v1085 = vmul.f32 %v1044, 1.442695
      %v1086 = vpow.pop %v1085
      %v1087 = vmul.f32 %v1045, 1.442695
      %v1088 = vpow.pop %v1087
      %v1089 = vmul.f32 %v1046, 1.442695
      %v1090 = vpow.pop %v1089
      %v1091 = vmul.f32 %v1047, 1.442695
      %v1092 = vpow.pop %v1091
      %v1093 = vmul.f32 %v1048, 1.442695
      %v1094 = vpow.pop %v1093
      %v1095 = vmul.f32 %v1049, 1.442695
      %v1096 = vpow.pop %v1095
      %v1097 = vmul.f32 %v1050, 1.442695
      %v1098 = vpow.pop %v1097
      %v1099 = vmul.f32 %v1051, 1.442695
      %v1100 = vpow.pop %v1099
      %v1101 = vmul.f32 %v1052, 1.442695
      %v1102 = vpow.pop %v1101
      %v1103 = vmul.f32 %v1053, 1.442695
      %v1104 = vpow.pop %v1103
      %v1105 = vmul.f32 %v1054, 1.442695
      %v1106 = vpow.pop %v1105
      %v1107 = vmul.f32 %v1055, 1.442695
      %v1108 = vpow.pop %v1107
      %v1109 = vmul.f32 %v1056, 1.442695
      %v1110 = vpow.pop %v1109
      %v1111 = vmul.f32 %v1057, 1.442695
      %v1112 = vpow.pop %v1111
      %v1113 = vmul.f32 %v1058, 1.442695
      %v1114 = vpow.pop %v1113
      %v1115 = vmul.f32 %v1059, 1.442695
      %v1116 = vpow.pop %v1115
      %v1117 = vmul.f32 %v1060, 1.442695
      %v1118 = vpow.pop %v1117
      %v1119 = vmul.f32 %v1061, 1.442695
      %v1120 = vpow.pop %v1119
      %v1121 = vmul.f32 %v1062, 1.442695
      %v1122 = vpow.pop %v1121
      %v1123 = vmul.f32 %v1063, 1.442695
      %v1124 = vpow.pop %v1123
      %v1125 = vmul.f32 %v1064, 1.442695
      %v1126 = vpow.pop %v1125
      %v1127 = vmul.f32 %v1065, 1.442695
      %v1128 = vpow.pop %v1127
      %v1129 = vmul.f32 %v1066, 1.442695
      %v1130 = vpow.pop %v1129
      %v1131 = vadd.f32 %v1068, 1.0
      %v1132 = vadd.f32 %v1070, 1.0
      %v1133 = vadd.f32 %v1072, 1.0
      %v1134 = vadd.f32 %v1074, 1.0
      %v1135 = vadd.f32 %v1076, 1.0
      %v1136 = vadd.f32 %v1078, 1.0
      %v1137 = vadd.f32 %v1080, 1.0
      %v1138 = vadd.f32 %v1082, 1.0
      %v1139 = vadd.f32 %v1084, 1.0
      %v1140 = vadd.f32 %v1086, 1.0
      %v1141 = vadd.f32 %v1088, 1.0
      %v1142 = vadd.f32 %v1090, 1.0
      %v1143 = vadd.f32 %v1092, 1.0
      %v1144 = vadd.f32 %v1094, 1.0
      %v1145 = vadd.f32 %v1096, 1.0
      %v1146 = vadd.f32 %v1098, 1.0
      %v1147 = vadd.f32 %v1100, 1.0
      %v1148 = vadd.f32 %v1102, 1.0
      %v1149 = vadd.f32 %v1104, 1.0
      %v1150 = vadd.f32 %v1106, 1.0
      %v1151 = vadd.f32 %v1108, 1.0
      %v1152 = vadd.f32 %v1110, 1.0
      %v1153 = vadd.f32 %v1112, 1.0
      %v1154 = vadd.f32 %v1114, 1.0
      %v1155 = vadd.f32 %v1116, 1.0
      %v1156 = vadd.f32 %v1118, 1.0
      %v1157 = vadd.f32 %v1120, 1.0
      %v1158 = vadd.f32 %v1122, 1.0
      %v1159 = vadd.f32 %v1124, 1.0
      %v1160 = vadd.f32 %v1126, 1.0
      %v1161 = vadd.f32 %v1128, 1.0
      %v1162 = vadd.f32 %v1130, 1.0
      %v1163 = vrcp.pop %v1131
      %v1164 = vmul.f32 1.0, %v1163
      %v1165 = vrcp.pop %v1132
      %v1166 = vmul.f32 1.0, %v1165
      %v1167 = vrcp.pop %v1133
      %v1168 = vmul.f32 1.0, %v1167
      %v1169 = vrcp.pop %v1134
      %v1170 = vmul.f32 1.0, %v1169
      %v1171 = vrcp.pop %v1135
      %v1172 = vmul.f32 1.0, %v1171
      %v1173 = vrcp.pop %v1136
      %v1174 = vmul.f32 1.0, %v1173
      %v1175 = vrcp.pop %v1137
      %v1176 = vmul.f32 1.0, %v1175
      %v1177 = vrcp.pop %v1138
      %v1178 = vmul.f32 1.0, %v1177
      %v1179 = vrcp.pop %v1139
      %v1180 = vmul.f32 1.0, %v1179
      %v1181 = vrcp.pop %v1140
      %v1182 = vmul.f32 1.0, %v1181
      %v1183 = vrcp.pop %v1141
      %v1184 = vmul.f32 1.0, %v1183
      %v1185 = vrcp.pop %v1142
      %v1186 = vmul.f32 1.0, %v1185
      %v1187 = vrcp.pop %v1143
      %v1188 = vmul.f32 1.0, %v1187
      %v1189 = vrcp.pop %v1144
      %v1190 = vmul.f32 1.0, %v1189
      %v1191 = vrcp.pop %v1145
      %v1192 = vmul.f32 1.0, %v1191
      %v1193 = vrcp.pop %v1146
      %v1194 = vmul.f32 1.0, %v1193
      %v1195 = vrcp.pop %v1147
      %v1196 = vmul.f32 1.0, %v1195
      %v1197 = vrcp.pop %v1148
      %v1198 = vmul.f32 1.0, %v1197
      %v1199 = vrcp.pop %v1149
      %v1200 = vmul.f32 1.0, %v1199
      %v1201 = vrcp.pop %v1150
      %v1202 = vmul.f32 1.0, %v1201
      %v1203 = vrcp.pop %v1151
      %v1204 = vmul.f32 1.0, %v1203
      %v1205 = vrcp.pop %v1152
      %v1206 = vmul.f32 1.0, %v1205
      %v1207 = vrcp.pop %v1153
      %v1208 = vmul.f32 1.0, %v1207
      %v1209 = vrcp.pop %v1154
      %v1210 = vmul.f32 1.0, %v1209
      %v1211 = vrcp.pop %v1155
      %v1212 = vmul.f32 1.0, %v1211
      %v1213 = vrcp.pop %v1156
      %v1214 = vmul.f32 1.0, %v1213
      %v1215 = vrcp.pop %v1157
      %v1216 = vmul.f32 1.0, %v1215
      %v1217 = vrcp.pop %v1158
      %v1218 = vmul.f32 1.0, %v1217
      %v1219 = vrcp.pop %v1159
      %v1220 = vmul.f32 1.0, %v1219
      %v1221 = vrcp.pop %v1160
      %v1222 = vmul.f32 1.0, %v1221
      %v1223 = vrcp.pop %v1161
      %v1224 = vmul.f32 1.0, %v1223
      %v1225 = vrcp.pop %v1162
      %v1226 = vmul.f32 1.0, %v1225
      %1259 = vrot.lane.b32.xlu0 %v1164, 96
      %v1260 = vpop.permute.xlu0 %1259
      %1261 = vrot.lane.b32.xlu0 %v1166, 96
      %v1262 = vpop.permute.xlu0 %1261
      %1263 = vrot.lane.b32.xlu0 %v1168, 96
      %v1264 = vpop.permute.xlu0 %1263
      %1265 = vrot.lane.b32.xlu0 %v1170, 96
      %v1266 = vpop.permute.xlu0 %1265
      %1267 = vrot.lane.b32.xlu0 %v1172, 96
      %v1268 = vpop.permute.xlu0 %1267
      %1269 = vrot.lane.b32.xlu0 %v1174, 96
      %v1270 = vpop.permute.xlu0 %1269
      %1271 = vrot.lane.b32.xlu0 %v1176, 96
      %v1272 = vpop.permute.xlu0 %1271
      %1273 = vrot.lane.b32.xlu0 %v1178, 96
      %v1274 = vpop.permute.xlu0 %1273
      %1275 = vrot.lane.b32.xlu0 %v1180, 96
      %v1276 = vpop.permute.xlu0 %1275
      %1277 = vrot.lane.b32.xlu0 %v1182, 96
      %v1278 = vpop.permute.xlu0 %1277
      %1279 = vrot.lane.b32.xlu0 %v1184, 96
      %v1280 = vpop.permute.xlu0 %1279
      %1281 = vrot.lane.b32.xlu0 %v1186, 96
      %v1282 = vpop.permute.xlu0 %1281
      %1283 = vrot.lane.b32.xlu0 %v1188, 96
      %v1284 = vpop.permute.xlu0 %1283
      %1285 = vrot.lane.b32.xlu0 %v1190, 96
      %v1286 = vpop.permute.xlu0 %1285
      %1287 = vrot.lane.b32.xlu0 %v1192, 96
      %v1288 = vpop.permute.xlu0 %1287
      %1289 = vrot.lane.b32.xlu0 %v1194, 96
      %v1290 = vpop.permute.xlu0 %1289
      %1291 = vrot.lane.b32.xlu0 %v1196, 96
      %v1292 = vpop.permute.xlu0 %1291
      %1293 = vrot.lane.b32.xlu0 %v1198, 96
      %v1294 = vpop.permute.xlu0 %1293
      %1295 = vrot.lane.b32.xlu0 %v1200, 96
      %v1296 = vpop.permute.xlu0 %1295
      %1297 = vrot.lane.b32.xlu0 %v1202, 96
      %v1298 = vpop.permute.xlu0 %1297
      %1299 = vrot.lane.b32.xlu0 %v1204, 96
      %v1300 = vpop.permute.xlu0 %1299
      %1301 = vrot.lane.b32.xlu0 %v1206, 96
      %v1302 = vpop.permute.xlu0 %1301
      %1303 = vrot.lane.b32.xlu0 %v1208, 96
      %v1304 = vpop.permute.xlu0 %1303
      %1305 = vrot.lane.b32.xlu0 %v1210, 96
      %v1306 = vpop.permute.xlu0 %1305
      %1307 = vrot.lane.b32.xlu0 %v1212, 96
      %v1308 = vpop.permute.xlu0 %1307
      %1309 = vrot.lane.b32.xlu0 %v1214, 96
      %v1310 = vpop.permute.xlu0 %1309
      %1311 = vrot.lane.b32.xlu0 %v1216, 96
      %v1312 = vpop.permute.xlu0 %1311
      %1313 = vrot.lane.b32.xlu0 %v1218, 96
      %v1314 = vpop.permute.xlu0 %1313
      %1315 = vrot.lane.b32.xlu0 %v1220, 96
      %v1316 = vpop.permute.xlu0 %1315
      %1317 = vrot.lane.b32.xlu0 %v1222, 96
      %v1318 = vpop.permute.xlu0 %1317
      %1319 = vrot.lane.b32.xlu0 %v1224, 96
      %v1320 = vpop.permute.xlu0 %1319
      %1321 = vrot.lane.b32.xlu0 %v1226, 96
      %v1322 = vpop.permute.xlu0 %1321
      %v1355 = vmul.f32 %v877, %v1260
      %v1356 = vmul.f32 %v882, %v1262
      %v1357 = vmul.f32 %v887, %v1264
      %v1358 = vmul.f32 %v892, %v1266
      %v1359 = vmul.f32 %v897, %v1268
      %v1360 = vmul.f32 %v902, %v1270
      %v1361 = vmul.f32 %v907, %v1272
      %v1362 = vmul.f32 %v912, %v1274
      %v1363 = vmul.f32 %v917, %v1276
      %v1364 = vmul.f32 %v922, %v1278
      %v1365 = vmul.f32 %v927, %v1280
      %v1366 = vmul.f32 %v932, %v1282
      %v1367 = vmul.f32 %v937, %v1284
      %v1368 = vmul.f32 %v942, %v1286
      %v1369 = vmul.f32 %v947, %v1288
      %v1370 = vmul.f32 %v952, %v1290
      %v1371 = vmul.f32 %v957, %v1292
      %v1372 = vmul.f32 %v962, %v1294
      %v1373 = vmul.f32 %v967, %v1296
      %v1374 = vmul.f32 %v972, %v1298
      %v1375 = vmul.f32 %v977, %v1300
      %v1376 = vmul.f32 %v982, %v1302
      %v1377 = vmul.f32 %v987, %v1304
      %v1378 = vmul.f32 %v992, %v1306
      %v1379 = vmul.f32 %v997, %v1308
      %v1380 = vmul.f32 %v1002, %v1310
      %v1381 = vmul.f32 %v1007, %v1312
      %v1382 = vmul.f32 %v1012, %v1314
      %v1383 = vmul.f32 %v1017, %v1316
      %v1384 = vmul.f32 %v1022, %v1318
      %v1385 = vmul.f32 %v1027, %v1320
      %v1386 = vmul.f32 %v1032, %v1322
      %v1387 = vadd.f32 %v277, %v1355
      %v1388 = vadd.f32 %v278, %v1356
      %v1389 = vadd.f32 %v279, %v1357
      %v1390 = vadd.f32 %v280, %v1358
      %v1391 = vadd.f32 %v281, %v1359
      %v1392 = vadd.f32 %v282, %v1360
      %v1393 = vadd.f32 %v283, %v1361
      %v1394 = vadd.f32 %v284, %v1362
      %v1395 = vadd.f32 %v285, %v1363
      %v1396 = vadd.f32 %v286, %v1364
      %v1397 = vadd.f32 %v287, %v1365
      %v1398 = vadd.f32 %v288, %v1366
      %v1399 = vadd.f32 %v289, %v1367
      %v1400 = vadd.f32 %v290, %v1368
      %v1401 = vadd.f32 %v291, %v1369
      %v1402 = vadd.f32 %v292, %v1370
      %v1403 = vadd.f32 %v293, %v1371
      %v1404 = vadd.f32 %v294, %v1372
      %v1405 = vadd.f32 %v295, %v1373
      %v1406 = vadd.f32 %v296, %v1374
      %v1407 = vadd.f32 %v297, %v1375
      %v1408 = vadd.f32 %v298, %v1376
      %v1409 = vadd.f32 %v299, %v1377
      %v1410 = vadd.f32 %v300, %v1378
      %v1411 = vadd.f32 %v301, %v1379
      %v1412 = vadd.f32 %v302, %v1380
      %v1413 = vadd.f32 %v303, %v1381
      %v1414 = vadd.f32 %v304, %v1382
      %v1415 = vadd.f32 %v305, %v1383
      %v1416 = vadd.f32 %v306, %v1384
      %v1417 = vadd.f32 %v307, %v1385
      %v1418 = vadd.f32 %v308, %v1386
      %v1419 = vmul.f32 %v1387, 0.70710677
      %v1420 = vmul.f32 %v1388, 0.70710677
      %v1421 = vmul.f32 %v1389, 0.70710677
      %v1422 = vmul.f32 %v1390, 0.70710677
      %v1423 = vmul.f32 %v1391, 0.70710677
      %v1424 = vmul.f32 %v1392, 0.70710677
      %v1425 = vmul.f32 %v1393, 0.70710677
      %v1426 = vmul.f32 %v1394, 0.70710677
      %v1427 = vmul.f32 %v1395, 0.70710677
      %v1428 = vmul.f32 %v1396, 0.70710677
      %v1429 = vmul.f32 %v1397, 0.70710677
      %v1430 = vmul.f32 %v1398, 0.70710677
      %v1431 = vmul.f32 %v1399, 0.70710677
      %v1432 = vmul.f32 %v1400, 0.70710677
      %v1433 = vmul.f32 %v1401, 0.70710677
      %v1434 = vmul.f32 %v1402, 0.70710677
      %v1435 = vmul.f32 %v1403, 0.70710677
      %v1436 = vmul.f32 %v1404, 0.70710677
      %v1437 = vmul.f32 %v1405, 0.70710677
      %v1438 = vmul.f32 %v1406, 0.70710677
      %v1439 = vmul.f32 %v1407, 0.70710677
      %v1440 = vmul.f32 %v1408, 0.70710677
      %v1441 = vmul.f32 %v1409, 0.70710677
      %v1442 = vmul.f32 %v1410, 0.70710677
      %v1443 = vmul.f32 %v1411, 0.70710677
      %v1444 = vmul.f32 %v1412, 0.70710677
      %v1445 = vmul.f32 %v1413, 0.70710677
      %v1446 = vmul.f32 %v1414, 0.70710677
      %v1447 = vmul.f32 %v1415, 0.70710677
      %v1448 = vmul.f32 %v1416, 0.70710677
      %v1449 = vmul.f32 %v1417, 0.70710677
      %v1450 = vmul.f32 %v1418, 0.70710677
      %1451 = vst.msk [vmem:[#allocation2 + $0x8] sm:$0xff] %vm179, %v1419
      %1452 = vst.msk [vmem:[#allocation2 + $0x10] sm:$0xff] %vm179, %v1420
      %1453 = vst.msk [vmem:[#allocation2 + $0x28] sm:$0xff] %vm179, %v1421
      %1454 = vst.msk [vmem:[#allocation2 + $0x30] sm:$0xff] %vm179, %v1422
      %1455 = vst.msk [vmem:[#allocation2 + $0x48] sm:$0xff] %vm179, %v1423
      %1456 = vst.msk [vmem:[#allocation2 + $0x50] sm:$0xff] %vm179, %v1424
      %1457 = vst.msk [vmem:[#allocation2 + $0x68] sm:$0xff] %vm179, %v1425
      %1458 = vst.msk [vmem:[#allocation2 + $0x70] sm:$0xff] %vm179, %v1426
      %1459 = vst.msk [vmem:[#allocation2 + $0x88] sm:$0xff] %vm179, %v1427
      %1460 = vst.msk [vmem:[#allocation2 + $0x90] sm:$0xff] %vm179, %v1428
      %1461 = vst.msk [vmem:[#allocation2 + $0xa8] sm:$0xff] %vm179, %v1429
      %1462 = vst.msk [vmem:[#allocation2 + $0xb0] sm:$0xff] %vm179, %v1430
      %1463 = vst.msk [vmem:[#allocation2 + $0xc8] sm:$0xff] %vm179, %v1431
      %1464 = vst.msk [vmem:[#allocation2 + $0xd0] sm:$0xff] %vm179, %v1432
      %1465 = vst.msk [vmem:[#allocation2 + $0xe8] sm:$0xff] %vm179, %v1433
      %1466 = vst.msk [vmem:[#allocation2 + $0xf0] sm:$0xff] %vm179, %v1434
      %1467 = vst.msk [vmem:[#allocation2 + $0x108] sm:$0xff] %vm179, %v1435
      %1468 = vst.msk [vmem:[#allocation2 + $0x110] sm:$0xff] %vm179, %v1436
      %1469 = vst.msk [vmem:[#allocation2 + $0x128] sm:$0xff] %vm179, %v1437
      %1470 = vst.msk [vmem:[#allocation2 + $0x130] sm:$0xff] %vm179, %v1438
      %1471 = vst.msk [vmem:[#allocation2 + $0x148] sm:$0xff] %vm179, %v1439
      %1472 = vst.msk [vmem:[#allocation2 + $0x150] sm:$0xff] %vm179, %v1440
      %1473 = vst.msk [vmem:[#allocation2 + $0x168] sm:$0xff] %vm179, %v1441
      %1474 = vst.msk [vmem:[#allocation2 + $0x170] sm:$0xff] %vm179, %v1442
      %1475 = vst.msk [vmem:[#allocation2 + $0x188] sm:$0xff] %vm179, %v1443
      %1476 = vst.msk [vmem:[#allocation2 + $0x190] sm:$0xff] %vm179, %v1444
      %1477 = vst.msk [vmem:[#allocation2 + $0x1a8] sm:$0xff] %vm179, %v1445
      %1478 = vst.msk [vmem:[#allocation2 + $0x1b0] sm:$0xff] %vm179, %v1446
      %1479 = vst.msk [vmem:[#allocation2 + $0x1c8] sm:$0xff] %vm179, %v1447
      %1480 = vst.msk [vmem:[#allocation2 + $0x1d0] sm:$0xff] %vm179, %v1448
      %1481 = vst.msk [vmem:[#allocation2 + $0x1e8] sm:$0xff] %vm179, %v1449
      %1482 = vst.msk [vmem:[#allocation2 + $0x1f0] sm:$0xff] %vm179, %v1450
      %v1483 = vld [vmem:[#allocation2 + $0x8] sm:$0xff]
      %v1484 = vld [vmem:[#allocation2 + $0x10] sm:$0xff]
      %v1485 = vld [vmem:[#allocation2 + $0x28] sm:$0xff]
      %v1486 = vld [vmem:[#allocation2 + $0x30] sm:$0xff]
      %v1487 = vld [vmem:[#allocation2 + $0x48] sm:$0xff]
      %v1488 = vld [vmem:[#allocation2 + $0x50] sm:$0xff]
      %v1489 = vld [vmem:[#allocation2 + $0x68] sm:$0xff]
      %v1490 = vld [vmem:[#allocation2 + $0x70] sm:$0xff]
      %v1491 = vld [vmem:[#allocation2 + $0x88] sm:$0xff]
      %v1492 = vld [vmem:[#allocation2 + $0x90] sm:$0xff]
      %v1493 = vld [vmem:[#allocation2 + $0xa8] sm:$0xff]
      %v1494 = vld [vmem:[#allocation2 + $0xb0] sm:$0xff]
      %v1495 = vld [vmem:[#allocation2 + $0xc8] sm:$0xff]
      %v1496 = vld [vmem:[#allocation2 + $0xd0] sm:$0xff]
      %v1497 = vld [vmem:[#allocation2 + $0xe8] sm:$0xff]
      %v1498 = vld [vmem:[#allocation2 + $0xf0] sm:$0xff]
      %v1499 = vld [vmem:[#allocation2 + $0x108] sm:$0xff]
      %v1500 = vld [vmem:[#allocation2 + $0x110] sm:$0xff]
      %v1501 = vld [vmem:[#allocation2 + $0x128] sm:$0xff]
      %v1502 = vld [vmem:[#allocation2 + $0x130] sm:$0xff]
      %v1503 = vld [vmem:[#allocation2 + $0x148] sm:$0xff]
      %v1504 = vld [vmem:[#allocation2 + $0x150] sm:$0xff]
      %v1505 = vld [vmem:[#allocation2 + $0x168] sm:$0xff]
      %v1506 = vld [vmem:[#allocation2 + $0x170] sm:$0xff]
      %v1507 = vld [vmem:[#allocation2 + $0x188] sm:$0xff]
      %v1508 = vld [vmem:[#allocation2 + $0x190] sm:$0xff]
      %v1509 = vld [vmem:[#allocation2 + $0x1a8] sm:$0xff]
      %v1510 = vld [vmem:[#allocation2 + $0x1b0] sm:$0xff]
      %v1511 = vld [vmem:[#allocation2 + $0x1c8] sm:$0xff]
      %v1512 = vld [vmem:[#allocation2 + $0x1d0] sm:$0xff]
      %v1513 = vld [vmem:[#allocation2 + $0x1e8] sm:$0xff]
      %v1514 = vld [vmem:[#allocation2 + $0x1f0] sm:$0xff]
      %v1515 = vld [vmem:[#allocation2 + $0x6] sm:$0xff]
      %v1516 = vld [vmem:[#allocation2 + $0xe] sm:$0xff]
      %v1517 = vld [vmem:[#allocation2 + $0x26] sm:$0xff]
      %v1518 = vld [vmem:[#allocation2 + $0x2e] sm:$0xff]
      %v1519 = vld [vmem:[#allocation2 + $0x46] sm:$0xff]
      %v1520 = vld [vmem:[#allocation2 + $0x4e] sm:$0xff]
      %v1521 = vld [vmem:[#allocation2 + $0x66] sm:$0xff]
      %v1522 = vld [vmem:[#allocation2 + $0x6e] sm:$0xff]
      %v1523 = vld [vmem:[#allocation2 + $0x86] sm:$0xff]
      %v1524 = vld [vmem:[#allocation2 + $0x8e] sm:$0xff]
      %v1525 = vld [vmem:[#allocation2 + $0xa6] sm:$0xff]
      %v1526 = vld [vmem:[#allocation2 + $0xae] sm:$0xff]
      %v1527 = vld [vmem:[#allocation2 + $0xc6] sm:$0xff]
      %v1528 = vld [vmem:[#allocation2 + $0xce] sm:$0xff]
      %v1529 = vld [vmem:[#allocation2 + $0xe6] sm:$0xff]
      %v1530 = vld [vmem:[#allocation2 + $0xee] sm:$0xff]
      %v1531 = vld [vmem:[#allocation2 + $0x106] sm:$0xff]
      %v1532 = vld [vmem:[#allocation2 + $0x10e] sm:$0xff]
      %v1533 = vld [vmem:[#allocation2 + $0x126] sm:$0xff]
      %v1534 = vld [vmem:[#allocation2 + $0x12e] sm:$0xff]
      %v1535 = vld [vmem:[#allocation2 + $0x146] sm:$0xff]
      %v1536 = vld [vmem:[#allocation2 + $0x14e] sm:$0xff]
      %v1537 = vld [vmem:[#allocation2 + $0x166] sm:$0xff]
      %v1538 = vld [vmem:[#allocation2 + $0x16e] sm:$0xff]
      %v1539 = vld [vmem:[#allocation2 + $0x186] sm:$0xff]
      %v1540 = vld [vmem:[#allocation2 + $0x18e] sm:$0xff]
      %v1541 = vld [vmem:[#allocation2 + $0x1a6] sm:$0xff]
      %v1542 = vld [vmem:[#allocation2 + $0x1ae] sm:$0xff]
      %v1543 = vld [vmem:[#allocation2 + $0x1c6] sm:$0xff]
      %v1544 = vld [vmem:[#allocation2 + $0x1ce] sm:$0xff]
      %v1545 = vld [vmem:[#allocation2 + $0x1e6] sm:$0xff]
      %v1546 = vld [vmem:[#allocation2 + $0x1ee] sm:$0xff]
      %v1547 = vld [vmem:[#allocation2 + $0xa] sm:$0xff]
      %v1548 = vld [vmem:[#allocation2 + $0x12] sm:$0xff]
      %v1549 = vld [vmem:[#allocation2 + $0x2a] sm:$0xff]
      %v1550 = vld [vmem:[#allocation2 + $0x32] sm:$0xff]
      %v1551 = vld [vmem:[#allocation2 + $0x4a] sm:$0xff]
      %v1552 = vld [vmem:[#allocation2 + $0x52] sm:$0xff]
      %v1553 = vld [vmem:[#allocation2 + $0x6a] sm:$0xff]
      %v1554 = vld [vmem:[#allocation2 + $0x72] sm:$0xff]
      %v1555 = vld [vmem:[#allocation2 + $0x8a] sm:$0xff]
      %v1556 = vld [vmem:[#allocation2 + $0x92] sm:$0xff]
      %v1557 = vld [vmem:[#allocation2 + $0xaa] sm:$0xff]
      %v1558 = vld [vmem:[#allocation2 + $0xb2] sm:$0xff]
      %v1559 = vld [vmem:[#allocation2 + $0xca] sm:$0xff]
      %v1560 = vld [vmem:[#allocation2 + $0xd2] sm:$0xff]
      %v1561 = vld [vmem:[#allocation2 + $0xea] sm:$0xff]
      %v1562 = vld [vmem:[#allocation2 + $0xf2] sm:$0xff]
      %v1563 = vld [vmem:[#allocation2 + $0x10a] sm:$0xff]
      %v1564 = vld [vmem:[#allocation2 + $0x112] sm:$0xff]
      %v1565 = vld [vmem:[#allocation2 + $0x12a] sm:$0xff]
      %v1566 = vld [vmem:[#allocation2 + $0x132] sm:$0xff]
      %v1567 = vld [vmem:[#allocation2 + $0x14a] sm:$0xff]
      %v1568 = vld [vmem:[#allocation2 + $0x152] sm:$0xff]
      %v1569 = vld [vmem:[#allocation2 + $0x16a] sm:$0xff]
      %v1570 = vld [vmem:[#allocation2 + $0x172] sm:$0xff]
      %v1571 = vld [vmem:[#allocation2 + $0x18a] sm:$0xff]
      %v1572 = vld [vmem:[#allocation2 + $0x192] sm:$0xff]
      %v1573 = vld [vmem:[#allocation2 + $0x1aa] sm:$0xff]
      %v1574 = vld [vmem:[#allocation2 + $0x1b2] sm:$0xff]
      %v1575 = vld [vmem:[#allocation2 + $0x1ca] sm:$0xff]
      %v1576 = vld [vmem:[#allocation2 + $0x1d2] sm:$0xff]
      %v1577 = vld [vmem:[#allocation2 + $0x1ea] sm:$0xff]
      %v1578 = vld [vmem:[#allocation2 + $0x1f2] sm:$0xff]
      %1611 = vrot.lane.b32.xlu0 %v1483, 32
      %v1612 = vpop.permute.xlu0 %1611
      %1613 = vrot.lane.b32.xlu0 %v1484, 32
      %v1614 = vpop.permute.xlu0 %1613
      %1615 = vrot.lane.b32.xlu0 %v1485, 32
      %v1616 = vpop.permute.xlu0 %1615
      %1617 = vrot.lane.b32.xlu0 %v1486, 32
      %v1618 = vpop.permute.xlu0 %1617
      %1619 = vrot.lane.b32.xlu0 %v1487, 32
      %v1620 = vpop.permute.xlu0 %1619
      %1621 = vrot.lane.b32.xlu0 %v1488, 32
      %v1622 = vpop.permute.xlu0 %1621
      %1623 = vrot.lane.b32.xlu0 %v1489, 32
      %v1624 = vpop.permute.xlu0 %1623
      %1625 = vrot.lane.b32.xlu0 %v1490, 32
      %v1626 = vpop.permute.xlu0 %1625
      %1627 = vrot.lane.b32.xlu0 %v1491, 32
      %v1628 = vpop.permute.xlu0 %1627
      %1629 = vrot.lane.b32.xlu0 %v1492, 32
      %v1630 = vpop.permute.xlu0 %1629
      %1631 = vrot.lane.b32.xlu0 %v1493, 32
      %v1632 = vpop.permute.xlu0 %1631
      %1633 = vrot.lane.b32.xlu0 %v1494, 32
      %v1634 = vpop.permute.xlu0 %1633
      %1635 = vrot.lane.b32.xlu0 %v1495, 32
      %v1636 = vpop.permute.xlu0 %1635
      %1637 = vrot.lane.b32.xlu0 %v1496, 32
      %v1638 = vpop.permute.xlu0 %1637
      %1639 = vrot.lane.b32.xlu0 %v1497, 32
      %v1640 = vpop.permute.xlu0 %1639
      %1641 = vrot.lane.b32.xlu0 %v1498, 32
      %v1642 = vpop.permute.xlu0 %1641
      %1643 = vrot.lane.b32.xlu0 %v1499, 32
      %v1644 = vpop.permute.xlu0 %1643
      %1645 = vrot.lane.b32.xlu0 %v1500, 32
      %v1646 = vpop.permute.xlu0 %1645
      %1647 = vrot.lane.b32.xlu0 %v1501, 32
      %v1648 = vpop.permute.xlu0 %1647
      %1649 = vrot.lane.b32.xlu0 %v1502, 32
      %v1650 = vpop.permute.xlu0 %1649
      %1651 = vrot.lane.b32.xlu0 %v1503, 32
      %v1652 = vpop.permute.xlu0 %1651
      %1653 = vrot.lane.b32.xlu0 %v1504, 32
      %v1654 = vpop.permute.xlu0 %1653
      %1655 = vrot.lane.b32.xlu0 %v1505, 32
      %v1656 = vpop.permute.xlu0 %1655
      %1657 = vrot.lane.b32.xlu0 %v1506, 32
      %v1658 = vpop.permute.xlu0 %1657
      %1659 = vrot.lane.b32.xlu0 %v1507, 32
      %v1660 = vpop.permute.xlu0 %1659
      %1661 = vrot.lane.b32.xlu0 %v1508, 32
      %v1662 = vpop.permute.xlu0 %1661
      %1663 = vrot.lane.b32.xlu0 %v1509, 32
      %v1664 = vpop.permute.xlu0 %1663
      %1665 = vrot.lane.b32.xlu0 %v1510, 32
      %v1666 = vpop.permute.xlu0 %1665
      %1667 = vrot.lane.b32.xlu0 %v1511, 32
      %v1668 = vpop.permute.xlu0 %1667
      %1669 = vrot.lane.b32.xlu0 %v1512, 32
      %v1670 = vpop.permute.xlu0 %1669
      %1671 = vrot.lane.b32.xlu0 %v1513, 32
      %v1672 = vpop.permute.xlu0 %1671
      %1673 = vrot.lane.b32.xlu0 %v1514, 32
      %v1674 = vpop.permute.xlu0 %1673
      %1739 = vrot.lane.b32.xlu0 %v1547, 64
      %v1740 = vpop.permute.xlu0 %1739
      %1741 = vrot.lane.b32.xlu0 %v1548, 64
      %v1742 = vpop.permute.xlu0 %1741
      %1743 = vrot.lane.b32.xlu0 %v1549, 64
      %v1744 = vpop.permute.xlu0 %1743
      %1745 = vrot.lane.b32.xlu0 %v1550, 64
      %v1746 = vpop.permute.xlu0 %1745
      %1747 = vrot.lane.b32.xlu0 %v1551, 64
      %v1748 = vpop.permute.xlu0 %1747
      %1749 = vrot.lane.b32.xlu0 %v1552, 64
      %v1750 = vpop.permute.xlu0 %1749
      %1751 = vrot.lane.b32.xlu0 %v1553, 64
      %v1752 = vpop.permute.xlu0 %1751
      %1753 = vrot.lane.b32.xlu0 %v1554, 64
      %v1754 = vpop.permute.xlu0 %1753
      %1755 = vrot.lane.b32.xlu0 %v1555, 64
      %v1756 = vpop.permute.xlu0 %1755
      %1757 = vrot.lane.b32.xlu0 %v1556, 64
      %v1758 = vpop.permute.xlu0 %1757
      %1759 = vrot.lane.b32.xlu0 %v1557, 64
      %v1760 = vpop.permute.xlu0 %1759
      %1761 = vrot.lane.b32.xlu0 %v1558, 64
      %v1762 = vpop.permute.xlu0 %1761
      %1763 = vrot.lane.b32.xlu0 %v1559, 64
      %v1764 = vpop.permute.xlu0 %1763
      %1765 = vrot.lane.b32.xlu0 %v1560, 64
      %v1766 = vpop.permute.xlu0 %1765
      %1767 = vrot.lane.b32.xlu0 %v1561, 64
      %v1768 = vpop.permute.xlu0 %1767
      %1769 = vrot.lane.b32.xlu0 %v1562, 64
      %v1770 = vpop.permute.xlu0 %1769
      %1771 = vrot.lane.b32.xlu0 %v1563, 64
      %v1772 = vpop.permute.xlu0 %1771
      %1773 = vrot.lane.b32.xlu0 %v1564, 64
      %v1774 = vpop.permute.xlu0 %1773
      %1775 = vrot.lane.b32.xlu0 %v1565, 64
      %v1776 = vpop.permute.xlu0 %1775
      %1777 = vrot.lane.b32.xlu0 %v1566, 64
      %v1778 = vpop.permute.xlu0 %1777
      %1779 = vrot.lane.b32.xlu0 %v1567, 64
      %v1780 = vpop.permute.xlu0 %1779
      %1781 = vrot.lane.b32.xlu0 %v1568, 64
      %v1782 = vpop.permute.xlu0 %1781
      %1783 = vrot.lane.b32.xlu0 %v1569, 64
      %v1784 = vpop.permute.xlu0 %1783
      %1785 = vrot.lane.b32.xlu0 %v1570, 64
      %v1786 = vpop.permute.xlu0 %1785
      %1787 = vrot.lane.b32.xlu0 %v1571, 64
      %v1788 = vpop.permute.xlu0 %1787
      %1789 = vrot.lane.b32.xlu0 %v1572, 64
      %v1790 = vpop.permute.xlu0 %1789
      %1791 = vrot.lane.b32.xlu0 %v1573, 64
      %v1792 = vpop.permute.xlu0 %1791
      %1793 = vrot.lane.b32.xlu0 %v1574, 64
      %v1794 = vpop.permute.xlu0 %1793
      %1795 = vrot.lane.b32.xlu0 %v1575, 64
      %v1796 = vpop.permute.xlu0 %1795
      %1797 = vrot.lane.b32.xlu0 %v1576, 64
      %v1798 = vpop.permute.xlu0 %1797
      %1799 = vrot.lane.b32.xlu0 %v1577, 64
      %v1800 = vpop.permute.xlu0 %1799
      %1801 = vrot.lane.b32.xlu0 %v1578, 64
      %v1802 = vpop.permute.xlu0 %1801
      %v1835 = vsel %vm179, %v1515, %v1612
      %v1836 = vsel %vm179, %v1516, %v1614
      %v1837 = vsel %vm179, %v1517, %v1616
      %v1838 = vsel %vm179, %v1518, %v1618
      %v1839 = vsel %vm179, %v1519, %v1620
      %v1840 = vsel %vm179, %v1520, %v1622
      %v1841 = vsel %vm179, %v1521, %v1624
      %v1842 = vsel %vm179, %v1522, %v1626
      %v1843 = vsel %vm179, %v1523, %v1628
      %v1844 = vsel %vm179, %v1524, %v1630
      %v1845 = vsel %vm179, %v1525, %v1632
      %v1846 = vsel %vm179, %v1526, %v1634
      %v1847 = vsel %vm179, %v1527, %v1636
      %v1848 = vsel %vm179, %v1528, %v1638
      %v1849 = vsel %vm179, %v1529, %v1640
      %v1850 = vsel %vm179, %v1530, %v1642
      %v1851 = vsel %vm179, %v1531, %v1644
      %v1852 = vsel %vm179, %v1532, %v1646
      %v1853 = vsel %vm179, %v1533, %v1648
      %v1854 = vsel %vm179, %v1534, %v1650
      %v1855 = vsel %vm179, %v1535, %v1652
      %v1856 = vsel %vm179, %v1536, %v1654
      %v1857 = vsel %vm179, %v1537, %v1656
      %v1858 = vsel %vm179, %v1538, %v1658
      %v1859 = vsel %vm179, %v1539, %v1660
      %v1860 = vsel %vm179, %v1540, %v1662
      %v1861 = vsel %vm179, %v1541, %v1664
      %v1862 = vsel %vm179, %v1542, %v1666
      %v1863 = vsel %vm179, %v1543, %v1668
      %v1864 = vsel %vm179, %v1544, %v1670
      %v1865 = vsel %vm179, %v1545, %v1672
      %v1866 = vsel %vm179, %v1546, %v1674
      %v1867 = vsel %vm661, %v1835, %v1740
      %v1868 = vsel %vm661, %v1836, %v1742
      %v1869 = vsel %vm661, %v1837, %v1744
      %v1870 = vsel %vm661, %v1838, %v1746
      %v1871 = vsel %vm661, %v1839, %v1748
      %v1872 = vsel %vm661, %v1840, %v1750
      %v1873 = vsel %vm661, %v1841, %v1752
      %v1874 = vsel %vm661, %v1842, %v1754
      %v1875 = vsel %vm661, %v1843, %v1756
      %v1876 = vsel %vm661, %v1844, %v1758
      %v1877 = vsel %vm661, %v1845, %v1760
      %v1878 = vsel %vm661, %v1846, %v1762
      %v1879 = vsel %vm661, %v1847, %v1764
      %v1880 = vsel %vm661, %v1848, %v1766
      %v1881 = vsel %vm661, %v1849, %v1768
      %v1882 = vsel %vm661, %v1850, %v1770
      %v1883 = vsel %vm661, %v1851, %v1772
      %v1884 = vsel %vm661, %v1852, %v1774
      %v1885 = vsel %vm661, %v1853, %v1776
      %v1886 = vsel %vm661, %v1854, %v1778
      %v1887 = vsel %vm661, %v1855, %v1780
      %v1888 = vsel %vm661, %v1856, %v1782
      %v1889 = vsel %vm661, %v1857, %v1784
      %v1890 = vsel %vm661, %v1858, %v1786
      %v1891 = vsel %vm661, %v1859, %v1788
      %v1892 = vsel %vm661, %v1860, %v1790
      %v1893 = vsel %vm661, %v1861, %v1792
      %v1894 = vsel %vm661, %v1862, %v1794
      %v1895 = vsel %vm661, %v1863, %v1796
      %v1896 = vsel %vm661, %v1864, %v1798
      %v1897 = vsel %vm661, %v1865, %v1800
      %v1898 = vsel %vm661, %v1866, %v1802
      %s1899 = scalar_lea.vmem %s1, 96
      %v1900 = vld [vmem:[%s1899] sm:$0xff]
      %v1901 = vld [vmem:[%s1899 + $0x8] sm:$0xff]
      %v1902 = vld [vmem:[%s1899 + $0x10] sm:$0xff]
      %v1903 = vld [vmem:[%s1899 + $0x18] sm:$0xff]
      %v1904 = vld [vmem:[%s1899 + $0x20] sm:$0xff]
      %v1905 = vld [vmem:[%s1899 + $0x28] sm:$0xff]
      %v1906 = vld [vmem:[%s1899 + $0x30] sm:$0xff]
      %v1907 = vld [vmem:[%s1899 + $0x38] sm:$0xff]
      %v1908 = vld [vmem:[%s1899 + $0x40] sm:$0xff]
      %v1909 = vld [vmem:[%s1899 + $0x48] sm:$0xff]
      %v1910 = vld [vmem:[%s1899 + $0x50] sm:$0xff]
      %v1911 = vld [vmem:[%s1899 + $0x58] sm:$0xff]
      %s1912 = scalar_lea.vmem %s2, 1
      %v1913 = vld [vmem:[%s1912] sm:$0x1]
      %v1915 = vlaneseq
      %v1916 = vshrl.u32 %v1915, 7
      %v1917 = vsub.s32 0, %v1916
      %v1918 = vrot.slane %v1913, %v1917
      %v1921 = vsel %vm713, %v1867, 0
      %v1924 = vsel %vm713, %v1868, 0
      %v1927 = vsel %vm713, %v1869, 0
      %v1930 = vsel %vm713, %v1870, 0
      %v1933 = vsel %vm713, %v1871, 0
      %v1936 = vsel %vm713, %v1872, 0
      %v1939 = vsel %vm713, %v1873, 0
      %v1942 = vsel %vm713, %v1874, 0
      %v1945 = vsel %vm713, %v1875, 0
      %v1948 = vsel %vm713, %v1876, 0
      %v1951 = vsel %vm713, %v1877, 0
      %v1954 = vsel %vm713, %v1878, 0
      %v1957 = vsel %vm713, %v1879, 0
      %v1960 = vsel %vm713, %v1880, 0
      %v1963 = vsel %vm713, %v1881, 0
      %v1966 = vsel %vm713, %v1882, 0
      %v1969 = vsel %vm713, %v1883, 0
      %v1972 = vsel %vm713, %v1884, 0
      %v1975 = vsel %vm713, %v1885, 0
      %v1978 = vsel %vm713, %v1886, 0
      %v1981 = vsel %vm713, %v1887, 0
      %v1984 = vsel %vm713, %v1888, 0
      %v1987 = vsel %vm713, %v1889, 0
      %v1990 = vsel %vm713, %v1890, 0
      %v1993 = vsel %vm713, %v1891, 0
      %v1996 = vsel %vm713, %v1892, 0
      %v1999 = vsel %vm713, %v1893, 0
      %v2002 = vsel %vm713, %v1894, 0
      %v2005 = vsel %vm713, %v1895, 0
      %v2008 = vsel %vm713, %v1896, 0
      %v2011 = vsel %vm713, %v1897, 0
      %v2014 = vsel %vm713, %v1898, 0
      %2016 = vmatprep.subr.mxu0 0.0
      %2017 = vmatpush1.msra.mxu0 %v1900
      %2018 = vmatprep.subr.mxu0 0.0
      %2019 = vmatpush1.msra.mxu0 %v1901
      %2020 = vmatprep.subr.mxu0 0.0
      %2021 = vmatpush1.msra.mxu0 %v1902
      %2022 = vmatprep.subr.mxu0 0.0
      %2023 = vmatpush1.msra.mxu0 %v1903
      %2024 = vmatprep.subr.mxu0 0.0
      %2025 = vmatpush1.msra.mxu0 %v1904
      %2026 = vmatprep.subr.mxu0 0.0
      %2027 = vmatpush1.msra.mxu0 %v1905
      %2028 = vmatprep.subr.mxu0 0.0
      %2029 = vmatpush1.msra.mxu0 %v1906
      %2030 = vmatprep.subr.mxu0 0.0
      %2031 = vmatpush1.msra.mxu0 %v1907
      %2032 = vmatprep.subr.mxu0 0.0
      %2033 = vmatpush1.msra.mxu0 %v1908
      %2034 = vmatprep.subr.mxu0 0.0
      %2035 = vmatpush1.msra.mxu0 %v1909
      %2036 = vmatprep.subr.mxu0 0.0
      %2037 = vmatpush1.msra.mxu0 %v1910
      %2038 = vmatprep.subr.mxu0 0.0
      %2039 = vmatpush1.msra.mxu0 %v1911
      %2040 = vmatprep.subr.mxu0 0.0
      %2041 = vmatpush1.msra.mxu0 0.0
      %2042 = vmatprep.subr.mxu0 0.0
      %2043 = vmatpush1.msra.mxu0 0.0
      %2044 = vmatprep.subr.mxu0 0.0
      %2045 = vmatpush1.msra.mxu0 0.0
      %2046 = vmatprep.subr.mxu0 0.0
      %2047 = vmatpush1.msra.mxu0 0.0
      %2048 = vmatprep.subr.mxu0 0.0
      %2049 = vmatpush1.msra.mxu0 0.0
      %2050 = vmatprep.subr.mxu0 0.0
      %2051 = vmatpush1.msra.mxu0 0.0
      %2052 = vmatprep.subr.mxu0 0.0
      %2053 = vmatpush1.msra.mxu0 0.0
      %2054 = vmatprep.subr.mxu0 0.0
      %2055 = vmatpush1.msra.mxu0 0.0
      %2056 = vmatprep.subr.mxu0 0.0
      %2057 = vmatpush1.msra.mxu0 0.0
      %2058 = vmatprep.subr.mxu0 0.0
      %2059 = vmatpush1.msra.mxu0 0.0
      %2060 = vmatprep.subr.mxu0 0.0
      %2061 = vmatpush1.msra.mxu0 0.0
      %2062 = vmatprep.subr.mxu0 0.0
      %2063 = vmatpush1.msra.mxu0 0.0
      %2064 = vmatprep.subr.mxu0 0.0
      %2065 = vmatpush1.msra.mxu0 0.0
      %2066 = vmatprep.subr.mxu0 0.0
      %2067 = vmatpush1.msra.mxu0 0.0
      %2068 = vmatprep.subr.mxu0 0.0
      %2069 = vmatpush1.msra.mxu0 0.0
      %2070 = vmatprep.subr.mxu0 0.0
      %2071 = vmatpush1.msra.mxu0 0.0
      %2072 = vmatprep.subr.mxu0 0.0
      %2073 = vmatpush1.msra.mxu0 0.0
      %2074 = vmatprep.subr.mxu0 0.0
      %2075 = vmatpush1.msra.mxu0 0.0
      %2076 = vmatprep.subr.mxu0 0.0
      %2077 = vmatpush1.msra.mxu0 0.0
      %2078 = vmatprep.subr.mxu0 0.0
      %2079 = vmatpush1.msra.mxu0 0.0
      %2080 = vmatprep.mubr.f32.mxu0 0.0
      %2081 = vmatmul.mubr.f32.gmra.mrb[0].mxu0 %v1921
      %v2082 = vpop.f32.mrb[0].mxu0
      %v2083 = vadd.f32 %v1918, %v2082
      %v2084 = vpop.f32.mrb[0].mxu0
      %2085 = vmatprep.mubr.f32.mxu0 0.0
      %2086 = vmatmul.mubr.f32.gmra.mrb[0].mxu0 %v1924
      %v2087 = vpop.f32.mrb[0].mxu0
      %v2088 = vadd.f32 %v1918, %v2087
      %v2089 = vpop.f32.mrb[0].mxu0
      %2090 = vmatprep.mubr.f32.mxu0 0.0
      %2091 = vmatmul.mubr.f32.gmra.mrb[0].mxu0 %v1927
      %v2092 = vpop.f32.mrb[0].mxu0
      %v2093 = vadd.f32 %v1918, %v2092
      %v2094 = vpop.f32.mrb[0].mxu0
      %2095 = vmatprep.mubr.f32.mxu0 0.0
      %2096 = vmatmul.mubr.f32.gmra.mrb[0].mxu0 %v1930
      %v2097 = vpop.f32.mrb[0].mxu0
      %v2098 = vadd.f32 %v1918, %v2097
      %v2099 = vpop.f32.mrb[0].mxu0
      %2100 = vmatprep.mubr.f32.mxu0 0.0
      %2101 = vmatmul.mubr.f32.gmra.mrb[0].mxu0 %v1933
      %v2102 = vpop.f32.mrb[0].mxu0
      %v2103 = vadd.f32 %v1918, %v2102
      %v2104 = vpop.f32.mrb[0].mxu0
      %2105 = vmatprep.mubr.f32.mxu0 0.0
      %2106 = vmatmul.mubr.f32.gmra.mrb[0].mxu0 %v1936
      %v2107 = vpop.f32.mrb[0].mxu0
      %v2108 = vadd.f32 %v1918, %v2107
      %v2109 = vpop.f32.mrb[0].mxu0
      %2110 = vmatprep.mubr.f32.mxu0 0.0
      %2111 = vmatmul.mubr.f32.gmra.mrb[0].mxu0 %v1939
      %v2112 = vpop.f32.mrb[0].mxu0
      %v2113 = vadd.f32 %v1918, %v2112
      %v2114 = vpop.f32.mrb[0].mxu0
      %2115 = vmatprep.mubr.f32.mxu0 0.0
      %2116 = vmatmul.mubr.f32.gmra.mrb[0].mxu0 %v1942
      %v2117 = vpop.f32.mrb[0].mxu0
      %v2118 = vadd.f32 %v1918, %v2117
      %v2119 = vpop.f32.mrb[0].mxu0
      %2120 = vmatprep.mubr.f32.mxu0 0.0
      %2121 = vmatmul.mubr.f32.gmra.mrb[0].mxu0 %v1945
      %v2122 = vpop.f32.mrb[0].mxu0
      %v2123 = vadd.f32 %v1918, %v2122
      %v2124 = vpop.f32.mrb[0].mxu0
      %2125 = vmatprep.mubr.f32.mxu0 0.0
      %2126 = vmatmul.mubr.f32.gmra.mrb[0].mxu0 %v1948
      %v2127 = vpop.f32.mrb[0].mxu0
      %v2128 = vadd.f32 %v1918, %v2127
      %v2129 = vpop.f32.mrb[0].mxu0
      %2130 = vmatprep.mubr.f32.mxu0 0.0
      %2131 = vmatmul.mubr.f32.gmra.mrb[0].mxu0 %v1951
      %v2132 = vpop.f32.mrb[0].mxu0
      %v2133 = vadd.f32 %v1918, %v2132
      %v2134 = vpop.f32.mrb[0].mxu0
      %2135 = vmatprep.mubr.f32.mxu0 0.0
      %2136 = vmatmul.mubr.f32.gmra.mrb[0].mxu0 %v1954
      %v2137 = vpop.f32.mrb[0].mxu0
      %v2138 = vadd.f32 %v1918, %v2137
      %v2139 = vpop.f32.mrb[0].mxu0
      %2140 = vmatprep.mubr.f32.mxu0 0.0
      %2141 = vmatmul.mubr.f32.gmra.mrb[0].mxu0 %v1957
      %v2142 = vpop.f32.mrb[0].mxu0
      %v2143 = vadd.f32 %v1918, %v2142
      %v2144 = vpop.f32.mrb[0].mxu0
      %2145 = vmatprep.mubr.f32.mxu0 0.0
      %2146 = vmatmul.mubr.f32.gmra.mrb[0].mxu0 %v1960
      %v2147 = vpop.f32.mrb[0].mxu0
      %v2148 = vadd.f32 %v1918, %v2147
      %v2149 = vpop.f32.mrb[0].mxu0
      %2150 = vmatprep.mubr.f32.mxu0 0.0
      %2151 = vmatmul.mubr.f32.gmra.mrb[0].mxu0 %v1963
      %v2152 = vpop.f32.mrb[0].mxu0
      %v2153 = vadd.f32 %v1918, %v2152
      %v2154 = vpop.f32.mrb[0].mxu0
      %2155 = vmatprep.mubr.f32.mxu0 0.0
      %2156 = vmatmul.mubr.f32.gmra.mrb[0].mxu0 %v1966
      %v2157 = vpop.f32.mrb[0].mxu0
      %v2158 = vadd.f32 %v1918, %v2157
      %v2159 = vpop.f32.mrb[0].mxu0
      %2160 = vmatprep.mubr.f32.mxu0 0.0
      %2161 = vmatmul.mubr.f32.gmra.mrb[0].mxu0 %v1969
      %v2162 = vpop.f32.mrb[0].mxu0
      %v2163 = vadd.f32 %v1918, %v2162
      %v2164 = vpop.f32.mrb[0].mxu0
      %2165 = vmatprep.mubr.f32.mxu0 0.0
      %2166 = vmatmul.mubr.f32.gmra.mrb[0].mxu0 %v1972
      %v2167 = vpop.f32.mrb[0].mxu0
      %v2168 = vadd.f32 %v1918, %v2167
      %v2169 = vpop.f32.mrb[0].mxu0
      %2170 = vmatprep.mubr.f32.mxu0 0.0
      %2171 = vmatmul.mubr.f32.gmra.mrb[0].mxu0 %v1975
      %v2172 = vpop.f32.mrb[0].mxu0
      %v2173 = vadd.f32 %v1918, %v2172
      %v2174 = vpop.f32.mrb[0].mxu0
      %2175 = vmatprep.mubr.f32.mxu0 0.0
      %2176 = vmatmul.mubr.f32.gmra.mrb[0].mxu0 %v1978
      %v2177 = vpop.f32.mrb[0].mxu0
      %v2178 = vadd.f32 %v1918, %v2177
      %v2179 = vpop.f32.mrb[0].mxu0
      %2180 = vmatprep.mubr.f32.mxu0 0.0
      %2181 = vmatmul.mubr.f32.gmra.mrb[0].mxu0 %v1981
      %v2182 = vpop.f32.mrb[0].mxu0
      %v2183 = vadd.f32 %v1918, %v2182
      %v2184 = vpop.f32.mrb[0].mxu0
      %2185 = vmatprep.mubr.f32.mxu0 0.0
      %2186 = vmatmul.mubr.f32.gmra.mrb[0].mxu0 %v1984
      %v2187 = vpop.f32.mrb[0].mxu0
      %v2188 = vadd.f32 %v1918, %v2187
      %v2189 = vpop.f32.mrb[0].mxu0
      %2190 = vmatprep.mubr.f32.mxu0 0.0
      %2191 = vmatmul.mubr.f32.gmra.mrb[0].mxu0 %v1987
      %v2192 = vpop.f32.mrb[0].mxu0
      %v2193 = vadd.f32 %v1918, %v2192
      %v2194 = vpop.f32.mrb[0].mxu0
      %2195 = vmatprep.mubr.f32.mxu0 0.0
      %2196 = vmatmul.mubr.f32.gmra.mrb[0].mxu0 %v1990
      %v2197 = vpop.f32.mrb[0].mxu0
      %v2198 = vadd.f32 %v1918, %v2197
      %v2199 = vpop.f32.mrb[0].mxu0
      %2200 = vmatprep.mubr.f32.mxu0 0.0
      %2201 = vmatmul.mubr.f32.gmra.mrb[0].mxu0 %v1993
      %v2202 = vpop.f32.mrb[0].mxu0
      %v2203 = vadd.f32 %v1918, %v2202
      %v2204 = vpop.f32.mrb[0].mxu0
      %2205 = vmatprep.mubr.f32.mxu0 0.0
      %2206 = vmatmul.mubr.f32.gmra.mrb[0].mxu0 %v1996
      %v2207 = vpop.f32.mrb[0].mxu0
      %v2208 = vadd.f32 %v1918, %v2207
      %v2209 = vpop.f32.mrb[0].mxu0
      %2210 = vmatprep.mubr.f32.mxu0 0.0
      %2211 = vmatmul.mubr.f32.gmra.mrb[0].mxu0 %v1999
      %v2212 = vpop.f32.mrb[0].mxu0
      %v2213 = vadd.f32 %v1918, %v2212
      %v2214 = vpop.f32.mrb[0].mxu0
      %2215 = vmatprep.mubr.f32.mxu0 0.0
      %2216 = vmatmul.mubr.f32.gmra.mrb[0].mxu0 %v2002
      %v2217 = vpop.f32.mrb[0].mxu0
      %v2218 = vadd.f32 %v1918, %v2217
      %v2219 = vpop.f32.mrb[0].mxu0
      %2220 = vmatprep.mubr.f32.mxu0 0.0
      %2221 = vmatmul.mubr.f32.gmra.mrb[0].mxu0 %v2005
      %v2222 = vpop.f32.mrb[0].mxu0
      %v2223 = vadd.f32 %v1918, %v2222
      %v2224 = vpop.f32.mrb[0].mxu0
      %2225 = vmatprep.mubr.f32.mxu0 0.0
      %2226 = vmatmul.mubr.f32.gmra.mrb[0].mxu0 %v2008
      %v2227 = vpop.f32.mrb[0].mxu0
      %v2228 = vadd.f32 %v1918, %v2227
      %v2229 = vpop.f32.mrb[0].mxu0
      %2230 = vmatprep.mubr.f32.mxu0 0.0
      %2231 = vmatmul.mubr.f32.gmra.mrb[0].mxu0 %v2011
      %v2232 = vpop.f32.mrb[0].mxu0
      %v2233 = vadd.f32 %v1918, %v2232
      %v2234 = vpop.f32.mrb[0].mxu0
      %2235 = vmatprep.mubr.f32.mxu0 0.0
      %2236 = vmatmul.mubr.f32.gmra.mrb[0].mxu0 %v2014
      %v2237 = vpop.f32.mrb[0].mxu0
      %v2238 = vadd.f32 %v1918, %v2237
      %v2239 = vpop.f32.mrb[0].mxu0
      %2240 = vdwg.mxu0
      %v2241 = vxor.u32 %v2083, 2147483648
      %v2242 = vxor.u32 %v2088, 2147483648
      %v2243 = vxor.u32 %v2093, 2147483648
      %v2244 = vxor.u32 %v2098, 2147483648
      %v2245 = vxor.u32 %v2103, 2147483648
      %v2246 = vxor.u32 %v2108, 2147483648
      %v2247 = vxor.u32 %v2113, 2147483648
      %v2248 = vxor.u32 %v2118, 2147483648
      %v2249 = vxor.u32 %v2123, 2147483648
      %v2250 = vxor.u32 %v2128, 2147483648
      %v2251 = vxor.u32 %v2133, 2147483648
      %v2252 = vxor.u32 %v2138, 2147483648
      %v2253 = vxor.u32 %v2143, 2147483648
      %v2254 = vxor.u32 %v2148, 2147483648
      %v2255 = vxor.u32 %v2153, 2147483648
      %v2256 = vxor.u32 %v2158, 2147483648
      %v2257 = vxor.u32 %v2163, 2147483648
      %v2258 = vxor.u32 %v2168, 2147483648
      %v2259 = vxor.u32 %v2173, 2147483648
      %v2260 = vxor.u32 %v2178, 2147483648
      %v2261 = vxor.u32 %v2183, 2147483648
      %v2262 = vxor.u32 %v2188, 2147483648
      %v2263 = vxor.u32 %v2193, 2147483648
      %v2264 = vxor.u32 %v2198, 2147483648
      %v2265 = vxor.u32 %v2203, 2147483648
      %v2266 = vxor.u32 %v2208, 2147483648
      %v2267 = vxor.u32 %v2213, 2147483648
      %v2268 = vxor.u32 %v2218, 2147483648
      %v2269 = vxor.u32 %v2223, 2147483648
      %v2270 = vxor.u32 %v2228, 2147483648
      %v2271 = vxor.u32 %v2233, 2147483648
      %v2272 = vxor.u32 %v2238, 2147483648
      %v2273 = vmul.f32 %v2241, 1.442695
      %v2274 = vpow.pop %v2273
      %v2275 = vmul.f32 %v2242, 1.442695
      %v2276 = vpow.pop %v2275
      %v2277 = vmul.f32 %v2243, 1.442695
      %v2278 = vpow.pop %v2277
      %v2279 = vmul.f32 %v2244, 1.442695
      %v2280 = vpow.pop %v2279
      %v2281 = vmul.f32 %v2245, 1.442695
      %v2282 = vpow.pop %v2281
      %v2283 = vmul.f32 %v2246, 1.442695
      %v2284 = vpow.pop %v2283
      %v2285 = vmul.f32 %v2247, 1.442695
      %v2286 = vpow.pop %v2285
      %v2287 = vmul.f32 %v2248, 1.442695
      %v2288 = vpow.pop %v2287
      %v2289 = vmul.f32 %v2249, 1.442695
      %v2290 = vpow.pop %v2289
      %v2291 = vmul.f32 %v2250, 1.442695
      %v2292 = vpow.pop %v2291
      %v2293 = vmul.f32 %v2251, 1.442695
      %v2294 = vpow.pop %v2293
      %v2295 = vmul.f32 %v2252, 1.442695
      %v2296 = vpow.pop %v2295
      %v2297 = vmul.f32 %v2253, 1.442695
      %v2298 = vpow.pop %v2297
      %v2299 = vmul.f32 %v2254, 1.442695
      %v2300 = vpow.pop %v2299
      %v2301 = vmul.f32 %v2255, 1.442695
      %v2302 = vpow.pop %v2301
      %v2303 = vmul.f32 %v2256, 1.442695
      %v2304 = vpow.pop %v2303
      %v2305 = vmul.f32 %v2257, 1.442695
      %v2306 = vpow.pop %v2305
      %v2307 = vmul.f32 %v2258, 1.442695
      %v2308 = vpow.pop %v2307
      %v2309 = vmul.f32 %v2259, 1.442695
      %v2310 = vpow.pop %v2309
      %v2311 = vmul.f32 %v2260, 1.442695
      %v2312 = vpow.pop %v2311
      %v2313 = vmul.f32 %v2261, 1.442695
      %v2314 = vpow.pop %v2313
      %v2315 = vmul.f32 %v2262, 1.442695
      %v2316 = vpow.pop %v2315
      %v2317 = vmul.f32 %v2263, 1.442695
      %v2318 = vpow.pop %v2317
      %v2319 = vmul.f32 %v2264, 1.442695
      %v2320 = vpow.pop %v2319
      %v2321 = vmul.f32 %v2265, 1.442695
      %v2322 = vpow.pop %v2321
      %v2323 = vmul.f32 %v2266, 1.442695
      %v2324 = vpow.pop %v2323
      %v2325 = vmul.f32 %v2267, 1.442695
      %v2326 = vpow.pop %v2325
      %v2327 = vmul.f32 %v2268, 1.442695
      %v2328 = vpow.pop %v2327
      %v2329 = vmul.f32 %v2269, 1.442695
      %v2330 = vpow.pop %v2329
      %v2331 = vmul.f32 %v2270, 1.442695
      %v2332 = vpow.pop %v2331
      %v2333 = vmul.f32 %v2271, 1.442695
      %v2334 = vpow.pop %v2333
      %v2335 = vmul.f32 %v2272, 1.442695
      %v2336 = vpow.pop %v2335
      %v2337 = vadd.f32 %v2274, 1.0
      %v2338 = vadd.f32 %v2276, 1.0
      %v2339 = vadd.f32 %v2278, 1.0
      %v2340 = vadd.f32 %v2280, 1.0
      %v2341 = vadd.f32 %v2282, 1.0
      %v2342 = vadd.f32 %v2284, 1.0
      %v2343 = vadd.f32 %v2286, 1.0
      %v2344 = vadd.f32 %v2288, 1.0
      %v2345 = vadd.f32 %v2290, 1.0
      %v2346 = vadd.f32 %v2292, 1.0
      %v2347 = vadd.f32 %v2294, 1.0
      %v2348 = vadd.f32 %v2296, 1.0
      %v2349 = vadd.f32 %v2298, 1.0
      %v2350 = vadd.f32 %v2300, 1.0
      %v2351 = vadd.f32 %v2302, 1.0
      %v2352 = vadd.f32 %v2304, 1.0
      %v2353 = vadd.f32 %v2306, 1.0
      %v2354 = vadd.f32 %v2308, 1.0
      %v2355 = vadd.f32 %v2310, 1.0
      %v2356 = vadd.f32 %v2312, 1.0
      %v2357 = vadd.f32 %v2314, 1.0
      %v2358 = vadd.f32 %v2316, 1.0
      %v2359 = vadd.f32 %v2318, 1.0
      %v2360 = vadd.f32 %v2320, 1.0
      %v2361 = vadd.f32 %v2322, 1.0
      %v2362 = vadd.f32 %v2324, 1.0
      %v2363 = vadd.f32 %v2326, 1.0
      %v2364 = vadd.f32 %v2328, 1.0
      %v2365 = vadd.f32 %v2330, 1.0
      %v2366 = vadd.f32 %v2332, 1.0
      %v2367 = vadd.f32 %v2334, 1.0
      %v2368 = vadd.f32 %v2336, 1.0
      %v2369 = vrcp.pop %v2337
      %v2370 = vmul.f32 1.0, %v2369
      %v2371 = vrcp.pop %v2338
      %v2372 = vmul.f32 1.0, %v2371
      %v2373 = vrcp.pop %v2339
      %v2374 = vmul.f32 1.0, %v2373
      %v2375 = vrcp.pop %v2340
      %v2376 = vmul.f32 1.0, %v2375
      %v2377 = vrcp.pop %v2341
      %v2378 = vmul.f32 1.0, %v2377
      %v2379 = vrcp.pop %v2342
      %v2380 = vmul.f32 1.0, %v2379
      %v2381 = vrcp.pop %v2343
      %v2382 = vmul.f32 1.0, %v2381
      %v2383 = vrcp.pop %v2344
      %v2384 = vmul.f32 1.0, %v2383
      %v2385 = vrcp.pop %v2345
      %v2386 = vmul.f32 1.0, %v2385
      %v2387 = vrcp.pop %v2346
      %v2388 = vmul.f32 1.0, %v2387
      %v2389 = vrcp.pop %v2347
      %v2390 = vmul.f32 1.0, %v2389
      %v2391 = vrcp.pop %v2348
      %v2392 = vmul.f32 1.0, %v2391
      %v2393 = vrcp.pop %v2349
      %v2394 = vmul.f32 1.0, %v2393
      %v2395 = vrcp.pop %v2350
      %v2396 = vmul.f32 1.0, %v2395
      %v2397 = vrcp.pop %v2351
      %v2398 = vmul.f32 1.0, %v2397
      %v2399 = vrcp.pop %v2352
      %v2400 = vmul.f32 1.0, %v2399
      %v2401 = vrcp.pop %v2353
      %v2402 = vmul.f32 1.0, %v2401
      %v2403 = vrcp.pop %v2354
      %v2404 = vmul.f32 1.0, %v2403
      %v2405 = vrcp.pop %v2355
      %v2406 = vmul.f32 1.0, %v2405
      %v2407 = vrcp.pop %v2356
      %v2408 = vmul.f32 1.0, %v2407
      %v2409 = vrcp.pop %v2357
      %v2410 = vmul.f32 1.0, %v2409
      %v2411 = vrcp.pop %v2358
      %v2412 = vmul.f32 1.0, %v2411
      %v2413 = vrcp.pop %v2359
      %v2414 = vmul.f32 1.0, %v2413
      %v2415 = vrcp.pop %v2360
      %v2416 = vmul.f32 1.0, %v2415
      %v2417 = vrcp.pop %v2361
      %v2418 = vmul.f32 1.0, %v2417
      %v2419 = vrcp.pop %v2362
      %v2420 = vmul.f32 1.0, %v2419
      %v2421 = vrcp.pop %v2363
      %v2422 = vmul.f32 1.0, %v2421
      %v2423 = vrcp.pop %v2364
      %v2424 = vmul.f32 1.0, %v2423
      %v2425 = vrcp.pop %v2365
      %v2426 = vmul.f32 1.0, %v2425
      %v2427 = vrcp.pop %v2366
      %v2428 = vmul.f32 1.0, %v2427
      %v2429 = vrcp.pop %v2367
      %v2430 = vmul.f32 1.0, %v2429
      %v2431 = vrcp.pop %v2368
      %v2432 = vmul.f32 1.0, %v2431
      %2465 = vrot.lane.b32.xlu0 %v2370, 96
      %v2466 = vpop.permute.xlu0 %2465
      %2467 = vrot.lane.b32.xlu0 %v2372, 96
      %v2468 = vpop.permute.xlu0 %2467
      %2469 = vrot.lane.b32.xlu0 %v2374, 96
      %v2470 = vpop.permute.xlu0 %2469
      %2471 = vrot.lane.b32.xlu0 %v2376, 96
      %v2472 = vpop.permute.xlu0 %2471
      %2473 = vrot.lane.b32.xlu0 %v2378, 96
      %v2474 = vpop.permute.xlu0 %2473
      %2475 = vrot.lane.b32.xlu0 %v2380, 96
      %v2476 = vpop.permute.xlu0 %2475
      %2477 = vrot.lane.b32.xlu0 %v2382, 96
      %v2478 = vpop.permute.xlu0 %2477
      %2479 = vrot.lane.b32.xlu0 %v2384, 96
      %v2480 = vpop.permute.xlu0 %2479
      %2481 = vrot.lane.b32.xlu0 %v2386, 96
      %v2482 = vpop.permute.xlu0 %2481
      %2483 = vrot.lane.b32.xlu0 %v2388, 96
      %v2484 = vpop.permute.xlu0 %2483
      %2485 = vrot.lane.b32.xlu0 %v2390, 96
      %v2486 = vpop.permute.xlu0 %2485
      %2487 = vrot.lane.b32.xlu0 %v2392, 96
      %v2488 = vpop.permute.xlu0 %2487
      %2489 = vrot.lane.b32.xlu0 %v2394, 96
      %v2490 = vpop.permute.xlu0 %2489
      %2491 = vrot.lane.b32.xlu0 %v2396, 96
      %v2492 = vpop.permute.xlu0 %2491
      %2493 = vrot.lane.b32.xlu0 %v2398, 96
      %v2494 = vpop.permute.xlu0 %2493
      %2495 = vrot.lane.b32.xlu0 %v2400, 96
      %v2496 = vpop.permute.xlu0 %2495
      %2497 = vrot.lane.b32.xlu0 %v2402, 96
      %v2498 = vpop.permute.xlu0 %2497
      %2499 = vrot.lane.b32.xlu0 %v2404, 96
      %v2500 = vpop.permute.xlu0 %2499
      %2501 = vrot.lane.b32.xlu0 %v2406, 96
      %v2502 = vpop.permute.xlu0 %2501
      %2503 = vrot.lane.b32.xlu0 %v2408, 96
      %v2504 = vpop.permute.xlu0 %2503
      %2505 = vrot.lane.b32.xlu0 %v2410, 96
      %v2506 = vpop.permute.xlu0 %2505
      %2507 = vrot.lane.b32.xlu0 %v2412, 96
      %v2508 = vpop.permute.xlu0 %2507
      %2509 = vrot.lane.b32.xlu0 %v2414, 96
      %v2510 = vpop.permute.xlu0 %2509
      %2511 = vrot.lane.b32.xlu0 %v2416, 96
      %v2512 = vpop.permute.xlu0 %2511
      %2513 = vrot.lane.b32.xlu0 %v2418, 96
      %v2514 = vpop.permute.xlu0 %2513
      %2515 = vrot.lane.b32.xlu0 %v2420, 96
      %v2516 = vpop.permute.xlu0 %2515
      %2517 = vrot.lane.b32.xlu0 %v2422, 96
      %v2518 = vpop.permute.xlu0 %2517
      %2519 = vrot.lane.b32.xlu0 %v2424, 96
      %v2520 = vpop.permute.xlu0 %2519
      %2521 = vrot.lane.b32.xlu0 %v2426, 96
      %v2522 = vpop.permute.xlu0 %2521
      %2523 = vrot.lane.b32.xlu0 %v2428, 96
      %v2524 = vpop.permute.xlu0 %2523
      %2525 = vrot.lane.b32.xlu0 %v2430, 96
      %v2526 = vpop.permute.xlu0 %2525
      %2527 = vrot.lane.b32.xlu0 %v2432, 96
      %v2528 = vpop.permute.xlu0 %2527
      %v2561 = vmul.f32 %v2083, %v2466
      %v2562 = vmul.f32 %v2088, %v2468
      %v2563 = vmul.f32 %v2093, %v2470
      %v2564 = vmul.f32 %v2098, %v2472
      %v2565 = vmul.f32 %v2103, %v2474
      %v2566 = vmul.f32 %v2108, %v2476
      %v2567 = vmul.f32 %v2113, %v2478
      %v2568 = vmul.f32 %v2118, %v2480
      %v2569 = vmul.f32 %v2123, %v2482
      %v2570 = vmul.f32 %v2128, %v2484
      %v2571 = vmul.f32 %v2133, %v2486
      %v2572 = vmul.f32 %v2138, %v2488
      %v2573 = vmul.f32 %v2143, %v2490
      %v2574 = vmul.f32 %v2148, %v2492
      %v2575 = vmul.f32 %v2153, %v2494
      %v2576 = vmul.f32 %v2158, %v2496
      %v2577 = vmul.f32 %v2163, %v2498
      %v2578 = vmul.f32 %v2168, %v2500
      %v2579 = vmul.f32 %v2173, %v2502
      %v2580 = vmul.f32 %v2178, %v2504
      %v2581 = vmul.f32 %v2183, %v2506
      %v2582 = vmul.f32 %v2188, %v2508
      %v2583 = vmul.f32 %v2193, %v2510
      %v2584 = vmul.f32 %v2198, %v2512
      %v2585 = vmul.f32 %v2203, %v2514
      %v2586 = vmul.f32 %v2208, %v2516
      %v2587 = vmul.f32 %v2213, %v2518
      %v2588 = vmul.f32 %v2218, %v2520
      %v2589 = vmul.f32 %v2223, %v2522
      %v2590 = vmul.f32 %v2228, %v2524
      %v2591 = vmul.f32 %v2233, %v2526
      %v2592 = vmul.f32 %v2238, %v2528
      %v2593 = vadd.f32 %v1483, %v2561
      %v2594 = vadd.f32 %v1484, %v2562
      %v2595 = vadd.f32 %v1485, %v2563
      %v2596 = vadd.f32 %v1486, %v2564
      %v2597 = vadd.f32 %v1487, %v2565
      %v2598 = vadd.f32 %v1488, %v2566
      %v2599 = vadd.f32 %v1489, %v2567
      %v2600 = vadd.f32 %v1490, %v2568
      %v2601 = vadd.f32 %v1491, %v2569
      %v2602 = vadd.f32 %v1492, %v2570
      %v2603 = vadd.f32 %v1493, %v2571
      %v2604 = vadd.f32 %v1494, %v2572
      %v2605 = vadd.f32 %v1495, %v2573
      %v2606 = vadd.f32 %v1496, %v2574
      %v2607 = vadd.f32 %v1497, %v2575
      %v2608 = vadd.f32 %v1498, %v2576
      %v2609 = vadd.f32 %v1499, %v2577
      %v2610 = vadd.f32 %v1500, %v2578
      %v2611 = vadd.f32 %v1501, %v2579
      %v2612 = vadd.f32 %v1502, %v2580
      %v2613 = vadd.f32 %v1503, %v2581
      %v2614 = vadd.f32 %v1504, %v2582
      %v2615 = vadd.f32 %v1505, %v2583
      %v2616 = vadd.f32 %v1506, %v2584
      %v2617 = vadd.f32 %v1507, %v2585
      %v2618 = vadd.f32 %v1508, %v2586
      %v2619 = vadd.f32 %v1509, %v2587
      %v2620 = vadd.f32 %v1510, %v2588
      %v2621 = vadd.f32 %v1511, %v2589
      %v2622 = vadd.f32 %v1512, %v2590
      %v2623 = vadd.f32 %v1513, %v2591
      %v2624 = vadd.f32 %v1514, %v2592
      %v2625 = vmul.f32 %v2593, 0.70710677
      %v2626 = vmul.f32 %v2594, 0.70710677
      %v2627 = vmul.f32 %v2595, 0.70710677
      %v2628 = vmul.f32 %v2596, 0.70710677
      %v2629 = vmul.f32 %v2597, 0.70710677
      %v2630 = vmul.f32 %v2598, 0.70710677
      %v2631 = vmul.f32 %v2599, 0.70710677
      %v2632 = vmul.f32 %v2600, 0.70710677
      %v2633 = vmul.f32 %v2601, 0.70710677
      %v2634 = vmul.f32 %v2602, 0.70710677
      %v2635 = vmul.f32 %v2603, 0.70710677
      %v2636 = vmul.f32 %v2604, 0.70710677
      %v2637 = vmul.f32 %v2605, 0.70710677
      %v2638 = vmul.f32 %v2606, 0.70710677
      %v2639 = vmul.f32 %v2607, 0.70710677
      %v2640 = vmul.f32 %v2608, 0.70710677
      %v2641 = vmul.f32 %v2609, 0.70710677
      %v2642 = vmul.f32 %v2610, 0.70710677
      %v2643 = vmul.f32 %v2611, 0.70710677
      %v2644 = vmul.f32 %v2612, 0.70710677
      %v2645 = vmul.f32 %v2613, 0.70710677
      %v2646 = vmul.f32 %v2614, 0.70710677
      %v2647 = vmul.f32 %v2615, 0.70710677
      %v2648 = vmul.f32 %v2616, 0.70710677
      %v2649 = vmul.f32 %v2617, 0.70710677
      %v2650 = vmul.f32 %v2618, 0.70710677
      %v2651 = vmul.f32 %v2619, 0.70710677
      %v2652 = vmul.f32 %v2620, 0.70710677
      %v2653 = vmul.f32 %v2621, 0.70710677
      %v2654 = vmul.f32 %v2622, 0.70710677
      %v2655 = vmul.f32 %v2623, 0.70710677
      %v2656 = vmul.f32 %v2624, 0.70710677
      %2657 = vst.msk [vmem:[#allocation2 + $0x8] sm:$0xff] %vm179, %v2625
      %2658 = vst.msk [vmem:[#allocation2 + $0x10] sm:$0xff] %vm179, %v2626
      %2659 = vst.msk [vmem:[#allocation2 + $0x28] sm:$0xff] %vm179, %v2627
      %2660 = vst.msk [vmem:[#allocation2 + $0x30] sm:$0xff] %vm179, %v2628
      %2661 = vst.msk [vmem:[#allocation2 + $0x48] sm:$0xff] %vm179, %v2629
      %2662 = vst.msk [vmem:[#allocation2 + $0x50] sm:$0xff] %vm179, %v2630
      %2663 = vst.msk [vmem:[#allocation2 + $0x68] sm:$0xff] %vm179, %v2631
      %2664 = vst.msk [vmem:[#allocation2 + $0x70] sm:$0xff] %vm179, %v2632
      %2665 = vst.msk [vmem:[#allocation2 + $0x88] sm:$0xff] %vm179, %v2633
      %2666 = vst.msk [vmem:[#allocation2 + $0x90] sm:$0xff] %vm179, %v2634
      %2667 = vst.msk [vmem:[#allocation2 + $0xa8] sm:$0xff] %vm179, %v2635
      %2668 = vst.msk [vmem:[#allocation2 + $0xb0] sm:$0xff] %vm179, %v2636
      %2669 = vst.msk [vmem:[#allocation2 + $0xc8] sm:$0xff] %vm179, %v2637
      %2670 = vst.msk [vmem:[#allocation2 + $0xd0] sm:$0xff] %vm179, %v2638
      %2671 = vst.msk [vmem:[#allocation2 + $0xe8] sm:$0xff] %vm179, %v2639
      %2672 = vst.msk [vmem:[#allocation2 + $0xf0] sm:$0xff] %vm179, %v2640
      %2673 = vst.msk [vmem:[#allocation2 + $0x108] sm:$0xff] %vm179, %v2641
      %2674 = vst.msk [vmem:[#allocation2 + $0x110] sm:$0xff] %vm179, %v2642
      %2675 = vst.msk [vmem:[#allocation2 + $0x128] sm:$0xff] %vm179, %v2643
      %2676 = vst.msk [vmem:[#allocation2 + $0x130] sm:$0xff] %vm179, %v2644
      %2677 = vst.msk [vmem:[#allocation2 + $0x148] sm:$0xff] %vm179, %v2645
      %2678 = vst.msk [vmem:[#allocation2 + $0x150] sm:$0xff] %vm179, %v2646
      %2679 = vst.msk [vmem:[#allocation2 + $0x168] sm:$0xff] %vm179, %v2647
      %2680 = vst.msk [vmem:[#allocation2 + $0x170] sm:$0xff] %vm179, %v2648
      %2681 = vst.msk [vmem:[#allocation2 + $0x188] sm:$0xff] %vm179, %v2649
      %2682 = vst.msk [vmem:[#allocation2 + $0x190] sm:$0xff] %vm179, %v2650
      %2683 = vst.msk [vmem:[#allocation2 + $0x1a8] sm:$0xff] %vm179, %v2651
      %2684 = vst.msk [vmem:[#allocation2 + $0x1b0] sm:$0xff] %vm179, %v2652
      %2685 = vst.msk [vmem:[#allocation2 + $0x1c8] sm:$0xff] %vm179, %v2653
      %2686 = vst.msk [vmem:[#allocation2 + $0x1d0] sm:$0xff] %vm179, %v2654
      %2687 = vst.msk [vmem:[#allocation2 + $0x1e8] sm:$0xff] %vm179, %v2655
      %2688 = vst.msk [vmem:[#allocation2 + $0x1f0] sm:$0xff] %vm179, %v2656
      %v2689 = vld [vmem:[#allocation2 + $0x8] sm:$0xff]
      %v2690 = vld [vmem:[#allocation2 + $0x10] sm:$0xff]
      %v2691 = vld [vmem:[#allocation2 + $0x28] sm:$0xff]
      %v2692 = vld [vmem:[#allocation2 + $0x30] sm:$0xff]
      %v2693 = vld [vmem:[#allocation2 + $0x48] sm:$0xff]
      %v2694 = vld [vmem:[#allocation2 + $0x50] sm:$0xff]
      %v2695 = vld [vmem:[#allocation2 + $0x68] sm:$0xff]
      %v2696 = vld [vmem:[#allocation2 + $0x70] sm:$0xff]
      %v2697 = vld [vmem:[#allocation2 + $0x88] sm:$0xff]
      %v2698 = vld [vmem:[#allocation2 + $0x90] sm:$0xff]
      %v2699 = vld [vmem:[#allocation2 + $0xa8] sm:$0xff]
      %v2700 = vld [vmem:[#allocation2 + $0xb0] sm:$0xff]
      %v2701 = vld [vmem:[#allocation2 + $0xc8] sm:$0xff]
      %v2702 = vld [vmem:[#allocation2 + $0xd0] sm:$0xff]
      %v2703 = vld [vmem:[#allocation2 + $0xe8] sm:$0xff]
      %v2704 = vld [vmem:[#allocation2 + $0xf0] sm:$0xff]
      %v2705 = vld [vmem:[#allocation2 + $0x108] sm:$0xff]
      %v2706 = vld [vmem:[#allocation2 + $0x110] sm:$0xff]
      %v2707 = vld [vmem:[#allocation2 + $0x128] sm:$0xff]
      %v2708 = vld [vmem:[#allocation2 + $0x130] sm:$0xff]
      %v2709 = vld [vmem:[#allocation2 + $0x148] sm:$0xff]
      %v2710 = vld [vmem:[#allocation2 + $0x150] sm:$0xff]
      %v2711 = vld [vmem:[#allocation2 + $0x168] sm:$0xff]
      %v2712 = vld [vmem:[#allocation2 + $0x170] sm:$0xff]
      %v2713 = vld [vmem:[#allocation2 + $0x188] sm:$0xff]
      %v2714 = vld [vmem:[#allocation2 + $0x190] sm:$0xff]
      %v2715 = vld [vmem:[#allocation2 + $0x1a8] sm:$0xff]
      %v2716 = vld [vmem:[#allocation2 + $0x1b0] sm:$0xff]
      %v2717 = vld [vmem:[#allocation2 + $0x1c8] sm:$0xff]
      %v2718 = vld [vmem:[#allocation2 + $0x1d0] sm:$0xff]
      %v2719 = vld [vmem:[#allocation2 + $0x1e8] sm:$0xff]
      %v2720 = vld [vmem:[#allocation2 + $0x1f0] sm:$0xff]
      %v2721 = vld [vmem:[#allocation2 + $0x4] sm:$0xff]
      %v2722 = vld [vmem:[#allocation2 + $0xc] sm:$0xff]
      %v2723 = vld [vmem:[#allocation2 + $0x24] sm:$0xff]
      %v2724 = vld [vmem:[#allocation2 + $0x2c] sm:$0xff]
      %v2725 = vld [vmem:[#allocation2 + $0x44] sm:$0xff]
      %v2726 = vld [vmem:[#allocation2 + $0x4c] sm:$0xff]
      %v2727 = vld [vmem:[#allocation2 + $0x64] sm:$0xff]
      %v2728 = vld [vmem:[#allocation2 + $0x6c] sm:$0xff]
      %v2729 = vld [vmem:[#allocation2 + $0x84] sm:$0xff]
      %v2730 = vld [vmem:[#allocation2 + $0x8c] sm:$0xff]
      %v2731 = vld [vmem:[#allocation2 + $0xa4] sm:$0xff]
      %v2732 = vld [vmem:[#allocation2 + $0xac] sm:$0xff]
      %v2733 = vld [vmem:[#allocation2 + $0xc4] sm:$0xff]
      %v2734 = vld [vmem:[#allocation2 + $0xcc] sm:$0xff]
      %v2735 = vld [vmem:[#allocation2 + $0xe4] sm:$0xff]
      %v2736 = vld [vmem:[#allocation2 + $0xec] sm:$0xff]
      %v2737 = vld [vmem:[#allocation2 + $0x104] sm:$0xff]
      %v2738 = vld [vmem:[#allocation2 + $0x10c] sm:$0xff]
      %v2739 = vld [vmem:[#allocation2 + $0x124] sm:$0xff]
      %v2740 = vld [vmem:[#allocation2 + $0x12c] sm:$0xff]
      %v2741 = vld [vmem:[#allocation2 + $0x144] sm:$0xff]
      %v2742 = vld [vmem:[#allocation2 + $0x14c] sm:$0xff]
      %v2743 = vld [vmem:[#allocation2 + $0x164] sm:$0xff]
      %v2744 = vld [vmem:[#allocation2 + $0x16c] sm:$0xff]
      %v2745 = vld [vmem:[#allocation2 + $0x184] sm:$0xff]
      %v2746 = vld [vmem:[#allocation2 + $0x18c] sm:$0xff]
      %v2747 = vld [vmem:[#allocation2 + $0x1a4] sm:$0xff]
      %v2748 = vld [vmem:[#allocation2 + $0x1ac] sm:$0xff]
      %v2749 = vld [vmem:[#allocation2 + $0x1c4] sm:$0xff]
      %v2750 = vld [vmem:[#allocation2 + $0x1cc] sm:$0xff]
      %v2751 = vld [vmem:[#allocation2 + $0x1e4] sm:$0xff]
      %v2752 = vld [vmem:[#allocation2 + $0x1ec] sm:$0xff]
      %v2753 = vld [vmem:[#allocation2 + $0x14] sm:$0xff]
      %v2754 = vld [vmem:[#allocation2 + $0x34] sm:$0xff]
      %v2755 = vld [vmem:[#allocation2 + $0x54] sm:$0xff]
      %v2756 = vld [vmem:[#allocation2 + $0x74] sm:$0xff]
      %v2757 = vld [vmem:[#allocation2 + $0x94] sm:$0xff]
      %v2758 = vld [vmem:[#allocation2 + $0xb4] sm:$0xff]
      %v2759 = vld [vmem:[#allocation2 + $0xd4] sm:$0xff]
      %v2760 = vld [vmem:[#allocation2 + $0xf4] sm:$0xff]
      %v2761 = vld [vmem:[#allocation2 + $0x114] sm:$0xff]
      %v2762 = vld [vmem:[#allocation2 + $0x134] sm:$0xff]
      %v2763 = vld [vmem:[#allocation2 + $0x154] sm:$0xff]
      %v2764 = vld [vmem:[#allocation2 + $0x174] sm:$0xff]
      %v2765 = vld [vmem:[#allocation2 + $0x194] sm:$0xff]
      %v2766 = vld [vmem:[#allocation2 + $0x1b4] sm:$0xff]
      %v2767 = vld [vmem:[#allocation2 + $0x1d4] sm:$0xff]
      %v2768 = vld [vmem:[#allocation2 + $0x1f4] sm:$0xff]
      %2801 = vrot.lane.b32.xlu0 %v2689, 32
      %v2802 = vpop.permute.xlu0 %2801
      %2803 = vrot.lane.b32.xlu0 %v2690, 32
      %v2804 = vpop.permute.xlu0 %2803
      %2805 = vrot.lane.b32.xlu0 %v2691, 32
      %v2806 = vpop.permute.xlu0 %2805
      %2807 = vrot.lane.b32.xlu0 %v2692, 32
      %v2808 = vpop.permute.xlu0 %2807
      %2809 = vrot.lane.b32.xlu0 %v2693, 32
      %v2810 = vpop.permute.xlu0 %2809
      %2811 = vrot.lane.b32.xlu0 %v2694, 32
      %v2812 = vpop.permute.xlu0 %2811
      %2813 = vrot.lane.b32.xlu0 %v2695, 32
      %v2814 = vpop.permute.xlu0 %2813
      %2815 = vrot.lane.b32.xlu0 %v2696, 32
      %v2816 = vpop.permute.xlu0 %2815
      %2817 = vrot.lane.b32.xlu0 %v2697, 32
      %v2818 = vpop.permute.xlu0 %2817
      %2819 = vrot.lane.b32.xlu0 %v2698, 32
      %v2820 = vpop.permute.xlu0 %2819
      %2821 = vrot.lane.b32.xlu0 %v2699, 32
      %v2822 = vpop.permute.xlu0 %2821
      %2823 = vrot.lane.b32.xlu0 %v2700, 32
      %v2824 = vpop.permute.xlu0 %2823
      %2825 = vrot.lane.b32.xlu0 %v2701, 32
      %v2826 = vpop.permute.xlu0 %2825
      %2827 = vrot.lane.b32.xlu0 %v2702, 32
      %v2828 = vpop.permute.xlu0 %2827
      %2829 = vrot.lane.b32.xlu0 %v2703, 32
      %v2830 = vpop.permute.xlu0 %2829
      %2831 = vrot.lane.b32.xlu0 %v2704, 32
      %v2832 = vpop.permute.xlu0 %2831
      %2833 = vrot.lane.b32.xlu0 %v2705, 32
      %v2834 = vpop.permute.xlu0 %2833
      %2835 = vrot.lane.b32.xlu0 %v2706, 32
      %v2836 = vpop.permute.xlu0 %2835
      %2837 = vrot.lane.b32.xlu0 %v2707, 32
      %v2838 = vpop.permute.xlu0 %2837
      %2839 = vrot.lane.b32.xlu0 %v2708, 32
      %v2840 = vpop.permute.xlu0 %2839
      %2841 = vrot.lane.b32.xlu0 %v2709, 32
      %v2842 = vpop.permute.xlu0 %2841
      %2843 = vrot.lane.b32.xlu0 %v2710, 32
      %v2844 = vpop.permute.xlu0 %2843
      %2845 = vrot.lane.b32.xlu0 %v2711, 32
      %v2846 = vpop.permute.xlu0 %2845
      %2847 = vrot.lane.b32.xlu0 %v2712, 32
      %v2848 = vpop.permute.xlu0 %2847
      %2849 = vrot.lane.b32.xlu0 %v2713, 32
      %v2850 = vpop.permute.xlu0 %2849
      %2851 = vrot.lane.b32.xlu0 %v2714, 32
      %v2852 = vpop.permute.xlu0 %2851
      %2853 = vrot.lane.b32.xlu0 %v2715, 32
      %v2854 = vpop.permute.xlu0 %2853
      %2855 = vrot.lane.b32.xlu0 %v2716, 32
      %v2856 = vpop.permute.xlu0 %2855
      %2857 = vrot.lane.b32.xlu0 %v2717, 32
      %v2858 = vpop.permute.xlu0 %2857
      %2859 = vrot.lane.b32.xlu0 %v2718, 32
      %v2860 = vpop.permute.xlu0 %2859
      %2861 = vrot.lane.b32.xlu0 %v2719, 32
      %v2862 = vpop.permute.xlu0 %2861
      %2863 = vrot.lane.b32.xlu0 %v2720, 32
      %v2864 = vpop.permute.xlu0 %2863
      %2929 = vrot.lane.b32.xlu0 %v2722, 64
      %v2930 = vpop.permute.xlu0 %2929
      %2931 = vrot.lane.b32.xlu0 %v2753, 64
      %v2932 = vpop.permute.xlu0 %2931
      %2933 = vrot.lane.b32.xlu0 %v2724, 64
      %v2934 = vpop.permute.xlu0 %2933
      %2935 = vrot.lane.b32.xlu0 %v2754, 64
      %v2936 = vpop.permute.xlu0 %2935
      %2937 = vrot.lane.b32.xlu0 %v2726, 64
      %v2938 = vpop.permute.xlu0 %2937
      %2939 = vrot.lane.b32.xlu0 %v2755, 64
      %v2940 = vpop.permute.xlu0 %2939
      %2941 = vrot.lane.b32.xlu0 %v2728, 64
      %v2942 = vpop.permute.xlu0 %2941
      %2943 = vrot.lane.b32.xlu0 %v2756, 64
      %v2944 = vpop.permute.xlu0 %2943
      %2945 = vrot.lane.b32.xlu0 %v2730, 64
      %v2946 = vpop.permute.xlu0 %2945
      %2947 = vrot.lane.b32.xlu0 %v2757, 64
      %v2948 = vpop.permute.xlu0 %2947
      %2949 = vrot.lane.b32.xlu0 %v2732, 64
      %v2950 = vpop.permute.xlu0 %2949
      %2951 = vrot.lane.b32.xlu0 %v2758, 64
      %v2952 = vpop.permute.xlu0 %2951
      %2953 = vrot.lane.b32.xlu0 %v2734, 64
      %v2954 = vpop.permute.xlu0 %2953
      %2955 = vrot.lane.b32.xlu0 %v2759, 64
      %v2956 = vpop.permute.xlu0 %2955
      %2957 = vrot.lane.b32.xlu0 %v2736, 64
      %v2958 = vpop.permute.xlu0 %2957
      %2959 = vrot.lane.b32.xlu0 %v2760, 64
      %v2960 = vpop.permute.xlu0 %2959
      %2961 = vrot.lane.b32.xlu0 %v2738, 64
      %v2962 = vpop.permute.xlu0 %2961
      %2963 = vrot.lane.b32.xlu0 %v2761, 64
      %v2964 = vpop.permute.xlu0 %2963
      %2965 = vrot.lane.b32.xlu0 %v2740, 64
      %v2966 = vpop.permute.xlu0 %2965
      %2967 = vrot.lane.b32.xlu0 %v2762, 64
      %v2968 = vpop.permute.xlu0 %2967
      %2969 = vrot.lane.b32.xlu0 %v2742, 64
      %v2970 = vpop.permute.xlu0 %2969
      %2971 = vrot.lane.b32.xlu0 %v2763, 64
      %v2972 = vpop.permute.xlu0 %2971
      %2973 = vrot.lane.b32.xlu0 %v2744, 64
      %v2974 = vpop.permute.xlu0 %2973
      %2975 = vrot.lane.b32.xlu0 %v2764, 64
      %v2976 = vpop.permute.xlu0 %2975
      %2977 = vrot.lane.b32.xlu0 %v2746, 64
      %v2978 = vpop.permute.xlu0 %2977
      %2979 = vrot.lane.b32.xlu0 %v2765, 64
      %v2980 = vpop.permute.xlu0 %2979
      %2981 = vrot.lane.b32.xlu0 %v2748, 64
      %v2982 = vpop.permute.xlu0 %2981
      %2983 = vrot.lane.b32.xlu0 %v2766, 64
      %v2984 = vpop.permute.xlu0 %2983
      %2985 = vrot.lane.b32.xlu0 %v2750, 64
      %v2986 = vpop.permute.xlu0 %2985
      %2987 = vrot.lane.b32.xlu0 %v2767, 64
      %v2988 = vpop.permute.xlu0 %2987
      %2989 = vrot.lane.b32.xlu0 %v2752, 64
      %v2990 = vpop.permute.xlu0 %2989
      %2991 = vrot.lane.b32.xlu0 %v2768, 64
      %v2992 = vpop.permute.xlu0 %2991
      %v3025 = vsel %vm179, %v2721, %v2802
      %v3026 = vsel %vm179, %v2722, %v2804
      %v3027 = vsel %vm179, %v2723, %v2806
      %v3028 = vsel %vm179, %v2724, %v2808
      %v3029 = vsel %vm179, %v2725, %v2810
      %v3030 = vsel %vm179, %v2726, %v2812
      %v3031 = vsel %vm179, %v2727, %v2814
      %v3032 = vsel %vm179, %v2728, %v2816
      %v3033 = vsel %vm179, %v2729, %v2818
      %v3034 = vsel %vm179, %v2730, %v2820
      %v3035 = vsel %vm179, %v2731, %v2822
      %v3036 = vsel %vm179, %v2732, %v2824
      %v3037 = vsel %vm179, %v2733, %v2826
      %v3038 = vsel %vm179, %v2734, %v2828
      %v3039 = vsel %vm179, %v2735, %v2830
      %v3040 = vsel %vm179, %v2736, %v2832
      %v3041 = vsel %vm179, %v2737, %v2834
      %v3042 = vsel %vm179, %v2738, %v2836
      %v3043 = vsel %vm179, %v2739, %v2838
      %v3044 = vsel %vm179, %v2740, %v2840
      %v3045 = vsel %vm179, %v2741, %v2842
      %v3046 = vsel %vm179, %v2742, %v2844
      %v3047 = vsel %vm179, %v2743, %v2846
      %v3048 = vsel %vm179, %v2744, %v2848
      %v3049 = vsel %vm179, %v2745, %v2850
      %v3050 = vsel %vm179, %v2746, %v2852
      %v3051 = vsel %vm179, %v2747, %v2854
      %v3052 = vsel %vm179, %v2748, %v2856
      %v3053 = vsel %vm179, %v2749, %v2858
      %v3054 = vsel %vm179, %v2750, %v2860
      %v3055 = vsel %vm179, %v2751, %v2862
      %v3056 = vsel %vm179, %v2752, %v2864
      %v3057 = vsel %vm661, %v3025, %v2930
      %v3058 = vsel %vm661, %v3026, %v2932
      %v3059 = vsel %vm661, %v3027, %v2934
      %v3060 = vsel %vm661, %v3028, %v2936
      %v3061 = vsel %vm661, %v3029, %v2938
      %v3062 = vsel %vm661, %v3030, %v2940
      %v3063 = vsel %vm661, %v3031, %v2942
      %v3064 = vsel %vm661, %v3032, %v2944
      %v3065 = vsel %vm661, %v3033, %v2946
      %v3066 = vsel %vm661, %v3034, %v2948
      %v3067 = vsel %vm661, %v3035, %v2950
      %v3068 = vsel %vm661, %v3036, %v2952
      %v3069 = vsel %vm661, %v3037, %v2954
      %v3070 = vsel %vm661, %v3038, %v2956
      %v3071 = vsel %vm661, %v3039, %v2958
      %v3072 = vsel %vm661, %v3040, %v2960
      %v3073 = vsel %vm661, %v3041, %v2962
      %v3074 = vsel %vm661, %v3042, %v2964
      %v3075 = vsel %vm661, %v3043, %v2966
      %v3076 = vsel %vm661, %v3044, %v2968
      %v3077 = vsel %vm661, %v3045, %v2970
      %v3078 = vsel %vm661, %v3046, %v2972
      %v3079 = vsel %vm661, %v3047, %v2974
      %v3080 = vsel %vm661, %v3048, %v2976
      %v3081 = vsel %vm661, %v3049, %v2978
      %v3082 = vsel %vm661, %v3050, %v2980
      %v3083 = vsel %vm661, %v3051, %v2982
      %v3084 = vsel %vm661, %v3052, %v2984
      %v3085 = vsel %vm661, %v3053, %v2986
      %v3086 = vsel %vm661, %v3054, %v2988
      %v3087 = vsel %vm661, %v3055, %v2990
      %v3088 = vsel %vm661, %v3056, %v2992
      %s3089 = scalar_lea.vmem %s1, 192
      %v3090 = vld [vmem:[%s3089] sm:$0xff]
      %v3091 = vld [vmem:[%s3089 + $0x8] sm:$0xff]
      %v3092 = vld [vmem:[%s3089 + $0x10] sm:$0xff]
      %v3093 = vld [vmem:[%s3089 + $0x18] sm:$0xff]
      %v3094 = vld [vmem:[%s3089 + $0x20] sm:$0xff]
      %v3095 = vld [vmem:[%s3089 + $0x28] sm:$0xff]
      %v3096 = vld [vmem:[%s3089 + $0x30] sm:$0xff]
      %v3097 = vld [vmem:[%s3089 + $0x38] sm:$0xff]
      %v3098 = vld [vmem:[%s3089 + $0x40] sm:$0xff]
      %v3099 = vld [vmem:[%s3089 + $0x48] sm:$0xff]
      %v3100 = vld [vmem:[%s3089 + $0x50] sm:$0xff]
      %v3101 = vld [vmem:[%s3089 + $0x58] sm:$0xff]
      %s3102 = scalar_lea.vmem %s2, 2
      %v3103 = vld [vmem:[%s3102] sm:$0x1]
      %v3105 = vlaneseq
      %v3106 = vshrl.u32 %v3105, 7
      %v3107 = vsub.s32 0, %v3106
      %v3108 = vrot.slane %v3103, %v3107
      %v3111 = vsel %vm713, %v3057, 0
      %v3114 = vsel %vm713, %v3058, 0
      %v3117 = vsel %vm713, %v3059, 0
      %v3120 = vsel %vm713, %v3060, 0
      %v3123 = vsel %vm713, %v3061, 0
      %v3126 = vsel %vm713, %v3062, 0
      %v3129 = vsel %vm713, %v3063, 0
      %v3132 = vsel %vm713, %v3064, 0
      %v3135 = vsel %vm713, %v3065, 0
      %v3138 = vsel %vm713, %v3066, 0
      %v3141 = vsel %vm713, %v3067, 0
      %v3144 = vsel %vm713, %v3068, 0
      %v3147 = vsel %vm713, %v3069, 0
      %v3150 = vsel %vm713, %v3070, 0
      %v3153 = vsel %vm713, %v3071, 0
      %v3156 = vsel %vm713, %v3072, 0
      %v3159 = vsel %vm713, %v3073, 0
      %v3162 = vsel %vm713, %v3074, 0
      %v3165 = vsel %vm713, %v3075, 0
      %v3168 = vsel %vm713, %v3076, 0
      %v3171 = vsel %vm713, %v3077, 0
      %v3174 = vsel %vm713, %v3078, 0
      %v3177 = vsel %vm713, %v3079, 0
      %v3180 = vsel %vm713, %v3080, 0
      %v3183 = vsel %vm713, %v3081, 0
      %v3186 = vsel %vm713, %v3082, 0
      %v3189 = vsel %vm713, %v3083, 0
      %v3192 = vsel %vm713, %v3084, 0
      %v3195 = vsel %vm713, %v3085, 0
      %v3198 = vsel %vm713, %v3086, 0
      %v3201 = vsel %vm713, %v3087, 0
      %v3204 = vsel %vm713, %v3088, 0
      %3206 = vmatprep.subr.mxu0 0.0
      %3207 = vmatpush1.msra.mxu0 %v3090
      %3208 = vmatprep.subr.mxu0 0.0
      %3209 = vmatpush1.msra.mxu0 %v3091
      %3210 = vmatprep.subr.mxu0 0.0
      %3211 = vmatpush1.msra.mxu0 %v3092
      %3212 = vmatprep.subr.mxu0 0.0
      %3213 = vmatpush1.msra.mxu0 %v3093
      %3214 = vmatprep.subr.mxu0 0.0
      %3215 = vmatpush1.msra.mxu0 %v3094
      %3216 = vmatprep.subr.mxu0 0.0
      %3217 = vmatpush1.msra.mxu0 %v3095
      %3218 = vmatprep.subr.mxu0 0.0
      %3219 = vmatpush1.msra.mxu0 %v3096
      %3220 = vmatprep.subr.mxu0 0.0
      %3221 = vmatpush1.msra.mxu0 %v3097
      %3222 = vmatprep.subr.mxu0 0.0
      %3223 = vmatpush1.msra.mxu0 %v3098
      %3224 = vmatprep.subr.mxu0 0.0
      %3225 = vmatpush1.msra.mxu0 %v3099
      %3226 = vmatprep.subr.mxu0 0.0
      %3227 = vmatpush1.msra.mxu0 %v3100
      %3228 = vmatprep.subr.mxu0 0.0
      %3229 = vmatpush1.msra.mxu0 %v3101
      %3230 = vmatprep.subr.mxu0 0.0
      %3231 = vmatpush1.msra.mxu0 0.0
      %3232 = vmatprep.subr.mxu0 0.0
      %3233 = vmatpush1.msra.mxu0 0.0
      %3234 = vmatprep.subr.mxu0 0.0
      %3235 = vmatpush1.msra.mxu0 0.0
      %3236 = vmatprep.subr.mxu0 0.0
      %3237 = vmatpush1.msra.mxu0 0.0
      %3238 = vmatprep.subr.mxu0 0.0
      %3239 = vmatpush1.msra.mxu0 0.0
      %3240 = vmatprep.subr.mxu0 0.0
      %3241 = vmatpush1.msra.mxu0 0.0
      %3242 = vmatprep.subr.mxu0 0.0
      %3243 = vmatpush1.msra.mxu0 0.0
      %3244 = vmatprep.subr.mxu0 0.0
      %3245 = vmatpush1.msra.mxu0 0.0
      %3246 = vmatprep.subr.mxu0 0.0
      %3247 = vmatpush1.msra.mxu0 0.0
      %3248 = vmatprep.subr.mxu0 0.0
      %3249 = vmatpush1.msra.mxu0 0.0
      %3250 = vmatprep.subr.mxu0 0.0
      %3251 = vmatpush1.msra.mxu0 0.0
      %3252 = vmatprep.subr.mxu0 0.0
      %3253 = vmatpush1.msra.mxu0 0.0
      %3254 = vmatprep.subr.mxu0 0.0
      %3255 = vmatpush1.msra.mxu0 0.0
      %3256 = vmatprep.subr.mxu0 0.0
      %3257 = vmatpush1.msra.mxu0 0.0
      %3258 = vmatprep.subr.mxu0 0.0
      %3259 = vmatpush1.msra.mxu0 0.0
      %3260 = vmatprep.subr.mxu0 0.0
      %3261 = vmatpush1.msra.mxu0 0.0
      %3262 = vmatprep.subr.mxu0 0.0
      %3263 = vmatpush1.msra.mxu0 0.0
      %3264 = vmatprep.subr.mxu0 0.0
      %3265 = vmatpush1.msra.mxu0 0.0
      %3266 = vmatprep.subr.mxu0 0.0
      %3267 = vmatpush1.msra.mxu0 0.0
      %3268 = vmatprep.subr.mxu0 0.0
      %3269 = vmatpush1.msra.mxu0 0.0
      %3270 = vmatprep.mubr.f32.mxu0 0.0
      %3271 = vmatmul.mubr.f32.gmra.mrb[0].mxu0 %v3111
      %v3272 = vpop.f32.mrb[0].mxu0
      %v3273 = vadd.f32 %v3108, %v3272
      %v3274 = vpop.f32.mrb[0].mxu0
      %3275 = vmatprep.mubr.f32.mxu0 0.0
      %3276 = vmatmul.mubr.f32.gmra.mrb[0].mxu0 %v3114
      %v3277 = vpop.f32.mrb[0].mxu0
      %v3278 = vadd.f32 %v3108, %v3277
      %v3279 = vpop.f32.mrb[0].mxu0
      %3280 = vmatprep.mubr.f32.mxu0 0.0
      %3281 = vmatmul.mubr.f32.gmra.mrb[0].mxu0 %v3117
      %v3282 = vpop.f32.mrb[0].mxu0
      %v3283 = vadd.f32 %v3108, %v3282
      %v3284 = vpop.f32.mrb[0].mxu0
      %3285 = vmatprep.mubr.f32.mxu0 0.0
      %3286 = vmatmul.mubr.f32.gmra.mrb[0].mxu0 %v3120
      %v3287 = vpop.f32.mrb[0].mxu0
      %v3288 = vadd.f32 %v3108, %v3287
      %v3289 = vpop.f32.mrb[0].mxu0
      %3290 = vmatprep.mubr.f32.mxu0 0.0
      %3291 = vmatmul.mubr.f32.gmra.mrb[0].mxu0 %v3123
      %v3292 = vpop.f32.mrb[0].mxu0
      %v3293 = vadd.f32 %v3108, %v3292
      %v3294 = vpop.f32.mrb[0].mxu0
      %3295 = vmatprep.mubr.f32.mxu0 0.0
      %3296 = vmatmul.mubr.f32.gmra.mrb[0].mxu0 %v3126
      %v3297 = vpop.f32.mrb[0].mxu0
      %v3298 = vadd.f32 %v3108, %v3297
      %v3299 = vpop.f32.mrb[0].mxu0
      %3300 = vmatprep.mubr.f32.mxu0 0.0
      %3301 = vmatmul.mubr.f32.gmra.mrb[0].mxu0 %v3129
      %v3302 = vpop.f32.mrb[0].mxu0
      %v3303 = vadd.f32 %v3108, %v3302
      %v3304 = vpop.f32.mrb[0].mxu0
      %3305 = vmatprep.mubr.f32.mxu0 0.0
      %3306 = vmatmul.mubr.f32.gmra.mrb[0].mxu0 %v3132
      %v3307 = vpop.f32.mrb[0].mxu0
      %v3308 = vadd.f32 %v3108, %v3307
      %v3309 = vpop.f32.mrb[0].mxu0
      %3310 = vmatprep.mubr.f32.mxu0 0.0
      %3311 = vmatmul.mubr.f32.gmra.mrb[0].mxu0 %v3135
      %v3312 = vpop.f32.mrb[0].mxu0
      %v3313 = vadd.f32 %v3108, %v3312
      %v3314 = vpop.f32.mrb[0].mxu0
      %3315 = vmatprep.mubr.f32.mxu0 0.0
      %3316 = vmatmul.mubr.f32.gmra.mrb[0].mxu0 %v3138
      %v3317 = vpop.f32.mrb[0].mxu0
      %v3318 = vadd.f32 %v3108, %v3317
      %v3319 = vpop.f32.mrb[0].mxu0
      %3320 = vmatprep.mubr.f32.mxu0 0.0
      %3321 = vmatmul.mubr.f32.gmra.mrb[0].mxu0 %v3141
      %v3322 = vpop.f32.mrb[0].mxu0
      %v3323 = vadd.f32 %v3108, %v3322
      %v3324 = vpop.f32.mrb[0].mxu0
      %3325 = vmatprep.mubr.f32.mxu0 0.0
      %3326 = vmatmul.mubr.f32.gmra.mrb[0].mxu0 %v3144
      %v3327 = vpop.f32.mrb[0].mxu0
      %v3328 = vadd.f32 %v3108, %v3327
      %v3329 = vpop.f32.mrb[0].mxu0
      %3330 = vmatprep.mubr.f32.mxu0 0.0
      %3331 = vmatmul.mubr.f32.gmra.mrb[0].mxu0 %v3147
      %v3332 = vpop.f32.mrb[0].mxu0
      %v3333 = vadd.f32 %v3108, %v3332
      %v3334 = vpop.f32.mrb[0].mxu0
      %3335 = vmatprep.mubr.f32.mxu0 0.0
      %3336 = vmatmul.mubr.f32.gmra.mrb[0].mxu0 %v3150
      %v3337 = vpop.f32.mrb[0].mxu0
      %v3338 = vadd.f32 %v3108, %v3337
      %v3339 = vpop.f32.mrb[0].mxu0
      %3340 = vmatprep.mubr.f32.mxu0 0.0
      %3341 = vmatmul.mubr.f32.gmra.mrb[0].mxu0 %v3153
      %v3342 = vpop.f32.mrb[0].mxu0
      %v3343 = vadd.f32 %v3108, %v3342
      %v3344 = vpop.f32.mrb[0].mxu0
      %3345 = vmatprep.mubr.f32.mxu0 0.0
      %3346 = vmatmul.mubr.f32.gmra.mrb[0].mxu0 %v3156
      %v3347 = vpop.f32.mrb[0].mxu0
      %v3348 = vadd.f32 %v3108, %v3347
      %v3349 = vpop.f32.mrb[0].mxu0
      %3350 = vmatprep.mubr.f32.mxu0 0.0
      %3351 = vmatmul.mubr.f32.gmra.mrb[0].mxu0 %v3159
      %v3352 = vpop.f32.mrb[0].mxu0
      %v3353 = vadd.f32 %v3108, %v3352
      %v3354 = vpop.f32.mrb[0].mxu0
      %3355 = vmatprep.mubr.f32.mxu0 0.0
      %3356 = vmatmul.mubr.f32.gmra.mrb[0].mxu0 %v3162
      %v3357 = vpop.f32.mrb[0].mxu0
      %v3358 = vadd.f32 %v3108, %v3357
      %v3359 = vpop.f32.mrb[0].mxu0
      %3360 = vmatprep.mubr.f32.mxu0 0.0
      %3361 = vmatmul.mubr.f32.gmra.mrb[0].mxu0 %v3165
      %v3362 = vpop.f32.mrb[0].mxu0
      %v3363 = vadd.f32 %v3108, %v3362
      %v3364 = vpop.f32.mrb[0].mxu0
      %3365 = vmatprep.mubr.f32.mxu0 0.0
      %3366 = vmatmul.mubr.f32.gmra.mrb[0].mxu0 %v3168
      %v3367 = vpop.f32.mrb[0].mxu0
      %v3368 = vadd.f32 %v3108, %v3367
      %v3369 = vpop.f32.mrb[0].mxu0
      %3370 = vmatprep.mubr.f32.mxu0 0.0
      %3371 = vmatmul.mubr.f32.gmra.mrb[0].mxu0 %v3171
      %v3372 = vpop.f32.mrb[0].mxu0
      %v3373 = vadd.f32 %v3108, %v3372
      %v3374 = vpop.f32.mrb[0].mxu0
      %3375 = vmatprep.mubr.f32.mxu0 0.0
      %3376 = vmatmul.mubr.f32.gmra.mrb[0].mxu0 %v3174
      %v3377 = vpop.f32.mrb[0].mxu0
      %v3378 = vadd.f32 %v3108, %v3377
      %v3379 = vpop.f32.mrb[0].mxu0
      %3380 = vmatprep.mubr.f32.mxu0 0.0
      %3381 = vmatmul.mubr.f32.gmra.mrb[0].mxu0 %v3177
      %v3382 = vpop.f32.mrb[0].mxu0
      %v3383 = vadd.f32 %v3108, %v3382
      %v3384 = vpop.f32.mrb[0].mxu0
      %3385 = vmatprep.mubr.f32.mxu0 0.0
      %3386 = vmatmul.mubr.f32.gmra.mrb[0].mxu0 %v3180
      %v3387 = vpop.f32.mrb[0].mxu0
      %v3388 = vadd.f32 %v3108, %v3387
      %v3389 = vpop.f32.mrb[0].mxu0
      %3390 = vmatprep.mubr.f32.mxu0 0.0
      %3391 = vmatmul.mubr.f32.gmra.mrb[0].mxu0 %v3183
      %v3392 = vpop.f32.mrb[0].mxu0
      %v3393 = vadd.f32 %v3108, %v3392
      %v3394 = vpop.f32.mrb[0].mxu0
      %3395 = vmatprep.mubr.f32.mxu0 0.0
      %3396 = vmatmul.mubr.f32.gmra.mrb[0].mxu0 %v3186
      %v3397 = vpop.f32.mrb[0].mxu0
      %v3398 = vadd.f32 %v3108, %v3397
      %v3399 = vpop.f32.mrb[0].mxu0
      %3400 = vmatprep.mubr.f32.mxu0 0.0
      %3401 = vmatmul.mubr.f32.gmra.mrb[0].mxu0 %v3189
      %v3402 = vpop.f32.mrb[0].mxu0
      %v3403 = vadd.f32 %v3108, %v3402
      %v3404 = vpop.f32.mrb[0].mxu0
      %3405 = vmatprep.mubr.f32.mxu0 0.0
      %3406 = vmatmul.mubr.f32.gmra.mrb[0].mxu0 %v3192
      %v3407 = vpop.f32.mrb[0].mxu0
      %v3408 = vadd.f32 %v3108, %v3407
      %v3409 = vpop.f32.mrb[0].mxu0
      %3410 = vmatprep.mubr.f32.mxu0 0.0
      %3411 = vmatmul.mubr.f32.gmra.mrb[0].mxu0 %v3195
      %v3412 = vpop.f32.mrb[0].mxu0
      %v3413 = vadd.f32 %v3108, %v3412
      %v3414 = vpop.f32.mrb[0].mxu0
      %3415 = vmatprep.mubr.f32.mxu0 0.0
      %3416 = vmatmul.mubr.f32.gmra.mrb[0].mxu0 %v3198
      %v3417 = vpop.f32.mrb[0].mxu0
      %v3418 = vadd.f32 %v3108, %v3417
      %v3419 = vpop.f32.mrb[0].mxu0
      %3420 = vmatprep.mubr.f32.mxu0 0.0
      %3421 = vmatmul.mubr.f32.gmra.mrb[0].mxu0 %v3201
      %v3422 = vpop.f32.mrb[0].mxu0
      %v3423 = vadd.f32 %v3108, %v3422
      %v3424 = vpop.f32.mrb[0].mxu0
      %3425 = vmatprep.mubr.f32.mxu0 0.0
      %3426 = vmatmul.mubr.f32.gmra.mrb[0].mxu0 %v3204
      %v3427 = vpop.f32.mrb[0].mxu0
      %v3428 = vadd.f32 %v3108, %v3427
      %v3429 = vpop.f32.mrb[0].mxu0
      %3430 = vdwg.mxu0
      %v3431 = vxor.u32 %v3273, 2147483648
      %v3432 = vxor.u32 %v3278, 2147483648
      %v3433 = vxor.u32 %v3283, 2147483648
      %v3434 = vxor.u32 %v3288, 2147483648
      %v3435 = vxor.u32 %v3293, 2147483648
      %v3436 = vxor.u32 %v3298, 2147483648
      %v3437 = vxor.u32 %v3303, 2147483648
      %v3438 = vxor.u32 %v3308, 2147483648
      %v3439 = vxor.u32 %v3313, 2147483648
      %v3440 = vxor.u32 %v3318, 2147483648
      %v3441 = vxor.u32 %v3323, 2147483648
      %v3442 = vxor.u32 %v3328, 2147483648
      %v3443 = vxor.u32 %v3333, 2147483648
      %v3444 = vxor.u32 %v3338, 2147483648
      %v3445 = vxor.u32 %v3343, 2147483648
      %v3446 = vxor.u32 %v3348, 2147483648
      %v3447 = vxor.u32 %v3353, 2147483648
      %v3448 = vxor.u32 %v3358, 2147483648
      %v3449 = vxor.u32 %v3363, 2147483648
      %v3450 = vxor.u32 %v3368, 2147483648
      %v3451 = vxor.u32 %v3373, 2147483648
      %v3452 = vxor.u32 %v3378, 2147483648
      %v3453 = vxor.u32 %v3383, 2147483648
      %v3454 = vxor.u32 %v3388, 2147483648
      %v3455 = vxor.u32 %v3393, 2147483648
      %v3456 = vxor.u32 %v3398, 2147483648
      %v3457 = vxor.u32 %v3403, 2147483648
      %v3458 = vxor.u32 %v3408, 2147483648
      %v3459 = vxor.u32 %v3413, 2147483648
      %v3460 = vxor.u32 %v3418, 2147483648
      %v3461 = vxor.u32 %v3423, 2147483648
      %v3462 = vxor.u32 %v3428, 2147483648
      %v3463 = vmul.f32 %v3431, 1.442695
      %v3464 = vpow.pop %v3463
      %v3465 = vmul.f32 %v3432, 1.442695
      %v3466 = vpow.pop %v3465
      %v3467 = vmul.f32 %v3433, 1.442695
      %v3468 = vpow.pop %v3467
      %v3469 = vmul.f32 %v3434, 1.442695
      %v3470 = vpow.pop %v3469
      %v3471 = vmul.f32 %v3435, 1.442695
      %v3472 = vpow.pop %v3471
      %v3473 = vmul.f32 %v3436, 1.442695
      %v3474 = vpow.pop %v3473
      %v3475 = vmul.f32 %v3437, 1.442695
      %v3476 = vpow.pop %v3475
      %v3477 = vmul.f32 %v3438, 1.442695
      %v3478 = vpow.pop %v3477
      %v3479 = vmul.f32 %v3439, 1.442695
      %v3480 = vpow.pop %v3479
      %v3481 = vmul.f32 %v3440, 1.442695
      %v3482 = vpow.pop %v3481
      %v3483 = vmul.f32 %v3441, 1.442695
      %v3484 = vpow.pop %v3483
      %v3485 = vmul.f32 %v3442, 1.442695
      %v3486 = vpow.pop %v3485
      %v3487 = vmul.f32 %v3443, 1.442695
      %v3488 = vpow.pop %v3487
      %v3489 = vmul.f32 %v3444, 1.442695
      %v3490 = vpow.pop %v3489
      %v3491 = vmul.f32 %v3445, 1.442695
      %v3492 = vpow.pop %v3491
      %v3493 = vmul.f32 %v3446, 1.442695
      %v3494 = vpow.pop %v3493
      %v3495 = vmul.f32 %v3447, 1.442695
      %v3496 = vpow.pop %v3495
      %v3497 = vmul.f32 %v3448, 1.442695
      %v3498 = vpow.pop %v3497
      %v3499 = vmul.f32 %v3449, 1.442695
      %v3500 = vpow.pop %v3499
      %v3501 = vmul.f32 %v3450, 1.442695
      %v3502 = vpow.pop %v3501
      %v3503 = vmul.f32 %v3451, 1.442695
      %v3504 = vpow.pop %v3503
      %v3505 = vmul.f32 %v3452, 1.442695
      %v3506 = vpow.pop %v3505
      %v3507 = vmul.f32 %v3453, 1.442695
      %v3508 = vpow.pop %v3507
      %v3509 = vmul.f32 %v3454, 1.442695
      %v3510 = vpow.pop %v3509
      %v3511 = vmul.f32 %v3455, 1.442695
      %v3512 = vpow.pop %v3511
      %v3513 = vmul.f32 %v3456, 1.442695
      %v3514 = vpow.pop %v3513
      %v3515 = vmul.f32 %v3457, 1.442695
      %v3516 = vpow.pop %v3515
      %v3517 = vmul.f32 %v3458, 1.442695
      %v3518 = vpow.pop %v3517
      %v3519 = vmul.f32 %v3459, 1.442695
      %v3520 = vpow.pop %v3519
      %v3521 = vmul.f32 %v3460, 1.442695
      %v3522 = vpow.pop %v3521
      %v3523 = vmul.f32 %v3461, 1.442695
      %v3524 = vpow.pop %v3523
      %v3525 = vmul.f32 %v3462, 1.442695
      %v3526 = vpow.pop %v3525
      %v3527 = vadd.f32 %v3464, 1.0
      %v3528 = vadd.f32 %v3466, 1.0
      %v3529 = vadd.f32 %v3468, 1.0
      %v3530 = vadd.f32 %v3470, 1.0
      %v3531 = vadd.f32 %v3472, 1.0
      %v3532 = vadd.f32 %v3474, 1.0
      %v3533 = vadd.f32 %v3476, 1.0
      %v3534 = vadd.f32 %v3478, 1.0
      %v3535 = vadd.f32 %v3480, 1.0
      %v3536 = vadd.f32 %v3482, 1.0
      %v3537 = vadd.f32 %v3484, 1.0
      %v3538 = vadd.f32 %v3486, 1.0
      %v3539 = vadd.f32 %v3488, 1.0
      %v3540 = vadd.f32 %v3490, 1.0
      %v3541 = vadd.f32 %v3492, 1.0
      %v3542 = vadd.f32 %v3494, 1.0
      %v3543 = vadd.f32 %v3496, 1.0
      %v3544 = vadd.f32 %v3498, 1.0
      %v3545 = vadd.f32 %v3500, 1.0
      %v3546 = vadd.f32 %v3502, 1.0
      %v3547 = vadd.f32 %v3504, 1.0
      %v3548 = vadd.f32 %v3506, 1.0
      %v3549 = vadd.f32 %v3508, 1.0
      %v3550 = vadd.f32 %v3510, 1.0
      %v3551 = vadd.f32 %v3512, 1.0
      %v3552 = vadd.f32 %v3514, 1.0
      %v3553 = vadd.f32 %v3516, 1.0
      %v3554 = vadd.f32 %v3518, 1.0
      %v3555 = vadd.f32 %v3520, 1.0
      %v3556 = vadd.f32 %v3522, 1.0
      %v3557 = vadd.f32 %v3524, 1.0
      %v3558 = vadd.f32 %v3526, 1.0
      %v3559 = vrcp.pop %v3527
      %v3560 = vmul.f32 1.0, %v3559
      %v3561 = vrcp.pop %v3528
      %v3562 = vmul.f32 1.0, %v3561
      %v3563 = vrcp.pop %v3529
      %v3564 = vmul.f32 1.0, %v3563
      %v3565 = vrcp.pop %v3530
      %v3566 = vmul.f32 1.0, %v3565
      %v3567 = vrcp.pop %v3531
      %v3568 = vmul.f32 1.0, %v3567
      %v3569 = vrcp.pop %v3532
      %v3570 = vmul.f32 1.0, %v3569
      %v3571 = vrcp.pop %v3533
      %v3572 = vmul.f32 1.0, %v3571
      %v3573 = vrcp.pop %v3534
      %v3574 = vmul.f32 1.0, %v3573
      %v3575 = vrcp.pop %v3535
      %v3576 = vmul.f32 1.0, %v3575
      %v3577 = vrcp.pop %v3536
      %v3578 = vmul.f32 1.0, %v3577
      %v3579 = vrcp.pop %v3537
      %v3580 = vmul.f32 1.0, %v3579
      %v3581 = vrcp.pop %v3538
      %v3582 = vmul.f32 1.0, %v3581
      %v3583 = vrcp.pop %v3539
      %v3584 = vmul.f32 1.0, %v3583
      %v3585 = vrcp.pop %v3540
      %v3586 = vmul.f32 1.0, %v3585
      %v3587 = vrcp.pop %v3541
      %v3588 = vmul.f32 1.0, %v3587
      %v3589 = vrcp.pop %v3542
      %v3590 = vmul.f32 1.0, %v3589
      %v3591 = vrcp.pop %v3543
      %v3592 = vmul.f32 1.0, %v3591
      %v3593 = vrcp.pop %v3544
      %v3594 = vmul.f32 1.0, %v3593
      %v3595 = vrcp.pop %v3545
      %v3596 = vmul.f32 1.0, %v3595
      %v3597 = vrcp.pop %v3546
      %v3598 = vmul.f32 1.0, %v3597
      %v3599 = vrcp.pop %v3547
      %v3600 = vmul.f32 1.0, %v3599
      %v3601 = vrcp.pop %v3548
      %v3602 = vmul.f32 1.0, %v3601
      %v3603 = vrcp.pop %v3549
      %v3604 = vmul.f32 1.0, %v3603
      %v3605 = vrcp.pop %v3550
      %v3606 = vmul.f32 1.0, %v3605
      %v3607 = vrcp.pop %v3551
      %v3608 = vmul.f32 1.0, %v3607
      %v3609 = vrcp.pop %v3552
      %v3610 = vmul.f32 1.0, %v3609
      %v3611 = vrcp.pop %v3553
      %v3612 = vmul.f32 1.0, %v3611
      %v3613 = vrcp.pop %v3554
      %v3614 = vmul.f32 1.0, %v3613
      %v3615 = vrcp.pop %v3555
      %v3616 = vmul.f32 1.0, %v3615
      %v3617 = vrcp.pop %v3556
      %v3618 = vmul.f32 1.0, %v3617
      %v3619 = vrcp.pop %v3557
      %v3620 = vmul.f32 1.0, %v3619
      %v3621 = vrcp.pop %v3558
      %v3622 = vmul.f32 1.0, %v3621
      %3655 = vrot.lane.b32.xlu0 %v3560, 96
      %v3656 = vpop.permute.xlu0 %3655
      %3657 = vrot.lane.b32.xlu0 %v3562, 96
      %v3658 = vpop.permute.xlu0 %3657
      %3659 = vrot.lane.b32.xlu0 %v3564, 96
      %v3660 = vpop.permute.xlu0 %3659
      %3661 = vrot.lane.b32.xlu0 %v3566, 96
      %v3662 = vpop.permute.xlu0 %3661
      %3663 = vrot.lane.b32.xlu0 %v3568, 96
      %v3664 = vpop.permute.xlu0 %3663
      %3665 = vrot.lane.b32.xlu0 %v3570, 96
      %v3666 = vpop.permute.xlu0 %3665
      %3667 = vrot.lane.b32.xlu0 %v3572, 96
      %v3668 = vpop.permute.xlu0 %3667
      %3669 = vrot.lane.b32.xlu0 %v3574, 96
      %v3670 = vpop.permute.xlu0 %3669
      %3671 = vrot.lane.b32.xlu0 %v3576, 96
      %v3672 = vpop.permute.xlu0 %3671
      %3673 = vrot.lane.b32.xlu0 %v3578, 96
      %v3674 = vpop.permute.xlu0 %3673
      %3675 = vrot.lane.b32.xlu0 %v3580, 96
      %v3676 = vpop.permute.xlu0 %3675
      %3677 = vrot.lane.b32.xlu0 %v3582, 96
      %v3678 = vpop.permute.xlu0 %3677
      %3679 = vrot.lane.b32.xlu0 %v3584, 96
      %v3680 = vpop.permute.xlu0 %3679
      %3681 = vrot.lane.b32.xlu0 %v3586, 96
      %v3682 = vpop.permute.xlu0 %3681
      %3683 = vrot.lane.b32.xlu0 %v3588, 96
      %v3684 = vpop.permute.xlu0 %3683
      %3685 = vrot.lane.b32.xlu0 %v3590, 96
      %v3686 = vpop.permute.xlu0 %3685
      %3687 = vrot.lane.b32.xlu0 %v3592, 96
      %v3688 = vpop.permute.xlu0 %3687
      %3689 = vrot.lane.b32.xlu0 %v3594, 96
      %v3690 = vpop.permute.xlu0 %3689
      %3691 = vrot.lane.b32.xlu0 %v3596, 96
      %v3692 = vpop.permute.xlu0 %3691
      %3693 = vrot.lane.b32.xlu0 %v3598, 96
      %v3694 = vpop.permute.xlu0 %3693
      %3695 = vrot.lane.b32.xlu0 %v3600, 96
      %v3696 = vpop.permute.xlu0 %3695
      %3697 = vrot.lane.b32.xlu0 %v3602, 96
      %v3698 = vpop.permute.xlu0 %3697
      %3699 = vrot.lane.b32.xlu0 %v3604, 96
      %v3700 = vpop.permute.xlu0 %3699
      %3701 = vrot.lane.b32.xlu0 %v3606, 96
      %v3702 = vpop.permute.xlu0 %3701
      %3703 = vrot.lane.b32.xlu0 %v3608, 96
      %v3704 = vpop.permute.xlu0 %3703
      %3705 = vrot.lane.b32.xlu0 %v3610, 96
      %v3706 = vpop.permute.xlu0 %3705
      %3707 = vrot.lane.b32.xlu0 %v3612, 96
      %v3708 = vpop.permute.xlu0 %3707
      %3709 = vrot.lane.b32.xlu0 %v3614, 96
      %v3710 = vpop.permute.xlu0 %3709
      %3711 = vrot.lane.b32.xlu0 %v3616, 96
      %v3712 = vpop.permute.xlu0 %3711
      %3713 = vrot.lane.b32.xlu0 %v3618, 96
      %v3714 = vpop.permute.xlu0 %3713
      %3715 = vrot.lane.b32.xlu0 %v3620, 96
      %v3716 = vpop.permute.xlu0 %3715
      %3717 = vrot.lane.b32.xlu0 %v3622, 96
      %v3718 = vpop.permute.xlu0 %3717
      %v3751 = vmul.f32 %v3273, %v3656
      %v3752 = vmul.f32 %v3278, %v3658
      %v3753 = vmul.f32 %v3283, %v3660
      %v3754 = vmul.f32 %v3288, %v3662
      %v3755 = vmul.f32 %v3293, %v3664
      %v3756 = vmul.f32 %v3298, %v3666
      %v3757 = vmul.f32 %v3303, %v3668
      %v3758 = vmul.f32 %v3308, %v3670
      %v3759 = vmul.f32 %v3313, %v3672
      %v3760 = vmul.f32 %v3318, %v3674
      %v3761 = vmul.f32 %v3323, %v3676
      %v3762 = vmul.f32 %v3328, %v3678
      %v3763 = vmul.f32 %v3333, %v3680
      %v3764 = vmul.f32 %v3338, %v3682
      %v3765 = vmul.f32 %v3343, %v3684
      %v3766 = vmul.f32 %v3348, %v3686
      %v3767 = vmul.f32 %v3353, %v3688
      %v3768 = vmul.f32 %v3358, %v3690
      %v3769 = vmul.f32 %v3363, %v3692
      %v3770 = vmul.f32 %v3368, %v3694
      %v3771 = vmul.f32 %v3373, %v3696
      %v3772 = vmul.f32 %v3378, %v3698
      %v3773 = vmul.f32 %v3383, %v3700
      %v3774 = vmul.f32 %v3388, %v3702
      %v3775 = vmul.f32 %v3393, %v3704
      %v3776 = vmul.f32 %v3398, %v3706
      %v3777 = vmul.f32 %v3403, %v3708
      %v3778 = vmul.f32 %v3408, %v3710
      %v3779 = vmul.f32 %v3413, %v3712
      %v3780 = vmul.f32 %v3418, %v3714
      %v3781 = vmul.f32 %v3423, %v3716
      %v3782 = vmul.f32 %v3428, %v3718
      %v3783 = vadd.f32 %v2689, %v3751
      %v3784 = vadd.f32 %v2690, %v3752
      %v3785 = vadd.f32 %v2691, %v3753
      %v3786 = vadd.f32 %v2692, %v3754
      %v3787 = vadd.f32 %v2693, %v3755
      %v3788 = vadd.f32 %v2694, %v3756
      %v3789 = vadd.f32 %v2695, %v3757
      %v3790 = vadd.f32 %v2696, %v3758
      %v3791 = vadd.f32 %v2697, %v3759
      %v3792 = vadd.f32 %v2698, %v3760
      %v3793 = vadd.f32 %v2699, %v3761
      %v3794 = vadd.f32 %v2700, %v3762
      %v3795 = vadd.f32 %v2701, %v3763
      %v3796 = vadd.f32 %v2702, %v3764
      %v3797 = vadd.f32 %v2703, %v3765
      %v3798 = vadd.f32 %v2704, %v3766
      %v3799 = vadd.f32 %v2705, %v3767
      %v3800 = vadd.f32 %v2706, %v3768
      %v3801 = vadd.f32 %v2707, %v3769
      %v3802 = vadd.f32 %v2708, %v3770
      %v3803 = vadd.f32 %v2709, %v3771
      %v3804 = vadd.f32 %v2710, %v3772
      %v3805 = vadd.f32 %v2711, %v3773
      %v3806 = vadd.f32 %v2712, %v3774
      %v3807 = vadd.f32 %v2713, %v3775
      %v3808 = vadd.f32 %v2714, %v3776
      %v3809 = vadd.f32 %v2715, %v3777
      %v3810 = vadd.f32 %v2716, %v3778
      %v3811 = vadd.f32 %v2717, %v3779
      %v3812 = vadd.f32 %v2718, %v3780
      %v3813 = vadd.f32 %v2719, %v3781
      %v3814 = vadd.f32 %v2720, %v3782
      %v3815 = vmul.f32 %v3783, 0.70710677
      %v3816 = vmul.f32 %v3784, 0.70710677
      %v3817 = vmul.f32 %v3785, 0.70710677
      %v3818 = vmul.f32 %v3786, 0.70710677
      %v3819 = vmul.f32 %v3787, 0.70710677
      %v3820 = vmul.f32 %v3788, 0.70710677
      %v3821 = vmul.f32 %v3789, 0.70710677
      %v3822 = vmul.f32 %v3790, 0.70710677
      %v3823 = vmul.f32 %v3791, 0.70710677
      %v3824 = vmul.f32 %v3792, 0.70710677
      %v3825 = vmul.f32 %v3793, 0.70710677
      %v3826 = vmul.f32 %v3794, 0.70710677
      %v3827 = vmul.f32 %v3795, 0.70710677
      %v3828 = vmul.f32 %v3796, 0.70710677
      %v3829 = vmul.f32 %v3797, 0.70710677
      %v3830 = vmul.f32 %v3798, 0.70710677
      %v3831 = vmul.f32 %v3799, 0.70710677
      %v3832 = vmul.f32 %v3800, 0.70710677
      %v3833 = vmul.f32 %v3801, 0.70710677
      %v3834 = vmul.f32 %v3802, 0.70710677
      %v3835 = vmul.f32 %v3803, 0.70710677
      %v3836 = vmul.f32 %v3804, 0.70710677
      %v3837 = vmul.f32 %v3805, 0.70710677
      %v3838 = vmul.f32 %v3806, 0.70710677
      %v3839 = vmul.f32 %v3807, 0.70710677
      %v3840 = vmul.f32 %v3808, 0.70710677
      %v3841 = vmul.f32 %v3809, 0.70710677
      %v3842 = vmul.f32 %v3810, 0.70710677
      %v3843 = vmul.f32 %v3811, 0.70710677
      %v3844 = vmul.f32 %v3812, 0.70710677
      %v3845 = vmul.f32 %v3813, 0.70710677
      %v3846 = vmul.f32 %v3814, 0.70710677
      %3847 = vst.msk [vmem:[%s177] sm:$0xff] %vm179, %v3815
      %3848 = vst.msk [vmem:[%s177 + $0x8] sm:$0xff] %vm179, %v3816
      %3849 = vst.msk [vmem:[%s177 + $0x10] sm:$0xff] %vm179, %v3817
      %3850 = vst.msk [vmem:[%s177 + $0x18] sm:$0xff] %vm179, %v3818
      %3851 = vst.msk [vmem:[%s177 + $0x20] sm:$0xff] %vm179, %v3819
      %3852 = vst.msk [vmem:[%s177 + $0x28] sm:$0xff] %vm179, %v3820
      %3853 = vst.msk [vmem:[%s177 + $0x30] sm:$0xff] %vm179, %v3821
      %3854 = vst.msk [vmem:[%s177 + $0x38] sm:$0xff] %vm179, %v3822
      %3855 = vst.msk [vmem:[%s177 + $0x40] sm:$0xff] %vm179, %v3823
      %3856 = vst.msk [vmem:[%s177 + $0x48] sm:$0xff] %vm179, %v3824
      %3857 = vst.msk [vmem:[%s177 + $0x50] sm:$0xff] %vm179, %v3825
      %3858 = vst.msk [vmem:[%s177 + $0x58] sm:$0xff] %vm179, %v3826
      %3859 = vst.msk [vmem:[%s177 + $0x60] sm:$0xff] %vm179, %v3827
      %3860 = vst.msk [vmem:[%s177 + $0x68] sm:$0xff] %vm179, %v3828
      %3861 = vst.msk [vmem:[%s177 + $0x70] sm:$0xff] %vm179, %v3829
      %3862 = vst.msk [vmem:[%s177 + $0x78] sm:$0xff] %vm179, %v3830
      %3863 = vst.msk [vmem:[%s177 + $0x80] sm:$0xff] %vm179, %v3831
      %3864 = vst.msk [vmem:[%s177 + $0x88] sm:$0xff] %vm179, %v3832
      %3865 = vst.msk [vmem:[%s177 + $0x90] sm:$0xff] %vm179, %v3833
      %3866 = vst.msk [vmem:[%s177 + $0x98] sm:$0xff] %vm179, %v3834
      %3867 = vst.msk [vmem:[%s177 + $0xa0] sm:$0xff] %vm179, %v3835
      %3868 = vst.msk [vmem:[%s177 + $0xa8] sm:$0xff] %vm179, %v3836
      %3869 = vst.msk [vmem:[%s177 + $0xb0] sm:$0xff] %vm179, %v3837
      %3870 = vst.msk [vmem:[%s177 + $0xb8] sm:$0xff] %vm179, %v3838
      %3871 = vst.msk [vmem:[%s177 + $0xc0] sm:$0xff] %vm179, %v3839
      %3872 = vst.msk [vmem:[%s177 + $0xc8] sm:$0xff] %vm179, %v3840
      %3873 = vst.msk [vmem:[%s177 + $0xd0] sm:$0xff] %vm179, %v3841
      %3874 = vst.msk [vmem:[%s177 + $0xd8] sm:$0xff] %vm179, %v3842
      %3875 = vst.msk [vmem:[%s177 + $0xe0] sm:$0xff] %vm179, %v3843
      %3876 = vst.msk [vmem:[%s177 + $0xe8] sm:$0xff] %vm179, %v3844
      %3877 = vst.msk [vmem:[%s177 + $0xf0] sm:$0xff] %vm179, %v3845
      %3878 = vst.msk [vmem:[%s177 + $0xf8] sm:$0xff] %vm179, %v3846
      %s3879 = smul.u32 16, %s14
      %p3880 = scmp.lt.s32.totalorder %s3879, 31
      %s3881 = scalar_select %p3880, %s3879, 31
      %s3882 = smul.addr %s3881, 2
      %s3883 = smul.addr %s3882, 8
      %s3884 = scalar_lea.vmem %s3, %s3883
      // Predicated region
      $region33: #{stacked_cnn_forward.1} parent=31 // pred_check
        %p3885 = pneg %p100
      $region34: #{stacked_cnn_forward.1} parent=31 // pred_check_branch
        %3887 = sbr.rel (%p3885) target = $region36
      $region35: #{stacked_cnn_forward.1} parent=31 // pred_region
        %s3888 = smul.u32 16, %s14
      $region36: #{stacked_cnn_forward.1} parent=31 // pred_fallthru
        _
    $region32: #{stacked_cnn_forward.1} parent=5 // pred_fallthru
      _
    %p3889 = scmp.le.s32.totalorder 2, %s9
    // Predicated region
    $region37: #{stacked_cnn_forward.1} parent=5 // pred_check
      %p3890 = pneg %p3889
    $region38: #{stacked_cnn_forward.1} parent=5 // pred_check_branch
      %3892 = sbr.rel (%p3890) target = $region40
    $region39: #{stacked_cnn_forward.1} parent=5 // pred_region
      %s3893 = ssub.s32 %s9, 2
      // Predicated region
      $region41: #{stacked_cnn_forward.1} parent=39 // pred_check
        %p3894 = pneg %p106
      $region42: #{stacked_cnn_forward.1} parent=39 // pred_check_branch
        %3896 = sbr.rel (%p3894) target = $region44
      $region43: #{stacked_cnn_forward.1} parent=39 // pred_region
        %s3897 = smul.u32 16, %s15
        %p3898 = scmp.lt.s32.totalorder %s3897, 31
        %s3899 = scalar_select %p3898, %s3897, 31
        %s3900 = smul.addr %s3899, 2
        %s3901 = smul.addr %s3900, 8
        %s3902 = scalar_lea.vmem %s3, %s3901
      $region44: #{stacked_cnn_forward.1} parent=39 // pred_fallthru
        _
    $region40: #{stacked_cnn_forward.1} parent=5 // pred_fallthru
      _
  $region6: #{stacked_cnn_forward.1} parent=0 // loop_footer
    %s13 = sadd.s32 1, %s9
  $region7: #{stacked_cnn_forward.1} parent=0 // loop_footer_branch
    %8 = sbr.rel target = $region3
  $region8: #{stacked_cnn_forward.1} parent=0 // loop_exit
    _

</llo_original>
